<compile_context>
chip_gen: v5e
topology: v5e:2x2
jax: 0.10.0
libtpu: 0.0.40
codegen_flags: <defaults>
</compile_context>

<pallas_src>
import functools

import jax
import jax.numpy as jnp
from jax import lax
from jax.experimental import pallas as pl
from jax.experimental.pallas import tpu as pltpu


def _round_up(n, m):
    return ((n + m - 1) // m) * m


def _pinn_kernel(x_ref,
                 w_uvh_ref, b_uvh_ref,
                 wz1_ref, bz1_ref,
                 wz2_ref, bz2_ref,
                 wz3_ref, bz3_ref,
                 wo_ref, bo_ref,
                 out_ref, *, nn_pad):
    x = x_ref[...]              # [block_b, 2]
    w_in = w_uvh_ref[...]       # [2, 3*nn_pad]
    b_in = b_uvh_ref[...]       # [1, 3*nn_pad]

    # Fused U/V/H1 input projections as two VPU broadcast-FMAs + one bias add
    # + one tanh (K=2 matmul would waste an entire MXU pass).
    pre = x[:, 0:1] * w_in[0:1, :] + x[:, 1:2] * w_in[1:2, :] + b_in
    uvh = jnp.tanh(pre)                                  # [block_b, 3*nn_pad]
    u = uvh[:, 0:nn_pad]                                 # 128-lane-aligned
    v = uvh[:, nn_pad:2 * nn_pad]                        # slices: zero cost
    h = uvh[:, 2 * nn_pad:3 * nn_pad]

    # Hoisted once: gate update becomes u + z*(v-u), 2 VPU ops per gate.
    vmu = v - u

    def gate(h_cur, w_ref, b_ref):
        z = jnp.tanh(
            jnp.dot(h_cur, w_ref[...], preferred_element_type=jnp.float32)
            + b_ref[...])
        return u + z * vmu

    h = gate(h, wz1_ref, bz1_ref)
    h = gate(h, wz2_ref, bz2_ref)
    h = gate(h, wz3_ref, bz3_ref)

    # Output layer: contract wo [1, nn_pad] with H3 [block_b, nn_pad] over the
    # feature axis -> lane-dense [1, block_b] row (no N=1 MXU result, no
    # masked 1-lane stores, no strided writeback DMA).
    out_row = lax.dot_general(
        wo_ref[...], h,
        dimension_numbers=(((1,), (1,)), ((), ())),
        preferred_element_type=jnp.float32)              # [1, block_b]
    out_ref[...] = (out_row + bo_ref[...]).astype(out_ref.dtype)


@functools.partial(jax.jit, static_argnames=("block_b",))
def pinn_forward(x, params, block_b=2048):
    """x: [B, 2] float32.  params: dict of (W:[in,out], b:[1,out]) pairs."""
    B, fin = x.shape
    assert fin == 2
    assert block_b % 128 == 0, "block_b must be a multiple of 128"
    nn = params["Wu"].shape[1]
    nn_pad = max(128, _round_up(nn, 128))

    # Pad the batch up to a multiple of block_b (no divisibility requirement).
    b_pad = _round_up(B, block_b)
    if b_pad != B:
        x = jnp.pad(x, ((0, b_pad - B), (0, 0)))

    def pad_w(w, rows, cols):
        return jnp.pad(w, ((0, rows - w.shape[0]), (0, cols - w.shape[1])))

    # Fused + lane-padded input-layer weights/biases (pad cols are zero, so
    # tanh(0)=0 keeps them exactly zero through the whole network).
    w_uvh = jnp.concatenate([pad_w(params["Wu"], 2, nn_pad),
                             pad_w(params["Wv"], 2, nn_pad),
                             pad_w(params["Wh"], 2, nn_pad)], axis=1)
    b_uvh = jnp.concatenate([pad_w(params["bu"], 1, nn_pad),
                             pad_w(params["bv"], 1, nn_pad),
                             pad_w(params["bh"], 1, nn_pad)], axis=1)

    wz1 = pad_w(params["Wz1"], nn_pad, nn_pad)
    wz2 = pad_w(params["Wz2"], nn_pad, nn_pad)
    wz3 = pad_w(params["Wz3"], nn_pad, nn_pad)
    bz1 = pad_w(params["bz1"], 1, nn_pad)
    bz2 = pad_w(params["bz2"], 1, nn_pad)
    bz3 = pad_w(params["bz3"], 1, nn_pad)
    wo = pad_w(params["Wo"].T, 1, nn_pad)            # [1, nn_pad], pad cols 0
    bo = params["bo"]                                # [1, 1]

    grid = (b_pad // block_b,)

    def full(shape):
        return pl.BlockSpec(shape, lambda i: (0,) * len(shape))

    in_specs = [
        pl.BlockSpec((block_b, 2), lambda i: (i, 0)),
        full(w_uvh.shape), full(b_uvh.shape),
        full(wz1.shape), full(bz1.shape),
        full(wz2.shape), full(bz2.shape),
        full(wz3.shape), full(bz3.shape),
        full(wo.shape), full(bo.shape),
    ]
    # Lane-dense output: (1, b_pad) array, one [1, block_b] row per grid step.
    out_spec = pl.BlockSpec((1, block_b), lambda i: (0, i))

    out_row = pl.pallas_call(
        functools.partial(_pinn_kernel, nn_pad=nn_pad),
        out_shape=jax.ShapeDtypeStruct((1, b_pad), jnp.float32),
        grid_spec=pltpu.PrefetchScalarGridSpec(
            num_scalar_prefetch=0,
            grid=grid,
            in_specs=in_specs,
            out_specs=out_spec,
        ),
        compiler_params=pltpu.CompilerParams(
            dimension_semantics=("parallel",)),
    )(x, w_uvh, b_uvh, wz1, bz1, wz2, bz2, wz3, bz3, wo, bo)

    return out_row[0, :B].reshape(B, 1)


def _xavier_normal(key, fan_in, fan_out, gain=1.0):
    # torch nn.init.xavier_normal_: std = gain * sqrt(2 / (fan_in + fan_out))
    std = gain * (2.0 / (fan_in + fan_out)) ** 0.5
    # stored as [in, out] (transposed relative to torch's [out, in] weight)
    return std * jax.random.normal(key, (fan_in, fan_out), dtype=jnp.float32)


def init_params(key, NN):
    keys = jax.random.split(key, 7)
    p = {}
    p["Wu"] = _xavier_normal(keys[0], 2, NN)
    p["bu"] = jnp.zeros((1, NN), jnp.float32)
    p["Wv"] = _xavier_normal(keys[1], 2, NN)
    p["bv"] = jnp.zeros((1, NN), jnp.float32)
    p["Wh"] = _xavier_normal(keys[2], 2, NN)
    p["bh"] = jnp.zeros((1, NN), jnp.float32)
    p["Wz1"] = _xavier_normal(keys[3], NN, NN)
    p["bz1"] = jnp.zeros((1, NN), jnp.float32)
    p["Wz2"] = _xavier_normal(keys[4], NN, NN)
    p["bz2"] = jnp.zeros((1, NN), jnp.float32)
    p["Wz3"] = _xavier_normal(keys[5], NN, NN)
    p["bz3"] = jnp.zeros((1, NN), jnp.float32)
    p["Wo"] = _xavier_normal(keys[6], NN, 1)
    p["bo"] = jnp.zeros((1, 1), jnp.float32)
    return p


def reference_forward(x, p):
    """Pure-JAX reference matching the PyTorch forward exactly."""
    U = jnp.tanh(x @ p["Wu"] + p["bu"])
    V = jnp.tanh(x @ p["Wv"] + p["bv"])
    H1 = jnp.tanh(x @ p["Wh"] + p["bh"])
    Z1 = jnp.tanh(H1 @ p["Wz1"] + p["bz1"])
    H2 = (1 - Z1) * U + Z1 * V
    Z2 = jnp.tanh(H2 @ p["Wz2"] + p["bz2"])
    H3 = (1 - Z2) * U + Z2 * V
    Z3 = jnp.tanh(H3 @ p["Wz3"] + p["bz3"])
    H3 = (1 - Z3) * U + Z3 * V
    return H3 @ p["Wo"] + p["bo"]


if __name__ == "__main__":
    key = jax.random.PRNGKey(0)
    k_param, k_x = jax.random.split(key)

    NN = 32            # hidden width
    B = 2048           # collocation points (kept small for the demo)
    block_b = 1024     # 2 "parallel" grid steps -> both TCs used on v7x;
                       # production default is block_b=2048 (sweep 1024-4096)

    params = init_params(k_param, NN)
    x = jax.random.uniform(k_x, (B, 2), dtype=jnp.float32,
                           minval=-1.0, maxval=1.0)

    out = pinn_forward(x, params, block_b=block_b)
    out = jax.block_until_ready(out)

    ref = reference_forward(x, params)
    assert out.shape == (B, 1)
    max_err = float(jnp.max(jnp.abs(out - ref)))
    assert jnp.allclose(out, ref, atol=1e-5, rtol=1e-5), \
        f"max abs err {max_err}"

    print("KERNEL_OK")
</pallas_src>

<mosaic_0001>
module attributes {stable_mosaic.version = 11 : i64} {
  func.func @_pinn_kernel(%arg0: i32, %arg1: memref<1024x2xf32, #tpu.memory_space<vmem>>, %arg2: memref<2x384xf32, #tpu.memory_space<vmem>>, %arg3: memref<1x384xf32, #tpu.memory_space<vmem>>, %arg4: memref<128x128xf32, #tpu.memory_space<vmem>>, %arg5: memref<1x128xf32, #tpu.memory_space<vmem>>, %arg6: memref<128x128xf32, #tpu.memory_space<vmem>>, %arg7: memref<1x128xf32, #tpu.memory_space<vmem>>, %arg8: memref<128x128xf32, #tpu.memory_space<vmem>>, %arg9: memref<1x128xf32, #tpu.memory_space<vmem>>, %arg10: memref<1x128xf32, #tpu.memory_space<vmem>>, %arg11: memref<1x1xf32, #tpu.memory_space<vmem>>, %arg12: memref<1x1024xf32, #tpu.memory_space<vmem>>) attributes {dimension_semantics = [#tpu.dimension_semantics<parallel>], iteration_bounds = array<i64: 2>, scalar_prefetch = 0 : i64, scratch_operands = 0 : i64, tpu.core_type = #tpu.core_type<tc>, window_params = [{transform_indices = @transform_0, window_bounds = array<i64: 1024, 2>}, {pipeline_mode = #tpu.pipeline_mode<synchronous>, transform_indices = @transform_1, window_bounds = array<i64: 2, 384>}, {pipeline_mode = #tpu.pipeline_mode<synchronous>, transform_indices = @transform_2, window_bounds = array<i64: 1, 384>}, {pipeline_mode = #tpu.pipeline_mode<synchronous>, transform_indices = @transform_3, window_bounds = array<i64: 128, 128>}, {pipeline_mode = #tpu.pipeline_mode<synchronous>, transform_indices = @transform_4, window_bounds = array<i64: 1, 128>}, {pipeline_mode = #tpu.pipeline_mode<synchronous>, transform_indices = @transform_5, window_bounds = array<i64: 128, 128>}, {pipeline_mode = #tpu.pipeline_mode<synchronous>, transform_indices = @transform_6, window_bounds = array<i64: 1, 128>}, {pipeline_mode = #tpu.pipeline_mode<synchronous>, transform_indices = @transform_7, window_bounds = array<i64: 128, 128>}, {pipeline_mode = #tpu.pipeline_mode<synchronous>, transform_indices = @transform_8, window_bounds = array<i64: 1, 128>}, {pipeline_mode = #tpu.pipeline_mode<synchronous>, transform_indices = @transform_9, window_bounds = array<i64: 1, 128>}, {pipeline_mode = #tpu.pipeline_mode<synchronous>, transform_indices = @transform_10, window_bounds = array<i64: 1, 1>}, {transform_indices = @transform_11, window_bounds = array<i64: 1, 1024>}]} {
    %c0 = arith.constant 0 : index
    %c0_0 = arith.constant 0 : index
    %0 = vector.load %arg1[%c0, %c0_0] : memref<1024x2xf32, #tpu.memory_space<vmem>>, vector<1024x2xf32>
    %c0_1 = arith.constant 0 : index
    %c0_2 = arith.constant 0 : index
    %1 = vector.load %arg2[%c0_1, %c0_2] : memref<2x384xf32, #tpu.memory_space<vmem>>, vector<2x384xf32>
    %c0_3 = arith.constant 0 : index
    %c0_4 = arith.constant 0 : index
    %2 = vector.load %arg3[%c0_3, %c0_4] : memref<1x384xf32, #tpu.memory_space<vmem>>, vector<1x384xf32>
    %3 = vector.extract_strided_slice %0 {offsets = [0, 0], sizes = [1024, 1], strides = [1, 1]} : vector<1024x2xf32> to vector<1024x1xf32>
    %4 = vector.extract_strided_slice %1 {offsets = [0, 0], sizes = [1, 384], strides = [1, 1]} : vector<2x384xf32> to vector<1x384xf32>
    %5 = vector.broadcast %3 : vector<1024x1xf32> to vector<1024x384xf32>
    %6 = vector.broadcast %4 : vector<1x384xf32> to vector<1024x384xf32>
    %7 = arith.mulf %5, %6 : vector<1024x384xf32>
    %8 = vector.extract_strided_slice %0 {offsets = [0, 1], sizes = [1024, 1], strides = [1, 1]} : vector<1024x2xf32> to vector<1024x1xf32>
    %9 = vector.extract_strided_slice %1 {offsets = [1, 0], sizes = [1, 384], strides = [1, 1]} : vector<2x384xf32> to vector<1x384xf32>
    %10 = vector.broadcast %8 : vector<1024x1xf32> to vector<1024x384xf32>
    %11 = vector.broadcast %9 : vector<1x384xf32> to vector<1024x384xf32>
    %12 = arith.mulf %10, %11 : vector<1024x384xf32>
    %13 = arith.addf %7, %12 : vector<1024x384xf32>
    %14 = vector.broadcast %2 : vector<1x384xf32> to vector<1024x384xf32>
    %15 = arith.addf %13, %14 : vector<1024x384xf32>
    %16 = math.tanh %15 : vector<1024x384xf32>
    %17 = vector.extract_strided_slice %16 {offsets = [0, 0], sizes = [1024, 128], strides = [1, 1]} : vector<1024x384xf32> to vector<1024x128xf32>
    %18 = vector.extract_strided_slice %16 {offsets = [0, 128], sizes = [1024, 128], strides = [1, 1]} : vector<1024x384xf32> to vector<1024x128xf32>
    %19 = vector.extract_strided_slice %16 {offsets = [0, 256], sizes = [1024, 128], strides = [1, 1]} : vector<1024x384xf32> to vector<1024x128xf32>
    %20 = arith.subf %18, %17 : vector<1024x128xf32>
    %c0_5 = arith.constant 0 : index
    %c0_6 = arith.constant 0 : index
    %21 = vector.load %arg4[%c0_5, %c0_6] : memref<128x128xf32, #tpu.memory_space<vmem>>, vector<128x128xf32>
    %cst = arith.constant dense<0.000000e+00> : vector<1024x128xf32>
    %22 = tpu.matmul %19, %21, %cst {dimension_numbers = #tpu.dot_dimension_numbers<[1], [0], [0], [1], [0, 0, 1, 1], [], []>} : vector<1024x128xf32>, vector<128x128xf32>, vector<1024x128xf32> -> vector<1024x128xf32>
    %c0_7 = arith.constant 0 : index
    %c0_8 = arith.constant 0 : index
    %23 = vector.load %arg5[%c0_7, %c0_8] : memref<1x128xf32, #tpu.memory_space<vmem>>, vector<1x128xf32>
    %24 = vector.broadcast %23 : vector<1x128xf32> to vector<1024x128xf32>
    %25 = arith.addf %22, %24 : vector<1024x128xf32>
    %26 = math.tanh %25 : vector<1024x128xf32>
    %27 = arith.mulf %26, %20 : vector<1024x128xf32>
    %28 = arith.addf %17, %27 : vector<1024x128xf32>
    %c0_9 = arith.constant 0 : index
    %c0_10 = arith.constant 0 : index
    %29 = vector.load %arg6[%c0_9, %c0_10] : memref<128x128xf32, #tpu.memory_space<vmem>>, vector<128x128xf32>
    %cst_11 = arith.constant dense<0.000000e+00> : vector<1024x128xf32>
    %30 = tpu.matmul %28, %29, %cst_11 {dimension_numbers = #tpu.dot_dimension_numbers<[1], [0], [0], [1], [0, 0, 1, 1], [], []>} : vector<1024x128xf32>, vector<128x128xf32>, vector<1024x128xf32> -> vector<1024x128xf32>
    %c0_12 = arith.constant 0 : index
    %c0_13 = arith.constant 0 : index
    %31 = vector.load %arg7[%c0_12, %c0_13] : memref<1x128xf32, #tpu.memory_space<vmem>>, vector<1x128xf32>
    %32 = vector.broadcast %31 : vector<1x128xf32> to vector<1024x128xf32>
    %33 = arith.addf %30, %32 : vector<1024x128xf32>
    %34 = math.tanh %33 : vector<1024x128xf32>
    %35 = arith.mulf %34, %20 : vector<1024x128xf32>
    %36 = arith.addf %17, %35 : vector<1024x128xf32>
    %c0_14 = arith.constant 0 : index
    %c0_15 = arith.constant 0 : index
    %37 = vector.load %arg8[%c0_14, %c0_15] : memref<128x128xf32, #tpu.memory_space<vmem>>, vector<128x128xf32>
    %cst_16 = arith.constant dense<0.000000e+00> : vector<1024x128xf32>
    %38 = tpu.matmul %36, %37, %cst_16 {dimension_numbers = #tpu.dot_dimension_numbers<[1], [0], [0], [1], [0, 0, 1, 1], [], []>} : vector<1024x128xf32>, vector<128x128xf32>, vector<1024x128xf32> -> vector<1024x128xf32>
    %c0_17 = arith.constant 0 : index
    %c0_18 = arith.constant 0 : index
    %39 = vector.load %arg9[%c0_17, %c0_18] : memref<1x128xf32, #tpu.memory_space<vmem>>, vector<1x128xf32>
    %40 = vector.broadcast %39 : vector<1x128xf32> to vector<1024x128xf32>
    %41 = arith.addf %38, %40 : vector<1024x128xf32>
    %42 = math.tanh %41 : vector<1024x128xf32>
    %43 = arith.mulf %42, %20 : vector<1024x128xf32>
    %44 = arith.addf %17, %43 : vector<1024x128xf32>
    %c0_19 = arith.constant 0 : index
    %c0_20 = arith.constant 0 : index
    %45 = vector.load %arg10[%c0_19, %c0_20] : memref<1x128xf32, #tpu.memory_space<vmem>>, vector<1x128xf32>
    %cst_21 = arith.constant dense<0.000000e+00> : vector<1x1024xf32>
    %46 = tpu.matmul %45, %44, %cst_21 {dimension_numbers = #tpu.dot_dimension_numbers<[1], [1], [0], [0], [0, 0, 1, 0], [], []>} : vector<1x128xf32>, vector<1024x128xf32>, vector<1x1024xf32> -> vector<1x1024xf32>
    %c0_22 = arith.constant 0 : index
    %c0_23 = arith.constant 0 : index
    %47 = vector.load %arg11[%c0_22, %c0_23] : memref<1x1xf32, #tpu.memory_space<vmem>>, vector<1x1xf32>
    %48 = vector.broadcast %47 : vector<1x1xf32> to vector<1x1024xf32>
    %49 = arith.addf %46, %48 : vector<1x1024xf32>
    %c0_24 = arith.constant 0 : index
    %c0_25 = arith.constant 0 : index
    %50 = vector.load %arg12[%c0_24, %c0_25] : memref<1x1024xf32, #tpu.memory_space<vmem>>, vector<1x1024xf32>
    tpu.vector_store %arg12[%c0_24, %c0_25], %49 {strides = array<i32>} : memref<1x1024xf32, #tpu.memory_space<vmem>>, vector<1x1024xf32>,
    return
  }
  func.func @transform_0(%arg0: i32) -> (i32, i32) {
    %c0_i32 = arith.constant 0 : i32
    %c0_i32_0 = arith.constant 0 : i32
    return %arg0, %c0_i32 : i32, i32
  }
  func.func @transform_1(%arg0: i32) -> (i32, i32) {
    %c0_i32 = arith.constant 0 : i32
    %c0_i32_0 = arith.constant 0 : i32
    %c0_i32_1 = arith.constant 0 : i32
    return %c0_i32, %c0_i32_0 : i32, i32
  }
  func.func @transform_2(%arg0: i32) -> (i32, i32) {
    %c0_i32 = arith.constant 0 : i32
    %c0_i32_0 = arith.constant 0 : i32
    %c0_i32_1 = arith.constant 0 : i32
    return %c0_i32, %c0_i32_0 : i32, i32
  }
  func.func @transform_3(%arg0: i32) -> (i32, i32) {
    %c0_i32 = arith.constant 0 : i32
    %c0_i32_0 = arith.constant 0 : i32
    %c0_i32_1 = arith.constant 0 : i32
    return %c0_i32, %c0_i32_0 : i32, i32
  }
  func.func @transform_4(%arg0: i32) -> (i32, i32) {
    %c0_i32 = arith.constant 0 : i32
    %c0_i32_0 = arith.constant 0 : i32
    %c0_i32_1 = arith.constant 0 : i32
    return %c0_i32, %c0_i32_0 : i32, i32
  }
  func.func @transform_5(%arg0: i32) -> (i32, i32) {
    %c0_i32 = arith.constant 0 : i32
    %c0_i32_0 = arith.constant 0 : i32
    %c0_i32_1 = arith.constant 0 : i32
    return %c0_i32, %c0_i32_0 : i32, i32
  }
  func.func @transform_6(%arg0: i32) -> (i32, i32) {
    %c0_i32 = arith.constant 0 : i32
    %c0_i32_0 = arith.constant 0 : i32
    %c0_i32_1 = arith.constant 0 : i32
    return %c0_i32, %c0_i32_0 : i32, i32
  }
  func.func @transform_7(%arg0: i32) -> (i32, i32) {
    %c0_i32 = arith.constant 0 : i32
    %c0_i32_0 = arith.constant 0 : i32
    %c0_i32_1 = arith.constant 0 : i32
    return %c0_i32, %c0_i32_0 : i32, i32
  }
  func.func @transform_8(%arg0: i32) -> (i32, i32) {
    %c0_i32 = arith.constant 0 : i32
    %c0_i32_0 = arith.constant 0 : i32
    %c0_i32_1 = arith.constant 0 : i32
    return %c0_i32, %c0_i32_0 : i32, i32
  }
  func.func @transform_9(%arg0: i32) -> (i32, i32) {
    %c0_i32 = arith.constant 0 : i32
    %c0_i32_0 = arith.constant 0 : i32
    %c0_i32_1 = arith.constant 0 : i32
    return %c0_i32, %c0_i32_0 : i32, i32
  }
  func.func @transform_10(%arg0: i32) -> (i32, i32) {
    %c0_i32 = arith.constant 0 : i32
    %c0_i32_0 = arith.constant 0 : i32
    %c0_i32_1 = arith.constant 0 : i32
    return %c0_i32, %c0_i32_0 : i32, i32
  }
  func.func @transform_11(%arg0: i32) -> (i32, i32) {
    %c0_i32 = arith.constant 0 : i32
    %c0_i32_0 = arith.constant 0 : i32
    return %c0_i32, %arg0 : i32, i32
  }
}

</mosaic_0001>

<llo_original>
// kernel: pinn_forward.1
$region0: #{pinn_forward.1}
  #allocation0 [shape = 'u32[]', space=smem, size = 0x4, offset = 0x4, fixed_abs, tag = 'smem constant byte address 0x4 - core index']
  #allocation1 [shape = 'u32[72,128]{1,0:T(1,128)}', space=vmem, size = 0x9000, scoped, tag = 'internal scratch']
  #allocation2 [shape = 'f32[1,1]{1,0:T(1,128)S(1)}', space=vmem, size = 0x200, scoped, tag = 'scoped memory for pinn_forward.1']
  %s0 = inlined_call_operand.vmem [shape: f32[2048,2], index: 0, kind: input, shape index: {}]
  %s1 = inlined_call_operand.vmem [shape: f32[2,384], index: 1, kind: input, shape index: {}]
  %s2 = inlined_call_operand.vmem [shape: f32[1,384], index: 2, kind: input, shape index: {}]
  %s3 = inlined_call_operand.vmem [shape: f32[128,128], index: 3, kind: input, shape index: {}]
  %s4 = inlined_call_operand.vmem [shape: f32[1,128], index: 4, kind: input, shape index: {}]
  %s5 = inlined_call_operand.vmem [shape: f32[128,128], index: 5, kind: input, shape index: {}]
  %s6 = inlined_call_operand.vmem [shape: f32[1,128], index: 6, kind: input, shape index: {}]
  %s7 = inlined_call_operand.vmem [shape: f32[128,128], index: 7, kind: input, shape index: {}]
  %s8 = inlined_call_operand.vmem [shape: f32[1,128], index: 8, kind: input, shape index: {}]
  %s9 = inlined_call_operand.vmem [shape: f32[1,128], index: 9, kind: input, shape index: {}]
  %s10 = inlined_call_operand.<no memory space> [shape: f32[1,1], index: 10, kind: input, shape index: {}]
  %s11 = inlined_call_operand.hbm [shape: f32[1,2048], index: 11, kind: output, shape index: {}]
  %s12 = sld [smem:[#allocation0]]
  $region77: #{pinn_forward.1} parent=0
    _
  %s14 = ssub.s32 1, %s12
  %s15 = scalar_select 0, %s14, %s12
  %v16 = vstv %s10
  %17 = vst [vmem:[#allocation2] sm:$0x1] %v16
  $region1: #{pinn_forward.1} parent=0
    #allocation3 [shape = 'u8[8192]{0}', space=vmem, size = 0x2000, scoped, tag = 'output window, operand 0']
    #allocation4 [shape = 's32[2]{0}', space=sflag, size = 0x8, scoped, tag = 'scoped memory for pinn_forward.1']
    %18 = vsyncpa [#allocation4], 0
    %s19 = scalar_lea.sflag [#allocation4], 1
    %20 = vsyncpa %s19, 0
    loop: start=0, step=1, limit=4
    $region2: #{pinn_forward.1} parent=1 // loop_pre_header
      _
    $region3: #{pinn_forward.1} parent=1 // loop_header
      %s22 = sphi 0, %s26
      %p23 = scmp.ge.s32.totalorder %s22, 4
      %s32 = sphi 0, %s34
      %s35 = sphi 0, %s32
      %s36 = sphi 0, %s35
      %s52 = sphi 0, %s36
      %s56 = sphi 0, %s56
      %s58 = sphi 0, %s56
      %s59 = sphi 0, %s58
      %s73 = sphi 0, %s59
      %s77 = sphi 0, %s77
      %s79 = sphi 0, %s77
      %s80 = sphi 0, %s79
      %s94 = sphi 0, %s80
      %s98 = sphi 0, %s98
      %s100 = sphi 0, %s98
      %s101 = sphi 0, %s100
      %s115 = sphi 0, %s101
      %s119 = sphi 0, %s119
      %s121 = sphi 0, %s119
      %s122 = sphi 0, %s121
      %s136 = sphi 0, %s122
      %s140 = sphi 0, %s140
      %s142 = sphi 0, %s140
      %s143 = sphi 0, %s142
      %s157 = sphi 0, %s143
      %s161 = sphi 0, %s161
      %s163 = sphi 0, %s161
      %s164 = sphi 0, %s163
      %s178 = sphi 0, %s164
      %s182 = sphi 0, %s182
      %s184 = sphi 0, %s182
      %s185 = sphi 0, %s184
      %s199 = sphi 0, %s185
      %s203 = sphi 0, %s203
      %s205 = sphi 0, %s203
      %s206 = sphi 0, %s205
      %s220 = sphi 0, %s206
      %s224 = sphi 0, %s224
      %s226 = sphi 0, %s224
      %s227 = sphi 0, %s226
      %s241 = sphi 0, %s227
      %s245 = sphi 0, %s245
      %s247 = sphi 0, %s245
      %s248 = sphi 0, %s247
      %s262 = sphi 0, %s248
      %s268 = sphi 0, %s270
      %s271 = sphi 0, %s268
      %s272 = sphi 0, %s271
      %s288 = sphi 0, %s272
    $region4: #{pinn_forward.1} parent=1 // loop_header_branch
      %25 = sbr.rel (%p23) target = $region8
    $region5: #{pinn_forward.1} parent=1 // loop_body
      %s27 = ssub.s32 %s22, 1
      %s28 = ssub.s32 %s22, 2
      %s29 = sadd.s32 %s22, 1
      %s30 = ssub.s32 %s22, %s29
      %p31 = scmp.eq.s32.totalorder %s30, 0
      %s33 = sadd.s32 %s32, 1
      %s34 = scalar_select %p31, %s32, %s33
      %p37 = pneg %p31
      %p38 = scmp.eq.s32.totalorder %s22, 1
      %p39 = por %p37, %p38
      %p40 = scmp.ne.s32.totalorder %s32, %s35
      %p41 = scmp.eq.s32.totalorder %s22, 0
      %p42 = por %p40, %p41
      %p43 = scmp.ne.s32.totalorder %s32, %s35
      %p44 = scmp.eq.s32.totalorder %s27, 1
      %p45 = por %p43, %p44
      %p46 = scmp.ne.s32.totalorder %s35, %s36
      %p47 = scmp.eq.s32.totalorder %s27, 0
      %p48 = por %p46, %p47
      %p49 = scmp.ne.s32.totalorder %s35, %s36
      %p50 = scmp.eq.s32.totalorder %s28, 1
      %p51 = por %p49, %p50
      %p53 = scmp.ne.s32.totalorder %s36, %s52
      %p54 = scmp.eq.s32.totalorder %s28, 0
      %p55 = por %p53, %p54
      %s57 = sadd.s32 %s56, 1
      %p60 = scmp.eq.s32.totalorder %s22, 1
      %p61 = scmp.ne.s32.totalorder %s56, %s58
      %p62 = scmp.eq.s32.totalorder %s22, 0
      %p63 = por %p61, %p62
      %p64 = scmp.ne.s32.totalorder %s56, %s58
      %p65 = scmp.eq.s32.totalorder %s27, 1
      %p66 = por %p64, %p65
      %p67 = scmp.ne.s32.totalorder %s58, %s59
      %p68 = scmp.eq.s32.totalorder %s27, 0
      %p69 = por %p67, %p68
      %p70 = scmp.ne.s32.totalorder %s58, %s59
      %p71 = scmp.eq.s32.totalorder %s28, 1
      %p72 = por %p70, %p71
      %p74 = scmp.ne.s32.totalorder %s59, %s73
      %p75 = scmp.eq.s32.totalorder %s28, 0
      %p76 = por %p74, %p75
      %s78 = sadd.s32 %s77, 1
      %p81 = scmp.eq.s32.totalorder %s22, 1
      %p82 = scmp.ne.s32.totalorder %s77, %s79
      %p83 = scmp.eq.s32.totalorder %s22, 0
      %p84 = por %p82, %p83
      %p85 = scmp.ne.s32.totalorder %s77, %s79
      %p86 = scmp.eq.s32.totalorder %s27, 1
      %p87 = por %p85, %p86
      %p88 = scmp.ne.s32.totalorder %s79, %s80
      %p89 = scmp.eq.s32.totalorder %s27, 0
      %p90 = por %p88, %p89
      %p91 = scmp.ne.s32.totalorder %s79, %s80
      %p92 = scmp.eq.s32.totalorder %s28, 1
      %p93 = por %p91, %p92
      %p95 = scmp.ne.s32.totalorder %s80, %s94
      %p96 = scmp.eq.s32.totalorder %s28, 0
      %p97 = por %p95, %p96
      %s99 = sadd.s32 %s98, 1
      %p102 = scmp.eq.s32.totalorder %s22, 1
      %p103 = scmp.ne.s32.totalorder %s98, %s100
      %p104 = scmp.eq.s32.totalorder %s22, 0
      %p105 = por %p103, %p104
      %p106 = scmp.ne.s32.totalorder %s98, %s100
      %p107 = scmp.eq.s32.totalorder %s27, 1
      %p108 = por %p106, %p107
      %p109 = scmp.ne.s32.totalorder %s100, %s101
      %p110 = scmp.eq.s32.totalorder %s27, 0
      %p111 = por %p109, %p110
      %p112 = scmp.ne.s32.totalorder %s100, %s101
      %p113 = scmp.eq.s32.totalorder %s28, 1
      %p114 = por %p112, %p113
      %p116 = scmp.ne.s32.totalorder %s101, %s115
      %p117 = scmp.eq.s32.totalorder %s28, 0
      %p118 = por %p116, %p117
      %s120 = sadd.s32 %s119, 1
      %p123 = scmp.eq.s32.totalorder %s22, 1
      %p124 = scmp.ne.s32.totalorder %s119, %s121
      %p125 = scmp.eq.s32.totalorder %s22, 0
      %p126 = por %p124, %p125
      %p127 = scmp.ne.s32.totalorder %s119, %s121
      %p128 = scmp.eq.s32.totalorder %s27, 1
      %p129 = por %p127, %p128
      %p130 = scmp.ne.s32.totalorder %s121, %s122
      %p131 = scmp.eq.s32.totalorder %s27, 0
      %p132 = por %p130, %p131
      %p133 = scmp.ne.s32.totalorder %s121, %s122
      %p134 = scmp.eq.s32.totalorder %s28, 1
      %p135 = por %p133, %p134
      %p137 = scmp.ne.s32.totalorder %s122, %s136
      %p138 = scmp.eq.s32.totalorder %s28, 0
      %p139 = por %p137, %p138
      %s141 = sadd.s32 %s140, 1
      %p144 = scmp.eq.s32.totalorder %s22, 1
      %p145 = scmp.ne.s32.totalorder %s140, %s142
      %p146 = scmp.eq.s32.totalorder %s22, 0
      %p147 = por %p145, %p146
      %p148 = scmp.ne.s32.totalorder %s140, %s142
      %p149 = scmp.eq.s32.totalorder %s27, 1
      %p150 = por %p148, %p149
      %p151 = scmp.ne.s32.totalorder %s142, %s143
      %p152 = scmp.eq.s32.totalorder %s27, 0
      %p153 = por %p151, %p152
      %p154 = scmp.ne.s32.totalorder %s142, %s143
      %p155 = scmp.eq.s32.totalorder %s28, 1
      %p156 = por %p154, %p155
      %p158 = scmp.ne.s32.totalorder %s143, %s157
      %p159 = scmp.eq.s32.totalorder %s28, 0
      %p160 = por %p158, %p159
      %s162 = sadd.s32 %s161, 1
      %p165 = scmp.eq.s32.totalorder %s22, 1
      %p166 = scmp.ne.s32.totalorder %s161, %s163
      %p167 = scmp.eq.s32.totalorder %s22, 0
      %p168 = por %p166, %p167
      %p169 = scmp.ne.s32.totalorder %s161, %s163
      %p170 = scmp.eq.s32.totalorder %s27, 1
      %p171 = por %p169, %p170
      %p172 = scmp.ne.s32.totalorder %s163, %s164
      %p173 = scmp.eq.s32.totalorder %s27, 0
      %p174 = por %p172, %p173
      %p175 = scmp.ne.s32.totalorder %s163, %s164
      %p176 = scmp.eq.s32.totalorder %s28, 1
      %p177 = por %p175, %p176
      %p179 = scmp.ne.s32.totalorder %s164, %s178
      %p180 = scmp.eq.s32.totalorder %s28, 0
      %p181 = por %p179, %p180
      %s183 = sadd.s32 %s182, 1
      %p186 = scmp.eq.s32.totalorder %s22, 1
      %p187 = scmp.ne.s32.totalorder %s182, %s184
      %p188 = scmp.eq.s32.totalorder %s22, 0
      %p189 = por %p187, %p188
      %p190 = scmp.ne.s32.totalorder %s182, %s184
      %p191 = scmp.eq.s32.totalorder %s27, 1
      %p192 = por %p190, %p191
      %p193 = scmp.ne.s32.totalorder %s184, %s185
      %p194 = scmp.eq.s32.totalorder %s27, 0
      %p195 = por %p193, %p194
      %p196 = scmp.ne.s32.totalorder %s184, %s185
      %p197 = scmp.eq.s32.totalorder %s28, 1
      %p198 = por %p196, %p197
      %p200 = scmp.ne.s32.totalorder %s185, %s199
      %p201 = scmp.eq.s32.totalorder %s28, 0
      %p202 = por %p200, %p201
      %s204 = sadd.s32 %s203, 1
      %p207 = scmp.eq.s32.totalorder %s22, 1
      %p208 = scmp.ne.s32.totalorder %s203, %s205
      %p209 = scmp.eq.s32.totalorder %s22, 0
      %p210 = por %p208, %p209
      %p211 = scmp.ne.s32.totalorder %s203, %s205
      %p212 = scmp.eq.s32.totalorder %s27, 1
      %p213 = por %p211, %p212
      %p214 = scmp.ne.s32.totalorder %s205, %s206
      %p215 = scmp.eq.s32.totalorder %s27, 0
      %p216 = por %p214, %p215
      %p217 = scmp.ne.s32.totalorder %s205, %s206
      %p218 = scmp.eq.s32.totalorder %s28, 1
      %p219 = por %p217, %p218
      %p221 = scmp.ne.s32.totalorder %s206, %s220
      %p222 = scmp.eq.s32.totalorder %s28, 0
      %p223 = por %p221, %p222
      %s225 = sadd.s32 %s224, 1
      %p228 = scmp.eq.s32.totalorder %s22, 1
      %p229 = scmp.ne.s32.totalorder %s224, %s226
      %p230 = scmp.eq.s32.totalorder %s22, 0
      %p231 = por %p229, %p230
      %p232 = scmp.ne.s32.totalorder %s224, %s226
      %p233 = scmp.eq.s32.totalorder %s27, 1
      %p234 = por %p232, %p233
      %p235 = scmp.ne.s32.totalorder %s226, %s227
      %p236 = scmp.eq.s32.totalorder %s27, 0
      %p237 = por %p235, %p236
      %p238 = scmp.ne.s32.totalorder %s226, %s227
      %p239 = scmp.eq.s32.totalorder %s28, 1
      %p240 = por %p238, %p239
      %p242 = scmp.ne.s32.totalorder %s227, %s241
      %p243 = scmp.eq.s32.totalorder %s28, 0
      %p244 = por %p242, %p243
      %s246 = sadd.s32 %s245, 1
      %p249 = scmp.eq.s32.totalorder %s22, 1
      %p250 = scmp.ne.s32.totalorder %s245, %s247
      %p251 = scmp.eq.s32.totalorder %s22, 0
      %p252 = por %p250, %p251
      %p253 = scmp.ne.s32.totalorder %s245, %s247
      %p254 = scmp.eq.s32.totalorder %s27, 1
      %p255 = por %p253, %p254
      %p256 = scmp.ne.s32.totalorder %s247, %s248
      %p257 = scmp.eq.s32.totalorder %s27, 0
      %p258 = por %p256, %p257
      %p259 = scmp.ne.s32.totalorder %s247, %s248
      %p260 = scmp.eq.s32.totalorder %s28, 1
      %p261 = por %p259, %p260
      %p263 = scmp.ne.s32.totalorder %s248, %s262
      %p264 = scmp.eq.s32.totalorder %s28, 0
      %p265 = por %p263, %p264
      %s266 = ssub.s32 %s22, %s29
      %p267 = scmp.eq.s32.totalorder %s266, 0
      %s269 = sadd.s32 %s268, 1
      %s270 = scalar_select %p267, %s268, %s269
      %p273 = pneg %p267
      %p274 = scmp.eq.s32.totalorder %s22, 1
      %p275 = por %p273, %p274
      %p276 = scmp.ne.s32.totalorder %s268, %s271
      %p277 = scmp.eq.s32.totalorder %s22, 0
      %p278 = por %p276, %p277
      %p279 = scmp.ne.s32.totalorder %s268, %s271
      %p280 = scmp.eq.s32.totalorder %s27, 1
      %p281 = por %p279, %p280
      %p282 = scmp.ne.s32.totalorder %s271, %s272
      %p283 = scmp.eq.s32.totalorder %s27, 0
      %p284 = por %p282, %p283
      %p285 = scmp.ne.s32.totalorder %s271, %s272
      %p286 = scmp.eq.s32.totalorder %s28, 1
      %p287 = por %p285, %p286
      %p289 = scmp.ne.s32.totalorder %s272, %s288
      %p290 = scmp.eq.s32.totalorder %s28, 0
      %p291 = por %p289, %p290
      %p292 = scmp.le.s32.totalorder 1, %s22
      %p293 = scmp.lt.s32.totalorder %s22, 3
      %p294 = pnand %p292, %p293
      %p295 = pneg %p294
      // Predicated region
      $region9: #{pinn_forward.1} parent=5 // pred_check
        _
      $region10: #{pinn_forward.1} parent=5 // pred_check_branch
        %297 = sbr.rel (%p294) target = $region12
      $region11: #{pinn_forward.1} parent=5 // pred_region
        %s298 = ssub.s32 %s22, 1
        // Predicated region
        $region13: #{pinn_forward.1} parent=11 // pred_check
          %p299 = pneg %p69
        $region14: #{pinn_forward.1} parent=11 // pred_check_branch
          %301 = sbr.rel (%p299) target = $region16
        $region15: #{pinn_forward.1} parent=11 // pred_region
          _
        $region16: #{pinn_forward.1} parent=11 // pred_fallthru
          _
        // Predicated region
        $region17: #{pinn_forward.1} parent=11 // pred_check
          %p302 = pneg %p90
        $region18: #{pinn_forward.1} parent=11 // pred_check_branch
          %304 = sbr.rel (%p302) target = $region20
        $region19: #{pinn_forward.1} parent=11 // pred_region
          _
        $region20: #{pinn_forward.1} parent=11 // pred_fallthru
          _
        // Predicated region
        $region21: #{pinn_forward.1} parent=11 // pred_check
          %p305 = pneg %p111
        $region22: #{pinn_forward.1} parent=11 // pred_check_branch
          %307 = sbr.rel (%p305) target = $region24
        $region23: #{pinn_forward.1} parent=11 // pred_region
          _
        $region24: #{pinn_forward.1} parent=11 // pred_fallthru
          _
        // Predicated region
        $region25: #{pinn_forward.1} parent=11 // pred_check
          %p308 = pneg %p132
        $region26: #{pinn_forward.1} parent=11 // pred_check_branch
          %310 = sbr.rel (%p308) target = $region28
        $region27: #{pinn_forward.1} parent=11 // pred_region
          _
        $region28: #{pinn_forward.1} parent=11 // pred_fallthru
          _
        // Predicated region
        $region29: #{pinn_forward.1} parent=11 // pred_check
          %p311 = pneg %p153
        $region30: #{pinn_forward.1} parent=11 // pred_check_branch
          %313 = sbr.rel (%p311) target = $region32
        $region31: #{pinn_forward.1} parent=11 // pred_region
          _
        $region32: #{pinn_forward.1} parent=11 // pred_fallthru
          _
        // Predicated region
        $region33: #{pinn_forward.1} parent=11 // pred_check
          %p314 = pneg %p174
        $region34: #{pinn_forward.1} parent=11 // pred_check_branch
          %316 = sbr.rel (%p314) target = $region36
        $region35: #{pinn_forward.1} parent=11 // pred_region
          _
        $region36: #{pinn_forward.1} parent=11 // pred_fallthru
          _
        // Predicated region
        $region37: #{pinn_forward.1} parent=11 // pred_check
          %p317 = pneg %p195
        $region38: #{pinn_forward.1} parent=11 // pred_check_branch
          %319 = sbr.rel (%p317) target = $region40
        $region39: #{pinn_forward.1} parent=11 // pred_region
          _
        $region40: #{pinn_forward.1} parent=11 // pred_fallthru
          _
        // Predicated region
        $region41: #{pinn_forward.1} parent=11 // pred_check
          %p320 = pneg %p216
        $region42: #{pinn_forward.1} parent=11 // pred_check_branch
          %322 = sbr.rel (%p320) target = $region44
        $region43: #{pinn_forward.1} parent=11 // pred_region
          _
        $region44: #{pinn_forward.1} parent=11 // pred_fallthru
          _
        // Predicated region
        $region45: #{pinn_forward.1} parent=11 // pred_check
          %p323 = pneg %p237
        $region46: #{pinn_forward.1} parent=11 // pred_check_branch
          %325 = sbr.rel (%p323) target = $region48
        $region47: #{pinn_forward.1} parent=11 // pred_region
          _
        $region48: #{pinn_forward.1} parent=11 // pred_fallthru
          _
        // Predicated region
        $region49: #{pinn_forward.1} parent=11 // pred_check
          %p326 = pneg %p258
        $region50: #{pinn_forward.1} parent=11 // pred_check_branch
          %328 = sbr.rel (%p326) target = $region52
        $region51: #{pinn_forward.1} parent=11 // pred_region
          _
        $region52: #{pinn_forward.1} parent=11 // pred_fallthru
          _
      $region12: #{pinn_forward.1} parent=5 // pred_fallthru
        _
      %p329 = scmp.lt.s32.totalorder %s22, 2
      // Predicated region
      $region53: #{pinn_forward.1} parent=5 // pred_check
        %p330 = pneg %p329
      $region54: #{pinn_forward.1} parent=5 // pred_check_branch
        %332 = sbr.rel (%p330) target = $region56
      $region55: #{pinn_forward.1} parent=5 // pred_region
        // Predicated region
        $region57: #{pinn_forward.1} parent=55 // pred_check
          %p333 = pneg %p42
        $region58: #{pinn_forward.1} parent=55 // pred_check_branch
          %335 = sbr.rel (%p333) target = $region60
        $region59: #{pinn_forward.1} parent=55 // pred_region
          %s336 = smul.u32 128, %s22
          %p337 = scmp.lt.s32.totalorder %s336, 255
          %s338 = scalar_select %p337, %s336, 255
          %s339 = smul.addr %s338, 8
          %s340 = scalar_lea.vmem %s0, %s339
          %s341 = smul.u32 128, %s22
        $region60: #{pinn_forward.1} parent=55 // pred_fallthru
          _
      $region56: #{pinn_forward.1} parent=5 // pred_fallthru
        _
      %p342 = scmp.le.s32.totalorder 1, %s22
      %p343 = scmp.lt.s32.totalorder %s22, 3
      %p344 = pnand %p342, %p343
      %p345 = pneg %p344
      // Predicated region
      $region61: #{pinn_forward.1} parent=5 // pred_check
        _
      $region62: #{pinn_forward.1} parent=5 // pred_check_branch
        %347 = sbr.rel (%p344) target = $region64
      $region63: #{pinn_forward.1} parent=5 // pred_region
        %s348 = ssub.s32 %s22, 1
        %s349 = smul.u32 128, %s27
        %p350 = scmp.lt.s32.totalorder %s349, 255
        %s351 = scalar_select %p350, %s349, 255
        %s352 = smul.addr %s351, 8
        %s353 = scalar_lea.vmem %s0, %s352
        %p354 = pneg %p48
        %p355 = pneg %p45
        %p356 = pneg %p69
        %p357 = pneg %p66
        %p358 = pneg %p90
        %p359 = pneg %p87
        %p360 = pneg %p111
        %p361 = pneg %p108
        %p362 = pneg %p132
        %p363 = pneg %p129
        %p364 = pneg %p153
        %p365 = pneg %p150
        %p366 = pneg %p174
        %p367 = pneg %p171
        %p368 = pneg %p195
        %p369 = pneg %p192
        %p370 = pneg %p216
        %p371 = pneg %p213
        %p372 = pneg %p237
        %p373 = pneg %p234
        %p374 = pneg %p258
        %p375 = pneg %p255
        %p376 = pneg %p284
        %p377 = pneg %p281
        %s378 = sand.u32 %s271, 1
        %s379 = scalar_lea.sflag [#allocation4], %s378
        %s380 = sand.u32 %s271, 1
        %s381 = smul.addr %s380, 8
        %s382 = scalar_lea.vmem [#allocation3], %s381
        %s383 = smul.u32 128, %s27
        %p384 = scmp.lt.s32.totalorder %s383, 255
        %s385 = scalar_select %p384, %s383, 255
        %s386 = smul.addr %s385, 8
        %s387 = scalar_lea.vmem %s0, %s386
        %s388 = smul.u32 128, %s27
        %s389 = smul.u32 8, %s27
        %v390 = vld [vmem:[%s387] sm:$0xff]
        %v391 = vld [vmem:[%s387 + $0x8] sm:$0xff]
        %v392 = vld [vmem:[%s387 + $0x10] sm:$0xff]
        %v393 = vld [vmem:[%s387 + $0x18] sm:$0xff]
        %v394 = vld [vmem:[%s387 + $0x20] sm:$0xff]
        %v395 = vld [vmem:[%s387 + $0x28] sm:$0xff]
        %v396 = vld [vmem:[%s387 + $0x30] sm:$0xff]
        %v397 = vld [vmem:[%s387 + $0x38] sm:$0xff]
        %v398 = vld [vmem:[%s387 + $0x40] sm:$0xff]
        %v399 = vld [vmem:[%s387 + $0x48] sm:$0xff]
        %v400 = vld [vmem:[%s387 + $0x50] sm:$0xff]
        %v401 = vld [vmem:[%s387 + $0x58] sm:$0xff]
        %v402 = vld [vmem:[%s387 + $0x60] sm:$0xff]
        %v403 = vld [vmem:[%s387 + $0x68] sm:$0xff]
        %v404 = vld [vmem:[%s387 + $0x70] sm:$0xff]
        %v405 = vld [vmem:[%s387 + $0x78] sm:$0xff]
        %v406 = vld [vmem:[%s387 + $0x80] sm:$0xff]
        %v407 = vld [vmem:[%s387 + $0x88] sm:$0xff]
        %v408 = vld [vmem:[%s387 + $0x90] sm:$0xff]
        %v409 = vld [vmem:[%s387 + $0x98] sm:$0xff]
        %v410 = vld [vmem:[%s387 + $0xa0] sm:$0xff]
        %v411 = vld [vmem:[%s387 + $0xa8] sm:$0xff]
        %v412 = vld [vmem:[%s387 + $0xb0] sm:$0xff]
        %v413 = vld [vmem:[%s387 + $0xb8] sm:$0xff]
        %v414 = vld [vmem:[%s387 + $0xc0] sm:$0xff]
        %v415 = vld [vmem:[%s387 + $0xc8] sm:$0xff]
        %v416 = vld [vmem:[%s387 + $0xd0] sm:$0xff]
        %v417 = vld [vmem:[%s387 + $0xd8] sm:$0xff]
        %v418 = vld [vmem:[%s387 + $0xe0] sm:$0xff]
        %v419 = vld [vmem:[%s387 + $0xe8] sm:$0xff]
        %v420 = vld [vmem:[%s387 + $0xf0] sm:$0xff]
        %v421 = vld [vmem:[%s387 + $0xf8] sm:$0xff]
        %v422 = vld [vmem:[%s387 + $0x100] sm:$0xff]
        %v423 = vld [vmem:[%s387 + $0x108] sm:$0xff]
        %v424 = vld [vmem:[%s387 + $0x110] sm:$0xff]
        %v425 = vld [vmem:[%s387 + $0x118] sm:$0xff]
        %v426 = vld [vmem:[%s387 + $0x120] sm:$0xff]
        %v427 = vld [vmem:[%s387 + $0x128] sm:$0xff]
        %v428 = vld [vmem:[%s387 + $0x130] sm:$0xff]
        %v429 = vld [vmem:[%s387 + $0x138] sm:$0xff]
        %v430 = vld [vmem:[%s387 + $0x140] sm:$0xff]
        %v431 = vld [vmem:[%s387 + $0x148] sm:$0xff]
        %v432 = vld [vmem:[%s387 + $0x150] sm:$0xff]
        %v433 = vld [vmem:[%s387 + $0x158] sm:$0xff]
        %v434 = vld [vmem:[%s387 + $0x160] sm:$0xff]
        %v435 = vld [vmem:[%s387 + $0x168] sm:$0xff]
        %v436 = vld [vmem:[%s387 + $0x170] sm:$0xff]
        %v437 = vld [vmem:[%s387 + $0x178] sm:$0xff]
        %v438 = vld [vmem:[%s387 + $0x180] sm:$0xff]
        %v439 = vld [vmem:[%s387 + $0x188] sm:$0xff]
        %v440 = vld [vmem:[%s387 + $0x190] sm:$0xff]
        %v441 = vld [vmem:[%s387 + $0x198] sm:$0xff]
        %v442 = vld [vmem:[%s387 + $0x1a0] sm:$0xff]
        %v443 = vld [vmem:[%s387 + $0x1a8] sm:$0xff]
        %v444 = vld [vmem:[%s387 + $0x1b0] sm:$0xff]
        %v445 = vld [vmem:[%s387 + $0x1b8] sm:$0xff]
        %v446 = vld [vmem:[%s387 + $0x1c0] sm:$0xff]
        %v447 = vld [vmem:[%s387 + $0x1c8] sm:$0xff]
        %v448 = vld [vmem:[%s387 + $0x1d0] sm:$0xff]
        %v449 = vld [vmem:[%s387 + $0x1d8] sm:$0xff]
        %v450 = vld [vmem:[%s387 + $0x1e0] sm:$0xff]
        %v451 = vld [vmem:[%s387 + $0x1e8] sm:$0xff]
        %v452 = vld [vmem:[%s387 + $0x1f0] sm:$0xff]
        %v453 = vld [vmem:[%s387 + $0x1f8] sm:$0xff]
        %v454 = vld [vmem:[%s387 + $0x200] sm:$0xff]
        %v455 = vld [vmem:[%s387 + $0x208] sm:$0xff]
        %v456 = vld [vmem:[%s387 + $0x210] sm:$0xff]
        %v457 = vld [vmem:[%s387 + $0x218] sm:$0xff]
        %v458 = vld [vmem:[%s387 + $0x220] sm:$0xff]
        %v459 = vld [vmem:[%s387 + $0x228] sm:$0xff]
        %v460 = vld [vmem:[%s387 + $0x230] sm:$0xff]
        %v461 = vld [vmem:[%s387 + $0x238] sm:$0xff]
        %v462 = vld [vmem:[%s387 + $0x240] sm:$0xff]
        %v463 = vld [vmem:[%s387 + $0x248] sm:$0xff]
        %v464 = vld [vmem:[%s387 + $0x250] sm:$0xff]
        %v465 = vld [vmem:[%s387 + $0x258] sm:$0xff]
        %v466 = vld [vmem:[%s387 + $0x260] sm:$0xff]
        %v467 = vld [vmem:[%s387 + $0x268] sm:$0xff]
        %v468 = vld [vmem:[%s387 + $0x270] sm:$0xff]
        %v469 = vld [vmem:[%s387 + $0x278] sm:$0xff]
        %v470 = vld [vmem:[%s387 + $0x280] sm:$0xff]
        %v471 = vld [vmem:[%s387 + $0x288] sm:$0xff]
        %v472 = vld [vmem:[%s387 + $0x290] sm:$0xff]
        %v473 = vld [vmem:[%s387 + $0x298] sm:$0xff]
        %v474 = vld [vmem:[%s387 + $0x2a0] sm:$0xff]
        %v475 = vld [vmem:[%s387 + $0x2a8] sm:$0xff]
        %v476 = vld [vmem:[%s387 + $0x2b0] sm:$0xff]
        %v477 = vld [vmem:[%s387 + $0x2b8] sm:$0xff]
        %v478 = vld [vmem:[%s387 + $0x2c0] sm:$0xff]
        %v479 = vld [vmem:[%s387 + $0x2c8] sm:$0xff]
        %v480 = vld [vmem:[%s387 + $0x2d0] sm:$0xff]
        %v481 = vld [vmem:[%s387 + $0x2d8] sm:$0xff]
        %v482 = vld [vmem:[%s387 + $0x2e0] sm:$0xff]
        %v483 = vld [vmem:[%s387 + $0x2e8] sm:$0xff]
        %v484 = vld [vmem:[%s387 + $0x2f0] sm:$0xff]
        %v485 = vld [vmem:[%s387 + $0x2f8] sm:$0xff]
        %v486 = vld [vmem:[%s387 + $0x300] sm:$0xff]
        %v487 = vld [vmem:[%s387 + $0x308] sm:$0xff]
        %v488 = vld [vmem:[%s387 + $0x310] sm:$0xff]
        %v489 = vld [vmem:[%s387 + $0x318] sm:$0xff]
        %v490 = vld [vmem:[%s387 + $0x320] sm:$0xff]
        %v491 = vld [vmem:[%s387 + $0x328] sm:$0xff]
        %v492 = vld [vmem:[%s387 + $0x330] sm:$0xff]
        %v493 = vld [vmem:[%s387 + $0x338] sm:$0xff]
        %v494 = vld [vmem:[%s387 + $0x340] sm:$0xff]
        %v495 = vld [vmem:[%s387 + $0x348] sm:$0xff]
        %v496 = vld [vmem:[%s387 + $0x350] sm:$0xff]
        %v497 = vld [vmem:[%s387 + $0x358] sm:$0xff]
        %v498 = vld [vmem:[%s387 + $0x360] sm:$0xff]
        %v499 = vld [vmem:[%s387 + $0x368] sm:$0xff]
        %v500 = vld [vmem:[%s387 + $0x370] sm:$0xff]
        %v501 = vld [vmem:[%s387 + $0x378] sm:$0xff]
        %v502 = vld [vmem:[%s387 + $0x380] sm:$0xff]
        %v503 = vld [vmem:[%s387 + $0x388] sm:$0xff]
        %v504 = vld [vmem:[%s387 + $0x390] sm:$0xff]
        %v505 = vld [vmem:[%s387 + $0x398] sm:$0xff]
        %v506 = vld [vmem:[%s387 + $0x3a0] sm:$0xff]
        %v507 = vld [vmem:[%s387 + $0x3a8] sm:$0xff]
        %v508 = vld [vmem:[%s387 + $0x3b0] sm:$0xff]
        %v509 = vld [vmem:[%s387 + $0x3b8] sm:$0xff]
        %v510 = vld [vmem:[%s387 + $0x3c0] sm:$0xff]
        %v511 = vld [vmem:[%s387 + $0x3c8] sm:$0xff]
        %v512 = vld [vmem:[%s387 + $0x3d0] sm:$0xff]
        %v513 = vld [vmem:[%s387 + $0x3d8] sm:$0xff]
        %v514 = vld [vmem:[%s387 + $0x3e0] sm:$0xff]
        %v515 = vld [vmem:[%s387 + $0x3e8] sm:$0xff]
        %v516 = vld [vmem:[%s387 + $0x3f0] sm:$0xff]
        %v517 = vld [vmem:[%s387 + $0x3f8] sm:$0xff]
        %v518 = vld [vmem:[%s1] sm:$0x3f]
        %v519 = vld [vmem:[%s2] sm:$0x7]
        %521 = vset.pattern.permute.xlu0 0
        %522 = vperm.xlu0 %521, %v390
        %v523 = vpop.permute.xlu0 %522
        %526 = vset.pattern.permute.xlu0 0
        %527 = vperm.xlu0 %526, %v391
        %v528 = vpop.permute.xlu0 %527
        %531 = vset.pattern.permute.xlu0 0
        %532 = vperm.xlu0 %531, %v392
        %v533 = vpop.permute.xlu0 %532
        %536 = vset.pattern.permute.xlu0 0
        %537 = vperm.xlu0 %536, %v393
        %v538 = vpop.permute.xlu0 %537
        %541 = vset.pattern.permute.xlu0 0
        %542 = vperm.xlu0 %541, %v394
        %v543 = vpop.permute.xlu0 %542
        %546 = vset.pattern.permute.xlu0 0
        %547 = vperm.xlu0 %546, %v395
        %v548 = vpop.permute.xlu0 %547
        %551 = vset.pattern.permute.xlu0 0
        %552 = vperm.xlu0 %551, %v396
        %v553 = vpop.permute.xlu0 %552
        %556 = vset.pattern.permute.xlu0 0
        %557 = vperm.xlu0 %556, %v397
        %v558 = vpop.permute.xlu0 %557
        %561 = vset.pattern.permute.xlu0 0
        %562 = vperm.xlu0 %561, %v398
        %v563 = vpop.permute.xlu0 %562
        %566 = vset.pattern.permute.xlu0 0
        %567 = vperm.xlu0 %566, %v399
        %v568 = vpop.permute.xlu0 %567
        %571 = vset.pattern.permute.xlu0 0
        %572 = vperm.xlu0 %571, %v400
        %v573 = vpop.permute.xlu0 %572
        %576 = vset.pattern.permute.xlu0 0
        %577 = vperm.xlu0 %576, %v401
        %v578 = vpop.permute.xlu0 %577
        %581 = vset.pattern.permute.xlu0 0
        %582 = vperm.xlu0 %581, %v402
        %v583 = vpop.permute.xlu0 %582
        %586 = vset.pattern.permute.xlu0 0
        %587 = vperm.xlu0 %586, %v403
        %v588 = vpop.permute.xlu0 %587
        %591 = vset.pattern.permute.xlu0 0
        %592 = vperm.xlu0 %591, %v404
        %v593 = vpop.permute.xlu0 %592
        %596 = vset.pattern.permute.xlu0 0
        %597 = vperm.xlu0 %596, %v405
        %v598 = vpop.permute.xlu0 %597
        %601 = vset.pattern.permute.xlu0 0
        %602 = vperm.xlu0 %601, %v406
        %v603 = vpop.permute.xlu0 %602
        %606 = vset.pattern.permute.xlu0 0
        %607 = vperm.xlu0 %606, %v407
        %v608 = vpop.permute.xlu0 %607
        %611 = vset.pattern.permute.xlu0 0
        %612 = vperm.xlu0 %611, %v408
        %v613 = vpop.permute.xlu0 %612
        %616 = vset.pattern.permute.xlu0 0
        %617 = vperm.xlu0 %616, %v409
        %v618 = vpop.permute.xlu0 %617
        %621 = vset.pattern.permute.xlu0 0
        %622 = vperm.xlu0 %621, %v410
        %v623 = vpop.permute.xlu0 %622
        %626 = vset.pattern.permute.xlu0 0
        %627 = vperm.xlu0 %626, %v411
        %v628 = vpop.permute.xlu0 %627
        %631 = vset.pattern.permute.xlu0 0
        %632 = vperm.xlu0 %631, %v412
        %v633 = vpop.permute.xlu0 %632
        %636 = vset.pattern.permute.xlu0 0
        %637 = vperm.xlu0 %636, %v413
        %v638 = vpop.permute.xlu0 %637
        %641 = vset.pattern.permute.xlu0 0
        %642 = vperm.xlu0 %641, %v414
        %v643 = vpop.permute.xlu0 %642
        %646 = vset.pattern.permute.xlu0 0
        %647 = vperm.xlu0 %646, %v415
        %v648 = vpop.permute.xlu0 %647
        %651 = vset.pattern.permute.xlu0 0
        %652 = vperm.xlu0 %651, %v416
        %v653 = vpop.permute.xlu0 %652
        %656 = vset.pattern.permute.xlu0 0
        %657 = vperm.xlu0 %656, %v417
        %v658 = vpop.permute.xlu0 %657
        %661 = vset.pattern.permute.xlu0 0
        %662 = vperm.xlu0 %661, %v418
        %v663 = vpop.permute.xlu0 %662
        %666 = vset.pattern.permute.xlu0 0
        %667 = vperm.xlu0 %666, %v419
        %v668 = vpop.permute.xlu0 %667
        %671 = vset.pattern.permute.xlu0 0
        %672 = vperm.xlu0 %671, %v420
        %v673 = vpop.permute.xlu0 %672
        %676 = vset.pattern.permute.xlu0 0
        %677 = vperm.xlu0 %676, %v421
        %v678 = vpop.permute.xlu0 %677
        %681 = vset.pattern.permute.xlu0 0
        %682 = vperm.xlu0 %681, %v422
        %v683 = vpop.permute.xlu0 %682
        %686 = vset.pattern.permute.xlu0 0
        %687 = vperm.xlu0 %686, %v423
        %v688 = vpop.permute.xlu0 %687
        %691 = vset.pattern.permute.xlu0 0
        %692 = vperm.xlu0 %691, %v424
        %v693 = vpop.permute.xlu0 %692
        %696 = vset.pattern.permute.xlu0 0
        %697 = vperm.xlu0 %696, %v425
        %v698 = vpop.permute.xlu0 %697
        %701 = vset.pattern.permute.xlu0 0
        %702 = vperm.xlu0 %701, %v426
        %v703 = vpop.permute.xlu0 %702
        %706 = vset.pattern.permute.xlu0 0
        %707 = vperm.xlu0 %706, %v427
        %v708 = vpop.permute.xlu0 %707
        %711 = vset.pattern.permute.xlu0 0
        %712 = vperm.xlu0 %711, %v428
        %v713 = vpop.permute.xlu0 %712
        %716 = vset.pattern.permute.xlu0 0
        %717 = vperm.xlu0 %716, %v429
        %v718 = vpop.permute.xlu0 %717
        %721 = vset.pattern.permute.xlu0 0
        %722 = vperm.xlu0 %721, %v430
        %v723 = vpop.permute.xlu0 %722
        %726 = vset.pattern.permute.xlu0 0
        %727 = vperm.xlu0 %726, %v431
        %v728 = vpop.permute.xlu0 %727
        %731 = vset.pattern.permute.xlu0 0
        %732 = vperm.xlu0 %731, %v432
        %v733 = vpop.permute.xlu0 %732
        %736 = vset.pattern.permute.xlu0 0
        %737 = vperm.xlu0 %736, %v433
        %v738 = vpop.permute.xlu0 %737
        %741 = vset.pattern.permute.xlu0 0
        %742 = vperm.xlu0 %741, %v434
        %v743 = vpop.permute.xlu0 %742
        %746 = vset.pattern.permute.xlu0 0
        %747 = vperm.xlu0 %746, %v435
        %v748 = vpop.permute.xlu0 %747
        %751 = vset.pattern.permute.xlu0 0
        %752 = vperm.xlu0 %751, %v436
        %v753 = vpop.permute.xlu0 %752
        %756 = vset.pattern.permute.xlu0 0
        %757 = vperm.xlu0 %756, %v437
        %v758 = vpop.permute.xlu0 %757
        %761 = vset.pattern.permute.xlu0 0
        %762 = vperm.xlu0 %761, %v438
        %v763 = vpop.permute.xlu0 %762
        %766 = vset.pattern.permute.xlu0 0
        %767 = vperm.xlu0 %766, %v439
        %v768 = vpop.permute.xlu0 %767
        %771 = vset.pattern.permute.xlu0 0
        %772 = vperm.xlu0 %771, %v440
        %v773 = vpop.permute.xlu0 %772
        %776 = vset.pattern.permute.xlu0 0
        %777 = vperm.xlu0 %776, %v441
        %v778 = vpop.permute.xlu0 %777
        %781 = vset.pattern.permute.xlu0 0
        %782 = vperm.xlu0 %781, %v442
        %v783 = vpop.permute.xlu0 %782
        %786 = vset.pattern.permute.xlu0 0
        %787 = vperm.xlu0 %786, %v443
        %v788 = vpop.permute.xlu0 %787
        %791 = vset.pattern.permute.xlu0 0
        %792 = vperm.xlu0 %791, %v444
        %v793 = vpop.permute.xlu0 %792
        %796 = vset.pattern.permute.xlu0 0
        %797 = vperm.xlu0 %796, %v445
        %v798 = vpop.permute.xlu0 %797
        %801 = vset.pattern.permute.xlu0 0
        %802 = vperm.xlu0 %801, %v446
        %v803 = vpop.permute.xlu0 %802
        %806 = vset.pattern.permute.xlu0 0
        %807 = vperm.xlu0 %806, %v447
        %v808 = vpop.permute.xlu0 %807
        %811 = vset.pattern.permute.xlu0 0
        %812 = vperm.xlu0 %811, %v448
        %v813 = vpop.permute.xlu0 %812
        %816 = vset.pattern.permute.xlu0 0
        %817 = vperm.xlu0 %816, %v449
        %v818 = vpop.permute.xlu0 %817
        %821 = vset.pattern.permute.xlu0 0
        %822 = vperm.xlu0 %821, %v450
        %v823 = vpop.permute.xlu0 %822
        %826 = vset.pattern.permute.xlu0 0
        %827 = vperm.xlu0 %826, %v451
        %v828 = vpop.permute.xlu0 %827
        %831 = vset.pattern.permute.xlu0 0
        %832 = vperm.xlu0 %831, %v452
        %v833 = vpop.permute.xlu0 %832
        %836 = vset.pattern.permute.xlu0 0
        %837 = vperm.xlu0 %836, %v453
        %v838 = vpop.permute.xlu0 %837
        %841 = vset.pattern.permute.xlu0 0
        %842 = vperm.xlu0 %841, %v454
        %v843 = vpop.permute.xlu0 %842
        %846 = vset.pattern.permute.xlu0 0
        %847 = vperm.xlu0 %846, %v455
        %v848 = vpop.permute.xlu0 %847
        %851 = vset.pattern.permute.xlu0 0
        %852 = vperm.xlu0 %851, %v456
        %v853 = vpop.permute.xlu0 %852
        %856 = vset.pattern.permute.xlu0 0
        %857 = vperm.xlu0 %856, %v457
        %v858 = vpop.permute.xlu0 %857
        %861 = vset.pattern.permute.xlu0 0
        %862 = vperm.xlu0 %861, %v458
        %v863 = vpop.permute.xlu0 %862
        %866 = vset.pattern.permute.xlu0 0
        %867 = vperm.xlu0 %866, %v459
        %v868 = vpop.permute.xlu0 %867
        %871 = vset.pattern.permute.xlu0 0
        %872 = vperm.xlu0 %871, %v460
        %v873 = vpop.permute.xlu0 %872
        %876 = vset.pattern.permute.xlu0 0
        %877 = vperm.xlu0 %876, %v461
        %v878 = vpop.permute.xlu0 %877
        %881 = vset.pattern.permute.xlu0 0
        %882 = vperm.xlu0 %881, %v462
        %v883 = vpop.permute.xlu0 %882
        %886 = vset.pattern.permute.xlu0 0
        %887 = vperm.xlu0 %886, %v463
        %v888 = vpop.permute.xlu0 %887
        %891 = vset.pattern.permute.xlu0 0
        %892 = vperm.xlu0 %891, %v464
        %v893 = vpop.permute.xlu0 %892
        %896 = vset.pattern.permute.xlu0 0
        %897 = vperm.xlu0 %896, %v465
        %v898 = vpop.permute.xlu0 %897
        %901 = vset.pattern.permute.xlu0 0
        %902 = vperm.xlu0 %901, %v466
        %v903 = vpop.permute.xlu0 %902
        %906 = vset.pattern.permute.xlu0 0
        %907 = vperm.xlu0 %906, %v467
        %v908 = vpop.permute.xlu0 %907
        %911 = vset.pattern.permute.xlu0 0
        %912 = vperm.xlu0 %911, %v468
        %v913 = vpop.permute.xlu0 %912
        %916 = vset.pattern.permute.xlu0 0
        %917 = vperm.xlu0 %916, %v469
        %v918 = vpop.permute.xlu0 %917
        %921 = vset.pattern.permute.xlu0 0
        %922 = vperm.xlu0 %921, %v470
        %v923 = vpop.permute.xlu0 %922
        %926 = vset.pattern.permute.xlu0 0
        %927 = vperm.xlu0 %926, %v471
        %v928 = vpop.permute.xlu0 %927
        %931 = vset.pattern.permute.xlu0 0
        %932 = vperm.xlu0 %931, %v472
        %v933 = vpop.permute.xlu0 %932
        %936 = vset.pattern.permute.xlu0 0
        %937 = vperm.xlu0 %936, %v473
        %v938 = vpop.permute.xlu0 %937
        %941 = vset.pattern.permute.xlu0 0
        %942 = vperm.xlu0 %941, %v474
        %v943 = vpop.permute.xlu0 %942
        %946 = vset.pattern.permute.xlu0 0
        %947 = vperm.xlu0 %946, %v475
        %v948 = vpop.permute.xlu0 %947
        %951 = vset.pattern.permute.xlu0 0
        %952 = vperm.xlu0 %951, %v476
        %v953 = vpop.permute.xlu0 %952
        %956 = vset.pattern.permute.xlu0 0
        %957 = vperm.xlu0 %956, %v477
        %v958 = vpop.permute.xlu0 %957
        %961 = vset.pattern.permute.xlu0 0
        %962 = vperm.xlu0 %961, %v478
        %v963 = vpop.permute.xlu0 %962
        %966 = vset.pattern.permute.xlu0 0
        %967 = vperm.xlu0 %966, %v479
        %v968 = vpop.permute.xlu0 %967
        %971 = vset.pattern.permute.xlu0 0
        %972 = vperm.xlu0 %971, %v480
        %v973 = vpop.permute.xlu0 %972
        %976 = vset.pattern.permute.xlu0 0
        %977 = vperm.xlu0 %976, %v481
        %v978 = vpop.permute.xlu0 %977
        %981 = vset.pattern.permute.xlu0 0
        %982 = vperm.xlu0 %981, %v482
        %v983 = vpop.permute.xlu0 %982
        %986 = vset.pattern.permute.xlu0 0
        %987 = vperm.xlu0 %986, %v483
        %v988 = vpop.permute.xlu0 %987
        %991 = vset.pattern.permute.xlu0 0
        %992 = vperm.xlu0 %991, %v484
        %v993 = vpop.permute.xlu0 %992
        %996 = vset.pattern.permute.xlu0 0
        %997 = vperm.xlu0 %996, %v485
        %v998 = vpop.permute.xlu0 %997
        %1001 = vset.pattern.permute.xlu0 0
        %1002 = vperm.xlu0 %1001, %v486
        %v1003 = vpop.permute.xlu0 %1002
        %1006 = vset.pattern.permute.xlu0 0
        %1007 = vperm.xlu0 %1006, %v487
        %v1008 = vpop.permute.xlu0 %1007
        %1011 = vset.pattern.permute.xlu0 0
        %1012 = vperm.xlu0 %1011, %v488
        %v1013 = vpop.permute.xlu0 %1012
        %1016 = vset.pattern.permute.xlu0 0
        %1017 = vperm.xlu0 %1016, %v489
        %v1018 = vpop.permute.xlu0 %1017
        %1021 = vset.pattern.permute.xlu0 0
        %1022 = vperm.xlu0 %1021, %v490
        %v1023 = vpop.permute.xlu0 %1022
        %1026 = vset.pattern.permute.xlu0 0
        %1027 = vperm.xlu0 %1026, %v491
        %v1028 = vpop.permute.xlu0 %1027
        %1031 = vset.pattern.permute.xlu0 0
        %1032 = vperm.xlu0 %1031, %v492
        %v1033 = vpop.permute.xlu0 %1032
        %1036 = vset.pattern.permute.xlu0 0
        %1037 = vperm.xlu0 %1036, %v493
        %v1038 = vpop.permute.xlu0 %1037
        %1041 = vset.pattern.permute.xlu0 0
        %1042 = vperm.xlu0 %1041, %v494
        %v1043 = vpop.permute.xlu0 %1042
        %1046 = vset.pattern.permute.xlu0 0
        %1047 = vperm.xlu0 %1046, %v495
        %v1048 = vpop.permute.xlu0 %1047
        %1051 = vset.pattern.permute.xlu0 0
        %1052 = vperm.xlu0 %1051, %v496
        %v1053 = vpop.permute.xlu0 %1052
        %1056 = vset.pattern.permute.xlu0 0
        %1057 = vperm.xlu0 %1056, %v497
        %v1058 = vpop.permute.xlu0 %1057
        %1061 = vset.pattern.permute.xlu0 0
        %1062 = vperm.xlu0 %1061, %v498
        %v1063 = vpop.permute.xlu0 %1062
        %1066 = vset.pattern.permute.xlu0 0
        %1067 = vperm.xlu0 %1066, %v499
        %v1068 = vpop.permute.xlu0 %1067
        %1071 = vset.pattern.permute.xlu0 0
        %1072 = vperm.xlu0 %1071, %v500
        %v1073 = vpop.permute.xlu0 %1072
        %1076 = vset.pattern.permute.xlu0 0
        %1077 = vperm.xlu0 %1076, %v501
        %v1078 = vpop.permute.xlu0 %1077
        %1081 = vset.pattern.permute.xlu0 0
        %1082 = vperm.xlu0 %1081, %v502
        %v1083 = vpop.permute.xlu0 %1082
        %1086 = vset.pattern.permute.xlu0 0
        %1087 = vperm.xlu0 %1086, %v503
        %v1088 = vpop.permute.xlu0 %1087
        %1091 = vset.pattern.permute.xlu0 0
        %1092 = vperm.xlu0 %1091, %v504
        %v1093 = vpop.permute.xlu0 %1092
        %1096 = vset.pattern.permute.xlu0 0
        %1097 = vperm.xlu0 %1096, %v505
        %v1098 = vpop.permute.xlu0 %1097
        %1101 = vset.pattern.permute.xlu0 0
        %1102 = vperm.xlu0 %1101, %v506
        %v1103 = vpop.permute.xlu0 %1102
        %1106 = vset.pattern.permute.xlu0 0
        %1107 = vperm.xlu0 %1106, %v507
        %v1108 = vpop.permute.xlu0 %1107
        %1111 = vset.pattern.permute.xlu0 0
        %1112 = vperm.xlu0 %1111, %v508
        %v1113 = vpop.permute.xlu0 %1112
        %1116 = vset.pattern.permute.xlu0 0
        %1117 = vperm.xlu0 %1116, %v509
        %v1118 = vpop.permute.xlu0 %1117
        %1121 = vset.pattern.permute.xlu0 0
        %1122 = vperm.xlu0 %1121, %v510
        %v1123 = vpop.permute.xlu0 %1122
        %1126 = vset.pattern.permute.xlu0 0
        %1127 = vperm.xlu0 %1126, %v511
        %v1128 = vpop.permute.xlu0 %1127
        %1131 = vset.pattern.permute.xlu0 0
        %1132 = vperm.xlu0 %1131, %v512
        %v1133 = vpop.permute.xlu0 %1132
        %1136 = vset.pattern.permute.xlu0 0
        %1137 = vperm.xlu0 %1136, %v513
        %v1138 = vpop.permute.xlu0 %1137
        %1141 = vset.pattern.permute.xlu0 0
        %1142 = vperm.xlu0 %1141, %v514
        %v1143 = vpop.permute.xlu0 %1142
        %1146 = vset.pattern.permute.xlu0 0
        %1147 = vperm.xlu0 %1146, %v515
        %v1148 = vpop.permute.xlu0 %1147
        %1151 = vset.pattern.permute.xlu0 0
        %1152 = vperm.xlu0 %1151, %v516
        %v1153 = vpop.permute.xlu0 %1152
        %1156 = vset.pattern.permute.xlu0 0
        %1157 = vperm.xlu0 %1156, %v517
        %v1158 = vpop.permute.xlu0 %1157
        %v1161 = vperm.slane %v518, 0
        %v1162 = vperm.slane %v518, 2
        %v1163 = vperm.slane %v518, 4
        %v1167 = vperm.slane %v1161, 0
        %v1168 = vperm.slane %v1162, 0
        %v1169 = vperm.slane %v1163, 0
        %v1170 = vmul.f32 %v523, %v1167
        %v1171 = vmul.f32 %v523, %v1168
        %v1172 = vmul.f32 %v523, %v1169
        %v1173 = vmul.f32 %v528, %v1167
        %v1174 = vmul.f32 %v528, %v1168
        %v1175 = vmul.f32 %v528, %v1169
        %v1176 = vmul.f32 %v533, %v1167
        %v1177 = vmul.f32 %v533, %v1168
        %v1178 = vmul.f32 %v533, %v1169
        %v1179 = vmul.f32 %v538, %v1167
        %v1180 = vmul.f32 %v538, %v1168
        %v1181 = vmul.f32 %v538, %v1169
        %v1182 = vmul.f32 %v543, %v1167
        %v1183 = vmul.f32 %v543, %v1168
        %v1184 = vmul.f32 %v543, %v1169
        %v1185 = vmul.f32 %v548, %v1167
        %v1186 = vmul.f32 %v548, %v1168
        %v1187 = vmul.f32 %v548, %v1169
        %v1188 = vmul.f32 %v553, %v1167
        %v1189 = vmul.f32 %v553, %v1168
        %v1190 = vmul.f32 %v553, %v1169
        %v1191 = vmul.f32 %v558, %v1167
        %v1192 = vmul.f32 %v558, %v1168
        %v1193 = vmul.f32 %v558, %v1169
        %v1194 = vmul.f32 %v563, %v1167
        %v1195 = vmul.f32 %v563, %v1168
        %v1196 = vmul.f32 %v563, %v1169
        %v1197 = vmul.f32 %v568, %v1167
        %v1198 = vmul.f32 %v568, %v1168
        %v1199 = vmul.f32 %v568, %v1169
        %v1200 = vmul.f32 %v573, %v1167
        %v1201 = vmul.f32 %v573, %v1168
        %v1202 = vmul.f32 %v573, %v1169
        %v1203 = vmul.f32 %v578, %v1167
        %v1204 = vmul.f32 %v578, %v1168
        %v1205 = vmul.f32 %v578, %v1169
        %v1206 = vmul.f32 %v583, %v1167
        %v1207 = vmul.f32 %v583, %v1168
        %v1208 = vmul.f32 %v583, %v1169
        %v1209 = vmul.f32 %v588, %v1167
        %v1210 = vmul.f32 %v588, %v1168
        %v1211 = vmul.f32 %v588, %v1169
        %v1212 = vmul.f32 %v593, %v1167
        %v1213 = vmul.f32 %v593, %v1168
        %v1214 = vmul.f32 %v593, %v1169
        %v1215 = vmul.f32 %v598, %v1167
        %v1216 = vmul.f32 %v598, %v1168
        %v1217 = vmul.f32 %v598, %v1169
        %v1218 = vmul.f32 %v603, %v1167
        %v1219 = vmul.f32 %v603, %v1168
        %v1220 = vmul.f32 %v603, %v1169
        %v1221 = vmul.f32 %v608, %v1167
        %v1222 = vmul.f32 %v608, %v1168
        %v1223 = vmul.f32 %v608, %v1169
        %v1224 = vmul.f32 %v613, %v1167
        %v1225 = vmul.f32 %v613, %v1168
        %v1226 = vmul.f32 %v613, %v1169
        %v1227 = vmul.f32 %v618, %v1167
        %v1228 = vmul.f32 %v618, %v1168
        %v1229 = vmul.f32 %v618, %v1169
        %v1230 = vmul.f32 %v623, %v1167
        %v1231 = vmul.f32 %v623, %v1168
        %v1232 = vmul.f32 %v623, %v1169
        %v1233 = vmul.f32 %v628, %v1167
        %v1234 = vmul.f32 %v628, %v1168
        %v1235 = vmul.f32 %v628, %v1169
        %v1236 = vmul.f32 %v633, %v1167
        %v1237 = vmul.f32 %v633, %v1168
        %v1238 = vmul.f32 %v633, %v1169
        %v1239 = vmul.f32 %v638, %v1167
        %v1240 = vmul.f32 %v638, %v1168
        %v1241 = vmul.f32 %v638, %v1169
        %v1242 = vmul.f32 %v643, %v1167
        %v1243 = vmul.f32 %v643, %v1168
        %v1244 = vmul.f32 %v643, %v1169
        %v1245 = vmul.f32 %v648, %v1167
        %v1246 = vmul.f32 %v648, %v1168
        %v1247 = vmul.f32 %v648, %v1169
        %v1248 = vmul.f32 %v653, %v1167
        %v1249 = vmul.f32 %v653, %v1168
        %v1250 = vmul.f32 %v653, %v1169
        %v1251 = vmul.f32 %v658, %v1167
        %v1252 = vmul.f32 %v658, %v1168
        %v1253 = vmul.f32 %v658, %v1169
        %v1254 = vmul.f32 %v663, %v1167
        %v1255 = vmul.f32 %v663, %v1168
        %v1256 = vmul.f32 %v663, %v1169
        %v1257 = vmul.f32 %v668, %v1167
        %v1258 = vmul.f32 %v668, %v1168
        %v1259 = vmul.f32 %v668, %v1169
        %v1260 = vmul.f32 %v673, %v1167
        %v1261 = vmul.f32 %v673, %v1168
        %v1262 = vmul.f32 %v673, %v1169
        %v1263 = vmul.f32 %v678, %v1167
        %v1264 = vmul.f32 %v678, %v1168
        %v1265 = vmul.f32 %v678, %v1169
        %v1266 = vmul.f32 %v683, %v1167
        %v1267 = vmul.f32 %v683, %v1168
        %v1268 = vmul.f32 %v683, %v1169
        %v1269 = vmul.f32 %v688, %v1167
        %v1270 = vmul.f32 %v688, %v1168
        %v1271 = vmul.f32 %v688, %v1169
        %v1272 = vmul.f32 %v693, %v1167
        %v1273 = vmul.f32 %v693, %v1168
        %v1274 = vmul.f32 %v693, %v1169
        %v1275 = vmul.f32 %v698, %v1167
        %v1276 = vmul.f32 %v698, %v1168
        %v1277 = vmul.f32 %v698, %v1169
        %v1278 = vmul.f32 %v703, %v1167
        %v1279 = vmul.f32 %v703, %v1168
        %v1280 = vmul.f32 %v703, %v1169
        %v1281 = vmul.f32 %v708, %v1167
        %v1282 = vmul.f32 %v708, %v1168
        %v1283 = vmul.f32 %v708, %v1169
        %v1284 = vmul.f32 %v713, %v1167
        %v1285 = vmul.f32 %v713, %v1168
        %v1286 = vmul.f32 %v713, %v1169
        %v1287 = vmul.f32 %v718, %v1167
        %v1288 = vmul.f32 %v718, %v1168
        %v1289 = vmul.f32 %v718, %v1169
        %v1290 = vmul.f32 %v723, %v1167
        %v1291 = vmul.f32 %v723, %v1168
        %v1292 = vmul.f32 %v723, %v1169
        %v1293 = vmul.f32 %v728, %v1167
        %v1294 = vmul.f32 %v728, %v1168
        %v1295 = vmul.f32 %v728, %v1169
        %v1296 = vmul.f32 %v733, %v1167
        %v1297 = vmul.f32 %v733, %v1168
        %v1298 = vmul.f32 %v733, %v1169
        %v1299 = vmul.f32 %v738, %v1167
        %v1300 = vmul.f32 %v738, %v1168
        %v1301 = vmul.f32 %v738, %v1169
        %v1302 = vmul.f32 %v743, %v1167
        %v1303 = vmul.f32 %v743, %v1168
        %v1304 = vmul.f32 %v743, %v1169
        %v1305 = vmul.f32 %v748, %v1167
        %v1306 = vmul.f32 %v748, %v1168
        %v1307 = vmul.f32 %v748, %v1169
        %v1308 = vmul.f32 %v753, %v1167
        %v1309 = vmul.f32 %v753, %v1168
        %v1310 = vmul.f32 %v753, %v1169
        %v1311 = vmul.f32 %v758, %v1167
        %v1312 = vmul.f32 %v758, %v1168
        %v1313 = vmul.f32 %v758, %v1169
        %v1314 = vmul.f32 %v763, %v1167
        %v1315 = vmul.f32 %v763, %v1168
        %v1316 = vmul.f32 %v763, %v1169
        %v1317 = vmul.f32 %v768, %v1167
        %v1318 = vmul.f32 %v768, %v1168
        %v1319 = vmul.f32 %v768, %v1169
        %v1320 = vmul.f32 %v773, %v1167
        %v1321 = vmul.f32 %v773, %v1168
        %v1322 = vmul.f32 %v773, %v1169
        %v1323 = vmul.f32 %v778, %v1167
        %v1324 = vmul.f32 %v778, %v1168
        %v1325 = vmul.f32 %v778, %v1169
        %v1326 = vmul.f32 %v783, %v1167
        %v1327 = vmul.f32 %v783, %v1168
        %v1328 = vmul.f32 %v783, %v1169
        %v1329 = vmul.f32 %v788, %v1167
        %v1330 = vmul.f32 %v788, %v1168
        %v1331 = vmul.f32 %v788, %v1169
        %v1332 = vmul.f32 %v793, %v1167
        %v1333 = vmul.f32 %v793, %v1168
        %v1334 = vmul.f32 %v793, %v1169
        %v1335 = vmul.f32 %v798, %v1167
        %v1336 = vmul.f32 %v798, %v1168
        %v1337 = vmul.f32 %v798, %v1169
        %v1338 = vmul.f32 %v803, %v1167
        %v1339 = vmul.f32 %v803, %v1168
        %v1340 = vmul.f32 %v803, %v1169
        %v1341 = vmul.f32 %v808, %v1167
        %v1342 = vmul.f32 %v808, %v1168
        %v1343 = vmul.f32 %v808, %v1169
        %v1344 = vmul.f32 %v813, %v1167
        %v1345 = vmul.f32 %v813, %v1168
        %v1346 = vmul.f32 %v813, %v1169
        %v1347 = vmul.f32 %v818, %v1167
        %v1348 = vmul.f32 %v818, %v1168
        %v1349 = vmul.f32 %v818, %v1169
        %v1350 = vmul.f32 %v823, %v1167
        %v1351 = vmul.f32 %v823, %v1168
        %v1352 = vmul.f32 %v823, %v1169
        %v1353 = vmul.f32 %v828, %v1167
        %v1354 = vmul.f32 %v828, %v1168
        %v1355 = vmul.f32 %v828, %v1169
        %v1356 = vmul.f32 %v833, %v1167
        %v1357 = vmul.f32 %v833, %v1168
        %v1358 = vmul.f32 %v833, %v1169
        %v1359 = vmul.f32 %v838, %v1167
        %v1360 = vmul.f32 %v838, %v1168
        %v1361 = vmul.f32 %v838, %v1169
        %v1362 = vmul.f32 %v843, %v1167
        %v1363 = vmul.f32 %v843, %v1168
        %v1364 = vmul.f32 %v843, %v1169
        %v1365 = vmul.f32 %v848, %v1167
        %v1366 = vmul.f32 %v848, %v1168
        %v1367 = vmul.f32 %v848, %v1169
        %v1368 = vmul.f32 %v853, %v1167
        %v1369 = vmul.f32 %v853, %v1168
        %v1370 = vmul.f32 %v853, %v1169
        %v1371 = vmul.f32 %v858, %v1167
        %v1372 = vmul.f32 %v858, %v1168
        %v1373 = vmul.f32 %v858, %v1169
        %v1374 = vmul.f32 %v863, %v1167
        %v1375 = vmul.f32 %v863, %v1168
        %v1376 = vmul.f32 %v863, %v1169
        %v1377 = vmul.f32 %v868, %v1167
        %v1378 = vmul.f32 %v868, %v1168
        %v1379 = vmul.f32 %v868, %v1169
        %v1380 = vmul.f32 %v873, %v1167
        %v1381 = vmul.f32 %v873, %v1168
        %v1382 = vmul.f32 %v873, %v1169
        %v1383 = vmul.f32 %v878, %v1167
        %v1384 = vmul.f32 %v878, %v1168
        %v1385 = vmul.f32 %v878, %v1169
        %v1386 = vmul.f32 %v883, %v1167
        %v1387 = vmul.f32 %v883, %v1168
        %v1388 = vmul.f32 %v883, %v1169
        %v1389 = vmul.f32 %v888, %v1167
        %v1390 = vmul.f32 %v888, %v1168
        %v1391 = vmul.f32 %v888, %v1169
        %v1392 = vmul.f32 %v893, %v1167
        %v1393 = vmul.f32 %v893, %v1168
        %v1394 = vmul.f32 %v893, %v1169
        %v1395 = vmul.f32 %v898, %v1167
        %v1396 = vmul.f32 %v898, %v1168
        %v1397 = vmul.f32 %v898, %v1169
        %v1398 = vmul.f32 %v903, %v1167
        %v1399 = vmul.f32 %v903, %v1168
        %v1400 = vmul.f32 %v903, %v1169
        %v1401 = vmul.f32 %v908, %v1167
        %v1402 = vmul.f32 %v908, %v1168
        %v1403 = vmul.f32 %v908, %v1169
        %v1404 = vmul.f32 %v913, %v1167
        %v1405 = vmul.f32 %v913, %v1168
        %v1406 = vmul.f32 %v913, %v1169
        %v1407 = vmul.f32 %v918, %v1167
        %v1408 = vmul.f32 %v918, %v1168
        %v1409 = vmul.f32 %v918, %v1169
        %v1410 = vmul.f32 %v923, %v1167
        %v1411 = vmul.f32 %v923, %v1168
        %v1412 = vmul.f32 %v923, %v1169
        %v1413 = vmul.f32 %v928, %v1167
        %v1414 = vmul.f32 %v928, %v1168
        %v1415 = vmul.f32 %v928, %v1169
        %v1416 = vmul.f32 %v933, %v1167
        %v1417 = vmul.f32 %v933, %v1168
        %v1418 = vmul.f32 %v933, %v1169
        %v1419 = vmul.f32 %v938, %v1167
        %v1420 = vmul.f32 %v938, %v1168
        %v1421 = vmul.f32 %v938, %v1169
        %v1422 = vmul.f32 %v943, %v1167
        %v1423 = vmul.f32 %v943, %v1168
        %v1424 = vmul.f32 %v943, %v1169
        %v1425 = vmul.f32 %v948, %v1167
        %v1426 = vmul.f32 %v948, %v1168
        %v1427 = vmul.f32 %v948, %v1169
        %v1428 = vmul.f32 %v953, %v1167
        %v1429 = vmul.f32 %v953, %v1168
        %v1430 = vmul.f32 %v953, %v1169
        %v1431 = vmul.f32 %v958, %v1167
        %v1432 = vmul.f32 %v958, %v1168
        %v1433 = vmul.f32 %v958, %v1169
        %v1434 = vmul.f32 %v963, %v1167
        %v1435 = vmul.f32 %v963, %v1168
        %v1436 = vmul.f32 %v963, %v1169
        %v1437 = vmul.f32 %v968, %v1167
        %v1438 = vmul.f32 %v968, %v1168
        %v1439 = vmul.f32 %v968, %v1169
        %v1440 = vmul.f32 %v973, %v1167
        %v1441 = vmul.f32 %v973, %v1168
        %v1442 = vmul.f32 %v973, %v1169
        %v1443 = vmul.f32 %v978, %v1167
        %v1444 = vmul.f32 %v978, %v1168
        %v1445 = vmul.f32 %v978, %v1169
        %v1446 = vmul.f32 %v983, %v1167
        %v1447 = vmul.f32 %v983, %v1168
        %v1448 = vmul.f32 %v983, %v1169
        %v1449 = vmul.f32 %v988, %v1167
        %v1450 = vmul.f32 %v988, %v1168
        %v1451 = vmul.f32 %v988, %v1169
        %v1452 = vmul.f32 %v993, %v1167
        %v1453 = vmul.f32 %v993, %v1168
        %v1454 = vmul.f32 %v993, %v1169
        %v1455 = vmul.f32 %v998, %v1167
        %v1456 = vmul.f32 %v998, %v1168
        %v1457 = vmul.f32 %v998, %v1169
        %v1458 = vmul.f32 %v1003, %v1167
        %v1459 = vmul.f32 %v1003, %v1168
        %v1460 = vmul.f32 %v1003, %v1169
        %v1461 = vmul.f32 %v1008, %v1167
        %v1462 = vmul.f32 %v1008, %v1168
        %v1463 = vmul.f32 %v1008, %v1169
        %v1464 = vmul.f32 %v1013, %v1167
        %v1465 = vmul.f32 %v1013, %v1168
        %v1466 = vmul.f32 %v1013, %v1169
        %v1467 = vmul.f32 %v1018, %v1167
        %v1468 = vmul.f32 %v1018, %v1168
        %v1469 = vmul.f32 %v1018, %v1169
        %v1470 = vmul.f32 %v1023, %v1167
        %v1471 = vmul.f32 %v1023, %v1168
        %v1472 = vmul.f32 %v1023, %v1169
        %v1473 = vmul.f32 %v1028, %v1167
        %v1474 = vmul.f32 %v1028, %v1168
        %v1475 = vmul.f32 %v1028, %v1169
        %v1476 = vmul.f32 %v1033, %v1167
        %v1477 = vmul.f32 %v1033, %v1168
        %v1478 = vmul.f32 %v1033, %v1169
        %v1479 = vmul.f32 %v1038, %v1167
        %v1480 = vmul.f32 %v1038, %v1168
        %v1481 = vmul.f32 %v1038, %v1169
        %v1482 = vmul.f32 %v1043, %v1167
        %v1483 = vmul.f32 %v1043, %v1168
        %v1484 = vmul.f32 %v1043, %v1169
        %v1485 = vmul.f32 %v1048, %v1167
        %v1486 = vmul.f32 %v1048, %v1168
        %v1487 = vmul.f32 %v1048, %v1169
        %v1488 = vmul.f32 %v1053, %v1167
        %v1489 = vmul.f32 %v1053, %v1168
        %v1490 = vmul.f32 %v1053, %v1169
        %v1491 = vmul.f32 %v1058, %v1167
        %v1492 = vmul.f32 %v1058, %v1168
        %v1493 = vmul.f32 %v1058, %v1169
        %v1494 = vmul.f32 %v1063, %v1167
        %v1495 = vmul.f32 %v1063, %v1168
        %v1496 = vmul.f32 %v1063, %v1169
        %v1497 = vmul.f32 %v1068, %v1167
        %v1498 = vmul.f32 %v1068, %v1168
        %v1499 = vmul.f32 %v1068, %v1169
        %v1500 = vmul.f32 %v1073, %v1167
        %v1501 = vmul.f32 %v1073, %v1168
        %v1502 = vmul.f32 %v1073, %v1169
        %v1503 = vmul.f32 %v1078, %v1167
        %v1504 = vmul.f32 %v1078, %v1168
        %v1505 = vmul.f32 %v1078, %v1169
        %v1506 = vmul.f32 %v1083, %v1167
        %v1507 = vmul.f32 %v1083, %v1168
        %v1508 = vmul.f32 %v1083, %v1169
        %v1509 = vmul.f32 %v1088, %v1167
        %v1510 = vmul.f32 %v1088, %v1168
        %v1511 = vmul.f32 %v1088, %v1169
        %v1512 = vmul.f32 %v1093, %v1167
        %v1513 = vmul.f32 %v1093, %v1168
        %v1514 = vmul.f32 %v1093, %v1169
        %v1515 = vmul.f32 %v1098, %v1167
        %v1516 = vmul.f32 %v1098, %v1168
        %v1517 = vmul.f32 %v1098, %v1169
        %v1518 = vmul.f32 %v1103, %v1167
        %v1519 = vmul.f32 %v1103, %v1168
        %v1520 = vmul.f32 %v1103, %v1169
        %v1521 = vmul.f32 %v1108, %v1167
        %v1522 = vmul.f32 %v1108, %v1168
        %v1523 = vmul.f32 %v1108, %v1169
        %v1524 = vmul.f32 %v1113, %v1167
        %v1525 = vmul.f32 %v1113, %v1168
        %v1526 = vmul.f32 %v1113, %v1169
        %v1527 = vmul.f32 %v1118, %v1167
        %v1528 = vmul.f32 %v1118, %v1168
        %v1529 = vmul.f32 %v1118, %v1169
        %v1530 = vmul.f32 %v1123, %v1167
        %v1531 = vmul.f32 %v1123, %v1168
        %v1532 = vmul.f32 %v1123, %v1169
        %v1533 = vmul.f32 %v1128, %v1167
        %v1534 = vmul.f32 %v1128, %v1168
        %v1535 = vmul.f32 %v1128, %v1169
        %v1536 = vmul.f32 %v1133, %v1167
        %v1537 = vmul.f32 %v1133, %v1168
        %v1538 = vmul.f32 %v1133, %v1169
        %v1539 = vmul.f32 %v1138, %v1167
        %v1540 = vmul.f32 %v1138, %v1168
        %v1541 = vmul.f32 %v1138, %v1169
        %v1542 = vmul.f32 %v1143, %v1167
        %v1543 = vmul.f32 %v1143, %v1168
        %v1544 = vmul.f32 %v1143, %v1169
        %v1545 = vmul.f32 %v1148, %v1167
        %v1546 = vmul.f32 %v1148, %v1168
        %v1547 = vmul.f32 %v1148, %v1169
        %v1548 = vmul.f32 %v1153, %v1167
        %v1549 = vmul.f32 %v1153, %v1168
        %v1550 = vmul.f32 %v1153, %v1169
        %v1551 = vmul.f32 %v1158, %v1167
        %v1552 = vmul.f32 %v1158, %v1168
        %v1553 = vmul.f32 %v1158, %v1169
        %1554 = vset.pattern.permute.xlu0 1
        %1555 = vperm.xlu0 %1554, %v390
        %v1556 = vpop.permute.xlu0 %1555
        %1558 = vset.pattern.permute.xlu0 1
        %1559 = vperm.xlu0 %1558, %v391
        %v1560 = vpop.permute.xlu0 %1559
        %1562 = vset.pattern.permute.xlu0 1
        %1563 = vperm.xlu0 %1562, %v392
        %v1564 = vpop.permute.xlu0 %1563
        %1566 = vset.pattern.permute.xlu0 1
        %1567 = vperm.xlu0 %1566, %v393
        %v1568 = vpop.permute.xlu0 %1567
        %1570 = vset.pattern.permute.xlu0 1
        %1571 = vperm.xlu0 %1570, %v394
        %v1572 = vpop.permute.xlu0 %1571
        %1574 = vset.pattern.permute.xlu0 1
        %1575 = vperm.xlu0 %1574, %v395
        %v1576 = vpop.permute.xlu0 %1575
        %1578 = vset.pattern.permute.xlu0 1
        %1579 = vperm.xlu0 %1578, %v396
        %v1580 = vpop.permute.xlu0 %1579
        %1582 = vset.pattern.permute.xlu0 1
        %1583 = vperm.xlu0 %1582, %v397
        %v1584 = vpop.permute.xlu0 %1583
        %1586 = vset.pattern.permute.xlu0 1
        %1587 = vperm.xlu0 %1586, %v398
        %v1588 = vpop.permute.xlu0 %1587
        %1590 = vset.pattern.permute.xlu0 1
        %1591 = vperm.xlu0 %1590, %v399
        %v1592 = vpop.permute.xlu0 %1591
        %1594 = vset.pattern.permute.xlu0 1
        %1595 = vperm.xlu0 %1594, %v400
        %v1596 = vpop.permute.xlu0 %1595
        %1598 = vset.pattern.permute.xlu0 1
        %1599 = vperm.xlu0 %1598, %v401
        %v1600 = vpop.permute.xlu0 %1599
        %1602 = vset.pattern.permute.xlu0 1
        %1603 = vperm.xlu0 %1602, %v402
        %v1604 = vpop.permute.xlu0 %1603
        %1606 = vset.pattern.permute.xlu0 1
        %1607 = vperm.xlu0 %1606, %v403
        %v1608 = vpop.permute.xlu0 %1607
        %1610 = vset.pattern.permute.xlu0 1
        %1611 = vperm.xlu0 %1610, %v404
        %v1612 = vpop.permute.xlu0 %1611
        %1614 = vset.pattern.permute.xlu0 1
        %1615 = vperm.xlu0 %1614, %v405
        %v1616 = vpop.permute.xlu0 %1615
        %1618 = vset.pattern.permute.xlu0 1
        %1619 = vperm.xlu0 %1618, %v406
        %v1620 = vpop.permute.xlu0 %1619
        %1622 = vset.pattern.permute.xlu0 1
        %1623 = vperm.xlu0 %1622, %v407
        %v1624 = vpop.permute.xlu0 %1623
        %1626 = vset.pattern.permute.xlu0 1
        %1627 = vperm.xlu0 %1626, %v408
        %v1628 = vpop.permute.xlu0 %1627
        %1630 = vset.pattern.permute.xlu0 1
        %1631 = vperm.xlu0 %1630, %v409
        %v1632 = vpop.permute.xlu0 %1631
        %1634 = vset.pattern.permute.xlu0 1
        %1635 = vperm.xlu0 %1634, %v410
        %v1636 = vpop.permute.xlu0 %1635
        %1638 = vset.pattern.permute.xlu0 1
        %1639 = vperm.xlu0 %1638, %v411
        %v1640 = vpop.permute.xlu0 %1639
        %1642 = vset.pattern.permute.xlu0 1
        %1643 = vperm.xlu0 %1642, %v412
        %v1644 = vpop.permute.xlu0 %1643
        %1646 = vset.pattern.permute.xlu0 1
        %1647 = vperm.xlu0 %1646, %v413
        %v1648 = vpop.permute.xlu0 %1647
        %1650 = vset.pattern.permute.xlu0 1
        %1651 = vperm.xlu0 %1650, %v414
        %v1652 = vpop.permute.xlu0 %1651
        %1654 = vset.pattern.permute.xlu0 1
        %1655 = vperm.xlu0 %1654, %v415
        %v1656 = vpop.permute.xlu0 %1655
        %1658 = vset.pattern.permute.xlu0 1
        %1659 = vperm.xlu0 %1658, %v416
        %v1660 = vpop.permute.xlu0 %1659
        %1662 = vset.pattern.permute.xlu0 1
        %1663 = vperm.xlu0 %1662, %v417
        %v1664 = vpop.permute.xlu0 %1663
        %1666 = vset.pattern.permute.xlu0 1
        %1667 = vperm.xlu0 %1666, %v418
        %v1668 = vpop.permute.xlu0 %1667
        %1670 = vset.pattern.permute.xlu0 1
        %1671 = vperm.xlu0 %1670, %v419
        %v1672 = vpop.permute.xlu0 %1671
        %1674 = vset.pattern.permute.xlu0 1
        %1675 = vperm.xlu0 %1674, %v420
        %v1676 = vpop.permute.xlu0 %1675
        %1678 = vset.pattern.permute.xlu0 1
        %1679 = vperm.xlu0 %1678, %v421
        %v1680 = vpop.permute.xlu0 %1679
        %1682 = vset.pattern.permute.xlu0 1
        %1683 = vperm.xlu0 %1682, %v422
        %v1684 = vpop.permute.xlu0 %1683
        %1686 = vset.pattern.permute.xlu0 1
        %1687 = vperm.xlu0 %1686, %v423
        %v1688 = vpop.permute.xlu0 %1687
        %1690 = vset.pattern.permute.xlu0 1
        %1691 = vperm.xlu0 %1690, %v424
        %v1692 = vpop.permute.xlu0 %1691
        %1694 = vset.pattern.permute.xlu0 1
        %1695 = vperm.xlu0 %1694, %v425
        %v1696 = vpop.permute.xlu0 %1695
        %1698 = vset.pattern.permute.xlu0 1
        %1699 = vperm.xlu0 %1698, %v426
        %v1700 = vpop.permute.xlu0 %1699
        %1702 = vset.pattern.permute.xlu0 1
        %1703 = vperm.xlu0 %1702, %v427
        %v1704 = vpop.permute.xlu0 %1703
        %1706 = vset.pattern.permute.xlu0 1
        %1707 = vperm.xlu0 %1706, %v428
        %v1708 = vpop.permute.xlu0 %1707
        %1710 = vset.pattern.permute.xlu0 1
        %1711 = vperm.xlu0 %1710, %v429
        %v1712 = vpop.permute.xlu0 %1711
        %1714 = vset.pattern.permute.xlu0 1
        %1715 = vperm.xlu0 %1714, %v430
        %v1716 = vpop.permute.xlu0 %1715
        %1718 = vset.pattern.permute.xlu0 1
        %1719 = vperm.xlu0 %1718, %v431
        %v1720 = vpop.permute.xlu0 %1719
        %1722 = vset.pattern.permute.xlu0 1
        %1723 = vperm.xlu0 %1722, %v432
        %v1724 = vpop.permute.xlu0 %1723
        %1726 = vset.pattern.permute.xlu0 1
        %1727 = vperm.xlu0 %1726, %v433
        %v1728 = vpop.permute.xlu0 %1727
        %1730 = vset.pattern.permute.xlu0 1
        %1731 = vperm.xlu0 %1730, %v434
        %v1732 = vpop.permute.xlu0 %1731
        %1734 = vset.pattern.permute.xlu0 1
        %1735 = vperm.xlu0 %1734, %v435
        %v1736 = vpop.permute.xlu0 %1735
        %1738 = vset.pattern.permute.xlu0 1
        %1739 = vperm.xlu0 %1738, %v436
        %v1740 = vpop.permute.xlu0 %1739
        %1742 = vset.pattern.permute.xlu0 1
        %1743 = vperm.xlu0 %1742, %v437
        %v1744 = vpop.permute.xlu0 %1743
        %1746 = vset.pattern.permute.xlu0 1
        %1747 = vperm.xlu0 %1746, %v438
        %v1748 = vpop.permute.xlu0 %1747
        %1750 = vset.pattern.permute.xlu0 1
        %1751 = vperm.xlu0 %1750, %v439
        %v1752 = vpop.permute.xlu0 %1751
        %1754 = vset.pattern.permute.xlu0 1
        %1755 = vperm.xlu0 %1754, %v440
        %v1756 = vpop.permute.xlu0 %1755
        %1758 = vset.pattern.permute.xlu0 1
        %1759 = vperm.xlu0 %1758, %v441
        %v1760 = vpop.permute.xlu0 %1759
        %1762 = vset.pattern.permute.xlu0 1
        %1763 = vperm.xlu0 %1762, %v442
        %v1764 = vpop.permute.xlu0 %1763
        %1766 = vset.pattern.permute.xlu0 1
        %1767 = vperm.xlu0 %1766, %v443
        %v1768 = vpop.permute.xlu0 %1767
        %1770 = vset.pattern.permute.xlu0 1
        %1771 = vperm.xlu0 %1770, %v444
        %v1772 = vpop.permute.xlu0 %1771
        %1774 = vset.pattern.permute.xlu0 1
        %1775 = vperm.xlu0 %1774, %v445
        %v1776 = vpop.permute.xlu0 %1775
        %1778 = vset.pattern.permute.xlu0 1
        %1779 = vperm.xlu0 %1778, %v446
        %v1780 = vpop.permute.xlu0 %1779
        %1782 = vset.pattern.permute.xlu0 1
        %1783 = vperm.xlu0 %1782, %v447
        %v1784 = vpop.permute.xlu0 %1783
        %1786 = vset.pattern.permute.xlu0 1
        %1787 = vperm.xlu0 %1786, %v448
        %v1788 = vpop.permute.xlu0 %1787
        %1790 = vset.pattern.permute.xlu0 1
        %1791 = vperm.xlu0 %1790, %v449
        %v1792 = vpop.permute.xlu0 %1791
        %1794 = vset.pattern.permute.xlu0 1
        %1795 = vperm.xlu0 %1794, %v450
        %v1796 = vpop.permute.xlu0 %1795
        %1798 = vset.pattern.permute.xlu0 1
        %1799 = vperm.xlu0 %1798, %v451
        %v1800 = vpop.permute.xlu0 %1799
        %1802 = vset.pattern.permute.xlu0 1
        %1803 = vperm.xlu0 %1802, %v452
        %v1804 = vpop.permute.xlu0 %1803
        %1806 = vset.pattern.permute.xlu0 1
        %1807 = vperm.xlu0 %1806, %v453
        %v1808 = vpop.permute.xlu0 %1807
        %1810 = vset.pattern.permute.xlu0 1
        %1811 = vperm.xlu0 %1810, %v454
        %v1812 = vpop.permute.xlu0 %1811
        %1814 = vset.pattern.permute.xlu0 1
        %1815 = vperm.xlu0 %1814, %v455
        %v1816 = vpop.permute.xlu0 %1815
        %1818 = vset.pattern.permute.xlu0 1
        %1819 = vperm.xlu0 %1818, %v456
        %v1820 = vpop.permute.xlu0 %1819
        %1822 = vset.pattern.permute.xlu0 1
        %1823 = vperm.xlu0 %1822, %v457
        %v1824 = vpop.permute.xlu0 %1823
        %1826 = vset.pattern.permute.xlu0 1
        %1827 = vperm.xlu0 %1826, %v458
        %v1828 = vpop.permute.xlu0 %1827
        %1830 = vset.pattern.permute.xlu0 1
        %1831 = vperm.xlu0 %1830, %v459
        %v1832 = vpop.permute.xlu0 %1831
        %1834 = vset.pattern.permute.xlu0 1
        %1835 = vperm.xlu0 %1834, %v460
        %v1836 = vpop.permute.xlu0 %1835
        %1838 = vset.pattern.permute.xlu0 1
        %1839 = vperm.xlu0 %1838, %v461
        %v1840 = vpop.permute.xlu0 %1839
        %1842 = vset.pattern.permute.xlu0 1
        %1843 = vperm.xlu0 %1842, %v462
        %v1844 = vpop.permute.xlu0 %1843
        %1846 = vset.pattern.permute.xlu0 1
        %1847 = vperm.xlu0 %1846, %v463
        %v1848 = vpop.permute.xlu0 %1847
        %1850 = vset.pattern.permute.xlu0 1
        %1851 = vperm.xlu0 %1850, %v464
        %v1852 = vpop.permute.xlu0 %1851
        %1854 = vset.pattern.permute.xlu0 1
        %1855 = vperm.xlu0 %1854, %v465
        %v1856 = vpop.permute.xlu0 %1855
        %1858 = vset.pattern.permute.xlu0 1
        %1859 = vperm.xlu0 %1858, %v466
        %v1860 = vpop.permute.xlu0 %1859
        %1862 = vset.pattern.permute.xlu0 1
        %1863 = vperm.xlu0 %1862, %v467
        %v1864 = vpop.permute.xlu0 %1863
        %1866 = vset.pattern.permute.xlu0 1
        %1867 = vperm.xlu0 %1866, %v468
        %v1868 = vpop.permute.xlu0 %1867
        %1870 = vset.pattern.permute.xlu0 1
        %1871 = vperm.xlu0 %1870, %v469
        %v1872 = vpop.permute.xlu0 %1871
        %1874 = vset.pattern.permute.xlu0 1
        %1875 = vperm.xlu0 %1874, %v470
        %v1876 = vpop.permute.xlu0 %1875
        %1878 = vset.pattern.permute.xlu0 1
        %1879 = vperm.xlu0 %1878, %v471
        %v1880 = vpop.permute.xlu0 %1879
        %1882 = vset.pattern.permute.xlu0 1
        %1883 = vperm.xlu0 %1882, %v472
        %v1884 = vpop.permute.xlu0 %1883
        %1886 = vset.pattern.permute.xlu0 1
        %1887 = vperm.xlu0 %1886, %v473
        %v1888 = vpop.permute.xlu0 %1887
        %1890 = vset.pattern.permute.xlu0 1
        %1891 = vperm.xlu0 %1890, %v474
        %v1892 = vpop.permute.xlu0 %1891
        %1894 = vset.pattern.permute.xlu0 1
        %1895 = vperm.xlu0 %1894, %v475
        %v1896 = vpop.permute.xlu0 %1895
        %1898 = vset.pattern.permute.xlu0 1
        %1899 = vperm.xlu0 %1898, %v476
        %v1900 = vpop.permute.xlu0 %1899
        %1902 = vset.pattern.permute.xlu0 1
        %1903 = vperm.xlu0 %1902, %v477
        %v1904 = vpop.permute.xlu0 %1903
        %1906 = vset.pattern.permute.xlu0 1
        %1907 = vperm.xlu0 %1906, %v478
        %v1908 = vpop.permute.xlu0 %1907
        %1910 = vset.pattern.permute.xlu0 1
        %1911 = vperm.xlu0 %1910, %v479
        %v1912 = vpop.permute.xlu0 %1911
        %1914 = vset.pattern.permute.xlu0 1
        %1915 = vperm.xlu0 %1914, %v480
        %v1916 = vpop.permute.xlu0 %1915
        %1918 = vset.pattern.permute.xlu0 1
        %1919 = vperm.xlu0 %1918, %v481
        %v1920 = vpop.permute.xlu0 %1919
        %1922 = vset.pattern.permute.xlu0 1
        %1923 = vperm.xlu0 %1922, %v482
        %v1924 = vpop.permute.xlu0 %1923
        %1926 = vset.pattern.permute.xlu0 1
        %1927 = vperm.xlu0 %1926, %v483
        %v1928 = vpop.permute.xlu0 %1927
        %1930 = vset.pattern.permute.xlu0 1
        %1931 = vperm.xlu0 %1930, %v484
        %v1932 = vpop.permute.xlu0 %1931
        %1934 = vset.pattern.permute.xlu0 1
        %1935 = vperm.xlu0 %1934, %v485
        %v1936 = vpop.permute.xlu0 %1935
        %1938 = vset.pattern.permute.xlu0 1
        %1939 = vperm.xlu0 %1938, %v486
        %v1940 = vpop.permute.xlu0 %1939
        %1942 = vset.pattern.permute.xlu0 1
        %1943 = vperm.xlu0 %1942, %v487
        %v1944 = vpop.permute.xlu0 %1943
        %1946 = vset.pattern.permute.xlu0 1
        %1947 = vperm.xlu0 %1946, %v488
        %v1948 = vpop.permute.xlu0 %1947
        %1950 = vset.pattern.permute.xlu0 1
        %1951 = vperm.xlu0 %1950, %v489
        %v1952 = vpop.permute.xlu0 %1951
        %1954 = vset.pattern.permute.xlu0 1
        %1955 = vperm.xlu0 %1954, %v490
        %v1956 = vpop.permute.xlu0 %1955
        %1958 = vset.pattern.permute.xlu0 1
        %1959 = vperm.xlu0 %1958, %v491
        %v1960 = vpop.permute.xlu0 %1959
        %1962 = vset.pattern.permute.xlu0 1
        %1963 = vperm.xlu0 %1962, %v492
        %v1964 = vpop.permute.xlu0 %1963
        %1966 = vset.pattern.permute.xlu0 1
        %1967 = vperm.xlu0 %1966, %v493
        %v1968 = vpop.permute.xlu0 %1967
        %1970 = vset.pattern.permute.xlu0 1
        %1971 = vperm.xlu0 %1970, %v494
        %v1972 = vpop.permute.xlu0 %1971
        %1974 = vset.pattern.permute.xlu0 1
        %1975 = vperm.xlu0 %1974, %v495
        %v1976 = vpop.permute.xlu0 %1975
        %1978 = vset.pattern.permute.xlu0 1
        %1979 = vperm.xlu0 %1978, %v496
        %v1980 = vpop.permute.xlu0 %1979
        %1982 = vset.pattern.permute.xlu0 1
        %1983 = vperm.xlu0 %1982, %v497
        %v1984 = vpop.permute.xlu0 %1983
        %1986 = vset.pattern.permute.xlu0 1
        %1987 = vperm.xlu0 %1986, %v498
        %v1988 = vpop.permute.xlu0 %1987
        %1990 = vset.pattern.permute.xlu0 1
        %1991 = vperm.xlu0 %1990, %v499
        %v1992 = vpop.permute.xlu0 %1991
        %1994 = vset.pattern.permute.xlu0 1
        %1995 = vperm.xlu0 %1994, %v500
        %v1996 = vpop.permute.xlu0 %1995
        %1998 = vset.pattern.permute.xlu0 1
        %1999 = vperm.xlu0 %1998, %v501
        %v2000 = vpop.permute.xlu0 %1999
        %2002 = vset.pattern.permute.xlu0 1
        %2003 = vperm.xlu0 %2002, %v502
        %v2004 = vpop.permute.xlu0 %2003
        %2006 = vset.pattern.permute.xlu0 1
        %2007 = vperm.xlu0 %2006, %v503
        %v2008 = vpop.permute.xlu0 %2007
        %2010 = vset.pattern.permute.xlu0 1
        %2011 = vperm.xlu0 %2010, %v504
        %v2012 = vpop.permute.xlu0 %2011
        %2014 = vset.pattern.permute.xlu0 1
        %2015 = vperm.xlu0 %2014, %v505
        %v2016 = vpop.permute.xlu0 %2015
        %2018 = vset.pattern.permute.xlu0 1
        %2019 = vperm.xlu0 %2018, %v506
        %v2020 = vpop.permute.xlu0 %2019
        %2022 = vset.pattern.permute.xlu0 1
        %2023 = vperm.xlu0 %2022, %v507
        %v2024 = vpop.permute.xlu0 %2023
        %2026 = vset.pattern.permute.xlu0 1
        %2027 = vperm.xlu0 %2026, %v508
        %v2028 = vpop.permute.xlu0 %2027
        %2030 = vset.pattern.permute.xlu0 1
        %2031 = vperm.xlu0 %2030, %v509
        %v2032 = vpop.permute.xlu0 %2031
        %2034 = vset.pattern.permute.xlu0 1
        %2035 = vperm.xlu0 %2034, %v510
        %v2036 = vpop.permute.xlu0 %2035
        %2038 = vset.pattern.permute.xlu0 1
        %2039 = vperm.xlu0 %2038, %v511
        %v2040 = vpop.permute.xlu0 %2039
        %2042 = vset.pattern.permute.xlu0 1
        %2043 = vperm.xlu0 %2042, %v512
        %v2044 = vpop.permute.xlu0 %2043
        %2046 = vset.pattern.permute.xlu0 1
        %2047 = vperm.xlu0 %2046, %v513
        %v2048 = vpop.permute.xlu0 %2047
        %2050 = vset.pattern.permute.xlu0 1
        %2051 = vperm.xlu0 %2050, %v514
        %v2052 = vpop.permute.xlu0 %2051
        %2054 = vset.pattern.permute.xlu0 1
        %2055 = vperm.xlu0 %2054, %v515
        %v2056 = vpop.permute.xlu0 %2055
        %2058 = vset.pattern.permute.xlu0 1
        %2059 = vperm.xlu0 %2058, %v516
        %v2060 = vpop.permute.xlu0 %2059
        %2062 = vset.pattern.permute.xlu0 1
        %2063 = vperm.xlu0 %2062, %v517
        %v2064 = vpop.permute.xlu0 %2063
        %v2066 = vperm.slane %v518, 1
        %v2067 = vperm.slane %v518, 3
        %v2068 = vperm.slane %v518, 5
        %v2072 = vperm.slane %v2066, 1
        %v2073 = vperm.slane %v2067, 1
        %v2074 = vperm.slane %v2068, 1
        %v2075 = vmul.f32 %v1556, %v2072
        %v2076 = vmul.f32 %v1556, %v2073
        %v2077 = vmul.f32 %v1556, %v2074
        %v2078 = vmul.f32 %v1560, %v2072
        %v2079 = vmul.f32 %v1560, %v2073
        %v2080 = vmul.f32 %v1560, %v2074
        %v2081 = vmul.f32 %v1564, %v2072
        %v2082 = vmul.f32 %v1564, %v2073
        %v2083 = vmul.f32 %v1564, %v2074
        %v2084 = vmul.f32 %v1568, %v2072
        %v2085 = vmul.f32 %v1568, %v2073
        %v2086 = vmul.f32 %v1568, %v2074
        %v2087 = vmul.f32 %v1572, %v2072
        %v2088 = vmul.f32 %v1572, %v2073
        %v2089 = vmul.f32 %v1572, %v2074
        %v2090 = vmul.f32 %v1576, %v2072
        %v2091 = vmul.f32 %v1576, %v2073
        %v2092 = vmul.f32 %v1576, %v2074
        %v2093 = vmul.f32 %v1580, %v2072
        %v2094 = vmul.f32 %v1580, %v2073
        %v2095 = vmul.f32 %v1580, %v2074
        %v2096 = vmul.f32 %v1584, %v2072
        %v2097 = vmul.f32 %v1584, %v2073
        %v2098 = vmul.f32 %v1584, %v2074
        %v2099 = vmul.f32 %v1588, %v2072
        %v2100 = vmul.f32 %v1588, %v2073
        %v2101 = vmul.f32 %v1588, %v2074
        %v2102 = vmul.f32 %v1592, %v2072
        %v2103 = vmul.f32 %v1592, %v2073
        %v2104 = vmul.f32 %v1592, %v2074
        %v2105 = vmul.f32 %v1596, %v2072
        %v2106 = vmul.f32 %v1596, %v2073
        %v2107 = vmul.f32 %v1596, %v2074
        %v2108 = vmul.f32 %v1600, %v2072
        %v2109 = vmul.f32 %v1600, %v2073
        %v2110 = vmul.f32 %v1600, %v2074
        %v2111 = vmul.f32 %v1604, %v2072
        %v2112 = vmul.f32 %v1604, %v2073
        %v2113 = vmul.f32 %v1604, %v2074
        %v2114 = vmul.f32 %v1608, %v2072
        %v2115 = vmul.f32 %v1608, %v2073
        %v2116 = vmul.f32 %v1608, %v2074
        %v2117 = vmul.f32 %v1612, %v2072
        %v2118 = vmul.f32 %v1612, %v2073
        %v2119 = vmul.f32 %v1612, %v2074
        %v2120 = vmul.f32 %v1616, %v2072
        %v2121 = vmul.f32 %v1616, %v2073
        %v2122 = vmul.f32 %v1616, %v2074
        %v2123 = vmul.f32 %v1620, %v2072
        %v2124 = vmul.f32 %v1620, %v2073
        %v2125 = vmul.f32 %v1620, %v2074
        %v2126 = vmul.f32 %v1624, %v2072
        %v2127 = vmul.f32 %v1624, %v2073
        %v2128 = vmul.f32 %v1624, %v2074
        %v2129 = vmul.f32 %v1628, %v2072
        %v2130 = vmul.f32 %v1628, %v2073
        %v2131 = vmul.f32 %v1628, %v2074
        %v2132 = vmul.f32 %v1632, %v2072
        %v2133 = vmul.f32 %v1632, %v2073
        %v2134 = vmul.f32 %v1632, %v2074
        %v2135 = vmul.f32 %v1636, %v2072
        %v2136 = vmul.f32 %v1636, %v2073
        %v2137 = vmul.f32 %v1636, %v2074
        %v2138 = vmul.f32 %v1640, %v2072
        %v2139 = vmul.f32 %v1640, %v2073
        %v2140 = vmul.f32 %v1640, %v2074
        %v2141 = vmul.f32 %v1644, %v2072
        %v2142 = vmul.f32 %v1644, %v2073
        %v2143 = vmul.f32 %v1644, %v2074
        %v2144 = vmul.f32 %v1648, %v2072
        %v2145 = vmul.f32 %v1648, %v2073
        %v2146 = vmul.f32 %v1648, %v2074
        %v2147 = vmul.f32 %v1652, %v2072
        %v2148 = vmul.f32 %v1652, %v2073
        %v2149 = vmul.f32 %v1652, %v2074
        %v2150 = vmul.f32 %v1656, %v2072
        %v2151 = vmul.f32 %v1656, %v2073
        %v2152 = vmul.f32 %v1656, %v2074
        %v2153 = vmul.f32 %v1660, %v2072
        %v2154 = vmul.f32 %v1660, %v2073
        %v2155 = vmul.f32 %v1660, %v2074
        %v2156 = vmul.f32 %v1664, %v2072
        %v2157 = vmul.f32 %v1664, %v2073
        %v2158 = vmul.f32 %v1664, %v2074
        %v2159 = vmul.f32 %v1668, %v2072
        %v2160 = vmul.f32 %v1668, %v2073
        %v2161 = vmul.f32 %v1668, %v2074
        %v2162 = vmul.f32 %v1672, %v2072
        %v2163 = vmul.f32 %v1672, %v2073
        %v2164 = vmul.f32 %v1672, %v2074
        %v2165 = vmul.f32 %v1676, %v2072
        %v2166 = vmul.f32 %v1676, %v2073
        %v2167 = vmul.f32 %v1676, %v2074
        %v2168 = vmul.f32 %v1680, %v2072
        %v2169 = vmul.f32 %v1680, %v2073
        %v2170 = vmul.f32 %v1680, %v2074
        %v2171 = vmul.f32 %v1684, %v2072
        %v2172 = vmul.f32 %v1684, %v2073
        %v2173 = vmul.f32 %v1684, %v2074
        %v2174 = vmul.f32 %v1688, %v2072
        %v2175 = vmul.f32 %v1688, %v2073
        %v2176 = vmul.f32 %v1688, %v2074
        %v2177 = vmul.f32 %v1692, %v2072
        %v2178 = vmul.f32 %v1692, %v2073
        %v2179 = vmul.f32 %v1692, %v2074
        %v2180 = vmul.f32 %v1696, %v2072
        %v2181 = vmul.f32 %v1696, %v2073
        %v2182 = vmul.f32 %v1696, %v2074
        %v2183 = vmul.f32 %v1700, %v2072
        %v2184 = vmul.f32 %v1700, %v2073
        %v2185 = vmul.f32 %v1700, %v2074
        %v2186 = vmul.f32 %v1704, %v2072
        %v2187 = vmul.f32 %v1704, %v2073
        %v2188 = vmul.f32 %v1704, %v2074
        %v2189 = vmul.f32 %v1708, %v2072
        %v2190 = vmul.f32 %v1708, %v2073
        %v2191 = vmul.f32 %v1708, %v2074
        %v2192 = vmul.f32 %v1712, %v2072
        %v2193 = vmul.f32 %v1712, %v2073
        %v2194 = vmul.f32 %v1712, %v2074
        %v2195 = vmul.f32 %v1716, %v2072
        %v2196 = vmul.f32 %v1716, %v2073
        %v2197 = vmul.f32 %v1716, %v2074
        %v2198 = vmul.f32 %v1720, %v2072
        %v2199 = vmul.f32 %v1720, %v2073
        %v2200 = vmul.f32 %v1720, %v2074
        %v2201 = vmul.f32 %v1724, %v2072
        %v2202 = vmul.f32 %v1724, %v2073
        %v2203 = vmul.f32 %v1724, %v2074
        %v2204 = vmul.f32 %v1728, %v2072
        %v2205 = vmul.f32 %v1728, %v2073
        %v2206 = vmul.f32 %v1728, %v2074
        %v2207 = vmul.f32 %v1732, %v2072
        %v2208 = vmul.f32 %v1732, %v2073
        %v2209 = vmul.f32 %v1732, %v2074
        %v2210 = vmul.f32 %v1736, %v2072
        %v2211 = vmul.f32 %v1736, %v2073
        %v2212 = vmul.f32 %v1736, %v2074
        %v2213 = vmul.f32 %v1740, %v2072
        %v2214 = vmul.f32 %v1740, %v2073
        %v2215 = vmul.f32 %v1740, %v2074
        %v2216 = vmul.f32 %v1744, %v2072
        %v2217 = vmul.f32 %v1744, %v2073
        %v2218 = vmul.f32 %v1744, %v2074
        %v2219 = vmul.f32 %v1748, %v2072
        %v2220 = vmul.f32 %v1748, %v2073
        %v2221 = vmul.f32 %v1748, %v2074
        %v2222 = vmul.f32 %v1752, %v2072
        %v2223 = vmul.f32 %v1752, %v2073
        %v2224 = vmul.f32 %v1752, %v2074
        %v2225 = vmul.f32 %v1756, %v2072
        %v2226 = vmul.f32 %v1756, %v2073
        %v2227 = vmul.f32 %v1756, %v2074
        %v2228 = vmul.f32 %v1760, %v2072
        %v2229 = vmul.f32 %v1760, %v2073
        %v2230 = vmul.f32 %v1760, %v2074
        %v2231 = vmul.f32 %v1764, %v2072
        %v2232 = vmul.f32 %v1764, %v2073
        %v2233 = vmul.f32 %v1764, %v2074
        %v2234 = vmul.f32 %v1768, %v2072
        %v2235 = vmul.f32 %v1768, %v2073
        %v2236 = vmul.f32 %v1768, %v2074
        %v2237 = vmul.f32 %v1772, %v2072
        %v2238 = vmul.f32 %v1772, %v2073
        %v2239 = vmul.f32 %v1772, %v2074
        %v2240 = vmul.f32 %v1776, %v2072
        %v2241 = vmul.f32 %v1776, %v2073
        %v2242 = vmul.f32 %v1776, %v2074
        %v2243 = vmul.f32 %v1780, %v2072
        %v2244 = vmul.f32 %v1780, %v2073
        %v2245 = vmul.f32 %v1780, %v2074
        %v2246 = vmul.f32 %v1784, %v2072
        %v2247 = vmul.f32 %v1784, %v2073
        %v2248 = vmul.f32 %v1784, %v2074
        %v2249 = vmul.f32 %v1788, %v2072
        %v2250 = vmul.f32 %v1788, %v2073
        %v2251 = vmul.f32 %v1788, %v2074
        %v2252 = vmul.f32 %v1792, %v2072
        %v2253 = vmul.f32 %v1792, %v2073
        %v2254 = vmul.f32 %v1792, %v2074
        %v2255 = vmul.f32 %v1796, %v2072
        %v2256 = vmul.f32 %v1796, %v2073
        %v2257 = vmul.f32 %v1796, %v2074
        %v2258 = vmul.f32 %v1800, %v2072
        %v2259 = vmul.f32 %v1800, %v2073
        %v2260 = vmul.f32 %v1800, %v2074
        %v2261 = vmul.f32 %v1804, %v2072
        %v2262 = vmul.f32 %v1804, %v2073
        %v2263 = vmul.f32 %v1804, %v2074
        %v2264 = vmul.f32 %v1808, %v2072
        %v2265 = vmul.f32 %v1808, %v2073
        %v2266 = vmul.f32 %v1808, %v2074
        %v2267 = vmul.f32 %v1812, %v2072
        %v2268 = vmul.f32 %v1812, %v2073
        %v2269 = vmul.f32 %v1812, %v2074
        %v2270 = vmul.f32 %v1816, %v2072
        %v2271 = vmul.f32 %v1816, %v2073
        %v2272 = vmul.f32 %v1816, %v2074
        %v2273 = vmul.f32 %v1820, %v2072
        %v2274 = vmul.f32 %v1820, %v2073
        %v2275 = vmul.f32 %v1820, %v2074
        %v2276 = vmul.f32 %v1824, %v2072
        %v2277 = vmul.f32 %v1824, %v2073
        %v2278 = vmul.f32 %v1824, %v2074
        %v2279 = vmul.f32 %v1828, %v2072
        %v2280 = vmul.f32 %v1828, %v2073
        %v2281 = vmul.f32 %v1828, %v2074
        %v2282 = vmul.f32 %v1832, %v2072
        %v2283 = vmul.f32 %v1832, %v2073
        %v2284 = vmul.f32 %v1832, %v2074
        %v2285 = vmul.f32 %v1836, %v2072
        %v2286 = vmul.f32 %v1836, %v2073
        %v2287 = vmul.f32 %v1836, %v2074
        %v2288 = vmul.f32 %v1840, %v2072
        %v2289 = vmul.f32 %v1840, %v2073
        %v2290 = vmul.f32 %v1840, %v2074
        %v2291 = vmul.f32 %v1844, %v2072
        %v2292 = vmul.f32 %v1844, %v2073
        %v2293 = vmul.f32 %v1844, %v2074
        %v2294 = vmul.f32 %v1848, %v2072
        %v2295 = vmul.f32 %v1848, %v2073
        %v2296 = vmul.f32 %v1848, %v2074
        %v2297 = vmul.f32 %v1852, %v2072
        %v2298 = vmul.f32 %v1852, %v2073
        %v2299 = vmul.f32 %v1852, %v2074
        %v2300 = vmul.f32 %v1856, %v2072
        %v2301 = vmul.f32 %v1856, %v2073
        %v2302 = vmul.f32 %v1856, %v2074
        %v2303 = vmul.f32 %v1860, %v2072
        %v2304 = vmul.f32 %v1860, %v2073
        %v2305 = vmul.f32 %v1860, %v2074
        %v2306 = vmul.f32 %v1864, %v2072
        %v2307 = vmul.f32 %v1864, %v2073
        %v2308 = vmul.f32 %v1864, %v2074
        %v2309 = vmul.f32 %v1868, %v2072
        %v2310 = vmul.f32 %v1868, %v2073
        %v2311 = vmul.f32 %v1868, %v2074
        %v2312 = vmul.f32 %v1872, %v2072
        %v2313 = vmul.f32 %v1872, %v2073
        %v2314 = vmul.f32 %v1872, %v2074
        %v2315 = vmul.f32 %v1876, %v2072
        %v2316 = vmul.f32 %v1876, %v2073
        %v2317 = vmul.f32 %v1876, %v2074
        %v2318 = vmul.f32 %v1880, %v2072
        %v2319 = vmul.f32 %v1880, %v2073
        %v2320 = vmul.f32 %v1880, %v2074
        %v2321 = vmul.f32 %v1884, %v2072
        %v2322 = vmul.f32 %v1884, %v2073
        %v2323 = vmul.f32 %v1884, %v2074
        %v2324 = vmul.f32 %v1888, %v2072
        %v2325 = vmul.f32 %v1888, %v2073
        %v2326 = vmul.f32 %v1888, %v2074
        %v2327 = vmul.f32 %v1892, %v2072
        %v2328 = vmul.f32 %v1892, %v2073
        %v2329 = vmul.f32 %v1892, %v2074
        %v2330 = vmul.f32 %v1896, %v2072
        %v2331 = vmul.f32 %v1896, %v2073
        %v2332 = vmul.f32 %v1896, %v2074
        %v2333 = vmul.f32 %v1900, %v2072
        %v2334 = vmul.f32 %v1900, %v2073
        %v2335 = vmul.f32 %v1900, %v2074
        %v2336 = vmul.f32 %v1904, %v2072
        %v2337 = vmul.f32 %v1904, %v2073
        %v2338 = vmul.f32 %v1904, %v2074
        %v2339 = vmul.f32 %v1908, %v2072
        %v2340 = vmul.f32 %v1908, %v2073
        %v2341 = vmul.f32 %v1908, %v2074
        %v2342 = vmul.f32 %v1912, %v2072
        %v2343 = vmul.f32 %v1912, %v2073
        %v2344 = vmul.f32 %v1912, %v2074
        %v2345 = vmul.f32 %v1916, %v2072
        %v2346 = vmul.f32 %v1916, %v2073
        %v2347 = vmul.f32 %v1916, %v2074
        %v2348 = vmul.f32 %v1920, %v2072
        %v2349 = vmul.f32 %v1920, %v2073
        %v2350 = vmul.f32 %v1920, %v2074
        %v2351 = vmul.f32 %v1924, %v2072
        %v2352 = vmul.f32 %v1924, %v2073
        %v2353 = vmul.f32 %v1924, %v2074
        %v2354 = vmul.f32 %v1928, %v2072
        %v2355 = vmul.f32 %v1928, %v2073
        %v2356 = vmul.f32 %v1928, %v2074
        %v2357 = vmul.f32 %v1932, %v2072
        %v2358 = vmul.f32 %v1932, %v2073
        %v2359 = vmul.f32 %v1932, %v2074
        %v2360 = vmul.f32 %v1936, %v2072
        %v2361 = vmul.f32 %v1936, %v2073
        %v2362 = vmul.f32 %v1936, %v2074
        %v2363 = vmul.f32 %v1940, %v2072
        %v2364 = vmul.f32 %v1940, %v2073
        %v2365 = vmul.f32 %v1940, %v2074
        %v2366 = vmul.f32 %v1944, %v2072
        %v2367 = vmul.f32 %v1944, %v2073
        %v2368 = vmul.f32 %v1944, %v2074
        %v2369 = vmul.f32 %v1948, %v2072
        %v2370 = vmul.f32 %v1948, %v2073
        %v2371 = vmul.f32 %v1948, %v2074
        %v2372 = vmul.f32 %v1952, %v2072
        %v2373 = vmul.f32 %v1952, %v2073
        %v2374 = vmul.f32 %v1952, %v2074
        %v2375 = vmul.f32 %v1956, %v2072
        %v2376 = vmul.f32 %v1956, %v2073
        %v2377 = vmul.f32 %v1956, %v2074
        %v2378 = vmul.f32 %v1960, %v2072
        %v2379 = vmul.f32 %v1960, %v2073
        %v2380 = vmul.f32 %v1960, %v2074
        %v2381 = vmul.f32 %v1964, %v2072
        %v2382 = vmul.f32 %v1964, %v2073
        %v2383 = vmul.f32 %v1964, %v2074
        %v2384 = vmul.f32 %v1968, %v2072
        %v2385 = vmul.f32 %v1968, %v2073
        %v2386 = vmul.f32 %v1968, %v2074
        %v2387 = vmul.f32 %v1972, %v2072
        %v2388 = vmul.f32 %v1972, %v2073
        %v2389 = vmul.f32 %v1972, %v2074
        %v2390 = vmul.f32 %v1976, %v2072
        %v2391 = vmul.f32 %v1976, %v2073
        %v2392 = vmul.f32 %v1976, %v2074
        %v2393 = vmul.f32 %v1980, %v2072
        %v2394 = vmul.f32 %v1980, %v2073
        %v2395 = vmul.f32 %v1980, %v2074
        %v2396 = vmul.f32 %v1984, %v2072
        %v2397 = vmul.f32 %v1984, %v2073
        %v2398 = vmul.f32 %v1984, %v2074
        %v2399 = vmul.f32 %v1988, %v2072
        %v2400 = vmul.f32 %v1988, %v2073
        %v2401 = vmul.f32 %v1988, %v2074
        %v2402 = vmul.f32 %v1992, %v2072
        %v2403 = vmul.f32 %v1992, %v2073
        %v2404 = vmul.f32 %v1992, %v2074
        %v2405 = vmul.f32 %v1996, %v2072
        %v2406 = vmul.f32 %v1996, %v2073
        %v2407 = vmul.f32 %v1996, %v2074
        %v2408 = vmul.f32 %v2000, %v2072
        %v2409 = vmul.f32 %v2000, %v2073
        %v2410 = vmul.f32 %v2000, %v2074
        %v2411 = vmul.f32 %v2004, %v2072
        %v2412 = vmul.f32 %v2004, %v2073
        %v2413 = vmul.f32 %v2004, %v2074
        %v2414 = vmul.f32 %v2008, %v2072
        %v2415 = vmul.f32 %v2008, %v2073
        %v2416 = vmul.f32 %v2008, %v2074
        %v2417 = vmul.f32 %v2012, %v2072
        %v2418 = vmul.f32 %v2012, %v2073
        %v2419 = vmul.f32 %v2012, %v2074
        %v2420 = vmul.f32 %v2016, %v2072
        %v2421 = vmul.f32 %v2016, %v2073
        %v2422 = vmul.f32 %v2016, %v2074
        %v2423 = vmul.f32 %v2020, %v2072
        %v2424 = vmul.f32 %v2020, %v2073
        %v2425 = vmul.f32 %v2020, %v2074
        %v2426 = vmul.f32 %v2024, %v2072
        %v2427 = vmul.f32 %v2024, %v2073
        %v2428 = vmul.f32 %v2024, %v2074
        %v2429 = vmul.f32 %v2028, %v2072
        %v2430 = vmul.f32 %v2028, %v2073
        %v2431 = vmul.f32 %v2028, %v2074
        %v2432 = vmul.f32 %v2032, %v2072
        %v2433 = vmul.f32 %v2032, %v2073
        %v2434 = vmul.f32 %v2032, %v2074
        %v2435 = vmul.f32 %v2036, %v2072
        %v2436 = vmul.f32 %v2036, %v2073
        %v2437 = vmul.f32 %v2036, %v2074
        %v2438 = vmul.f32 %v2040, %v2072
        %v2439 = vmul.f32 %v2040, %v2073
        %v2440 = vmul.f32 %v2040, %v2074
        %v2441 = vmul.f32 %v2044, %v2072
        %v2442 = vmul.f32 %v2044, %v2073
        %v2443 = vmul.f32 %v2044, %v2074
        %v2444 = vmul.f32 %v2048, %v2072
        %v2445 = vmul.f32 %v2048, %v2073
        %v2446 = vmul.f32 %v2048, %v2074
        %v2447 = vmul.f32 %v2052, %v2072
        %v2448 = vmul.f32 %v2052, %v2073
        %v2449 = vmul.f32 %v2052, %v2074
        %v2450 = vmul.f32 %v2056, %v2072
        %v2451 = vmul.f32 %v2056, %v2073
        %v2452 = vmul.f32 %v2056, %v2074
        %v2453 = vmul.f32 %v2060, %v2072
        %v2454 = vmul.f32 %v2060, %v2073
        %v2455 = vmul.f32 %v2060, %v2074
        %v2456 = vmul.f32 %v2064, %v2072
        %v2457 = vmul.f32 %v2064, %v2073
        %v2458 = vmul.f32 %v2064, %v2074
        %v2459 = vadd.f32 %v1170, %v2075
        %v2460 = vadd.f32 %v1171, %v2076
        %v2461 = vadd.f32 %v1172, %v2077
        %v2462 = vadd.f32 %v1173, %v2078
        %v2463 = vadd.f32 %v1174, %v2079
        %v2464 = vadd.f32 %v1175, %v2080
        %v2465 = vadd.f32 %v1176, %v2081
        %v2466 = vadd.f32 %v1177, %v2082
        %v2467 = vadd.f32 %v1178, %v2083
        %v2468 = vadd.f32 %v1179, %v2084
        %v2469 = vadd.f32 %v1180, %v2085
        %v2470 = vadd.f32 %v1181, %v2086
        %v2471 = vadd.f32 %v1182, %v2087
        %v2472 = vadd.f32 %v1183, %v2088
        %v2473 = vadd.f32 %v1184, %v2089
        %v2474 = vadd.f32 %v1185, %v2090
        %v2475 = vadd.f32 %v1186, %v2091
        %v2476 = vadd.f32 %v1187, %v2092
        %v2477 = vadd.f32 %v1188, %v2093
        %v2478 = vadd.f32 %v1189, %v2094
        %v2479 = vadd.f32 %v1190, %v2095
        %v2480 = vadd.f32 %v1191, %v2096
        %v2481 = vadd.f32 %v1192, %v2097
        %v2482 = vadd.f32 %v1193, %v2098
        %v2483 = vadd.f32 %v1194, %v2099
        %v2484 = vadd.f32 %v1195, %v2100
        %v2485 = vadd.f32 %v1196, %v2101
        %v2486 = vadd.f32 %v1197, %v2102
        %v2487 = vadd.f32 %v1198, %v2103
        %v2488 = vadd.f32 %v1199, %v2104
        %v2489 = vadd.f32 %v1200, %v2105
        %v2490 = vadd.f32 %v1201, %v2106
        %v2491 = vadd.f32 %v1202, %v2107
        %v2492 = vadd.f32 %v1203, %v2108
        %v2493 = vadd.f32 %v1204, %v2109
        %v2494 = vadd.f32 %v1205, %v2110
        %v2495 = vadd.f32 %v1206, %v2111
        %v2496 = vadd.f32 %v1207, %v2112
        %v2497 = vadd.f32 %v1208, %v2113
        %v2498 = vadd.f32 %v1209, %v2114
        %v2499 = vadd.f32 %v1210, %v2115
        %v2500 = vadd.f32 %v1211, %v2116
        %v2501 = vadd.f32 %v1212, %v2117
        %v2502 = vadd.f32 %v1213, %v2118
        %v2503 = vadd.f32 %v1214, %v2119
        %v2504 = vadd.f32 %v1215, %v2120
        %v2505 = vadd.f32 %v1216, %v2121
        %v2506 = vadd.f32 %v1217, %v2122
        %v2507 = vadd.f32 %v1218, %v2123
        %v2508 = vadd.f32 %v1219, %v2124
        %v2509 = vadd.f32 %v1220, %v2125
        %v2510 = vadd.f32 %v1221, %v2126
        %v2511 = vadd.f32 %v1222, %v2127
        %v2512 = vadd.f32 %v1223, %v2128
        %v2513 = vadd.f32 %v1224, %v2129
        %v2514 = vadd.f32 %v1225, %v2130
        %v2515 = vadd.f32 %v1226, %v2131
        %v2516 = vadd.f32 %v1227, %v2132
        %v2517 = vadd.f32 %v1228, %v2133
        %v2518 = vadd.f32 %v1229, %v2134
        %v2519 = vadd.f32 %v1230, %v2135
        %v2520 = vadd.f32 %v1231, %v2136
        %v2521 = vadd.f32 %v1232, %v2137
        %v2522 = vadd.f32 %v1233, %v2138
        %v2523 = vadd.f32 %v1234, %v2139
        %v2524 = vadd.f32 %v1235, %v2140
        %v2525 = vadd.f32 %v1236, %v2141
        %v2526 = vadd.f32 %v1237, %v2142
        %v2527 = vadd.f32 %v1238, %v2143
        %v2528 = vadd.f32 %v1239, %v2144
        %v2529 = vadd.f32 %v1240, %v2145
        %v2530 = vadd.f32 %v1241, %v2146
        %v2531 = vadd.f32 %v1242, %v2147
        %v2532 = vadd.f32 %v1243, %v2148
        %v2533 = vadd.f32 %v1244, %v2149
        %v2534 = vadd.f32 %v1245, %v2150
        %v2535 = vadd.f32 %v1246, %v2151
        %v2536 = vadd.f32 %v1247, %v2152
        %v2537 = vadd.f32 %v1248, %v2153
        %v2538 = vadd.f32 %v1249, %v2154
        %v2539 = vadd.f32 %v1250, %v2155
        %v2540 = vadd.f32 %v1251, %v2156
        %v2541 = vadd.f32 %v1252, %v2157
        %v2542 = vadd.f32 %v1253, %v2158
        %v2543 = vadd.f32 %v1254, %v2159
        %v2544 = vadd.f32 %v1255, %v2160
        %v2545 = vadd.f32 %v1256, %v2161
        %v2546 = vadd.f32 %v1257, %v2162
        %v2547 = vadd.f32 %v1258, %v2163
        %v2548 = vadd.f32 %v1259, %v2164
        %v2549 = vadd.f32 %v1260, %v2165
        %v2550 = vadd.f32 %v1261, %v2166
        %v2551 = vadd.f32 %v1262, %v2167
        %v2552 = vadd.f32 %v1263, %v2168
        %v2553 = vadd.f32 %v1264, %v2169
        %v2554 = vadd.f32 %v1265, %v2170
        %v2555 = vadd.f32 %v1266, %v2171
        %v2556 = vadd.f32 %v1267, %v2172
        %v2557 = vadd.f32 %v1268, %v2173
        %v2558 = vadd.f32 %v1269, %v2174
        %v2559 = vadd.f32 %v1270, %v2175
        %v2560 = vadd.f32 %v1271, %v2176
        %v2561 = vadd.f32 %v1272, %v2177
        %v2562 = vadd.f32 %v1273, %v2178
        %v2563 = vadd.f32 %v1274, %v2179
        %v2564 = vadd.f32 %v1275, %v2180
        %v2565 = vadd.f32 %v1276, %v2181
        %v2566 = vadd.f32 %v1277, %v2182
        %v2567 = vadd.f32 %v1278, %v2183
        %v2568 = vadd.f32 %v1279, %v2184
        %v2569 = vadd.f32 %v1280, %v2185
        %v2570 = vadd.f32 %v1281, %v2186
        %v2571 = vadd.f32 %v1282, %v2187
        %v2572 = vadd.f32 %v1283, %v2188
        %v2573 = vadd.f32 %v1284, %v2189
        %v2574 = vadd.f32 %v1285, %v2190
        %v2575 = vadd.f32 %v1286, %v2191
        %v2576 = vadd.f32 %v1287, %v2192
        %v2577 = vadd.f32 %v1288, %v2193
        %v2578 = vadd.f32 %v1289, %v2194
        %v2579 = vadd.f32 %v1290, %v2195
        %v2580 = vadd.f32 %v1291, %v2196
        %v2581 = vadd.f32 %v1292, %v2197
        %v2582 = vadd.f32 %v1293, %v2198
        %v2583 = vadd.f32 %v1294, %v2199
        %v2584 = vadd.f32 %v1295, %v2200
        %v2585 = vadd.f32 %v1296, %v2201
        %v2586 = vadd.f32 %v1297, %v2202
        %v2587 = vadd.f32 %v1298, %v2203
        %v2588 = vadd.f32 %v1299, %v2204
        %v2589 = vadd.f32 %v1300, %v2205
        %v2590 = vadd.f32 %v1301, %v2206
        %v2591 = vadd.f32 %v1302, %v2207
        %v2592 = vadd.f32 %v1303, %v2208
        %v2593 = vadd.f32 %v1304, %v2209
        %v2594 = vadd.f32 %v1305, %v2210
        %v2595 = vadd.f32 %v1306, %v2211
        %v2596 = vadd.f32 %v1307, %v2212
        %v2597 = vadd.f32 %v1308, %v2213
        %v2598 = vadd.f32 %v1309, %v2214
        %v2599 = vadd.f32 %v1310, %v2215
        %v2600 = vadd.f32 %v1311, %v2216
        %v2601 = vadd.f32 %v1312, %v2217
        %v2602 = vadd.f32 %v1313, %v2218
        %v2603 = vadd.f32 %v1314, %v2219
        %v2604 = vadd.f32 %v1315, %v2220
        %v2605 = vadd.f32 %v1316, %v2221
        %v2606 = vadd.f32 %v1317, %v2222
        %v2607 = vadd.f32 %v1318, %v2223
        %v2608 = vadd.f32 %v1319, %v2224
        %v2609 = vadd.f32 %v1320, %v2225
        %v2610 = vadd.f32 %v1321, %v2226
        %v2611 = vadd.f32 %v1322, %v2227
        %v2612 = vadd.f32 %v1323, %v2228
        %v2613 = vadd.f32 %v1324, %v2229
        %v2614 = vadd.f32 %v1325, %v2230
        %v2615 = vadd.f32 %v1326, %v2231
        %v2616 = vadd.f32 %v1327, %v2232
        %v2617 = vadd.f32 %v1328, %v2233
        %v2618 = vadd.f32 %v1329, %v2234
        %v2619 = vadd.f32 %v1330, %v2235
        %v2620 = vadd.f32 %v1331, %v2236
        %v2621 = vadd.f32 %v1332, %v2237
        %v2622 = vadd.f32 %v1333, %v2238
        %v2623 = vadd.f32 %v1334, %v2239
        %v2624 = vadd.f32 %v1335, %v2240
        %v2625 = vadd.f32 %v1336, %v2241
        %v2626 = vadd.f32 %v1337, %v2242
        %v2627 = vadd.f32 %v1338, %v2243
        %v2628 = vadd.f32 %v1339, %v2244
        %v2629 = vadd.f32 %v1340, %v2245
        %v2630 = vadd.f32 %v1341, %v2246
        %v2631 = vadd.f32 %v1342, %v2247
        %v2632 = vadd.f32 %v1343, %v2248
        %v2633 = vadd.f32 %v1344, %v2249
        %v2634 = vadd.f32 %v1345, %v2250
        %v2635 = vadd.f32 %v1346, %v2251
        %v2636 = vadd.f32 %v1347, %v2252
        %v2637 = vadd.f32 %v1348, %v2253
        %v2638 = vadd.f32 %v1349, %v2254
        %v2639 = vadd.f32 %v1350, %v2255
        %v2640 = vadd.f32 %v1351, %v2256
        %v2641 = vadd.f32 %v1352, %v2257
        %v2642 = vadd.f32 %v1353, %v2258
        %v2643 = vadd.f32 %v1354, %v2259
        %v2644 = vadd.f32 %v1355, %v2260
        %v2645 = vadd.f32 %v1356, %v2261
        %v2646 = vadd.f32 %v1357, %v2262
        %v2647 = vadd.f32 %v1358, %v2263
        %v2648 = vadd.f32 %v1359, %v2264
        %v2649 = vadd.f32 %v1360, %v2265
        %v2650 = vadd.f32 %v1361, %v2266
        %v2651 = vadd.f32 %v1362, %v2267
        %v2652 = vadd.f32 %v1363, %v2268
        %v2653 = vadd.f32 %v1364, %v2269
        %v2654 = vadd.f32 %v1365, %v2270
        %v2655 = vadd.f32 %v1366, %v2271
        %v2656 = vadd.f32 %v1367, %v2272
        %v2657 = vadd.f32 %v1368, %v2273
        %v2658 = vadd.f32 %v1369, %v2274
        %v2659 = vadd.f32 %v1370, %v2275
        %v2660 = vadd.f32 %v1371, %v2276
        %v2661 = vadd.f32 %v1372, %v2277
        %v2662 = vadd.f32 %v1373, %v2278
        %v2663 = vadd.f32 %v1374, %v2279
        %v2664 = vadd.f32 %v1375, %v2280
        %v2665 = vadd.f32 %v1376, %v2281
        %v2666 = vadd.f32 %v1377, %v2282
        %v2667 = vadd.f32 %v1378, %v2283
        %v2668 = vadd.f32 %v1379, %v2284
        %v2669 = vadd.f32 %v1380, %v2285
        %v2670 = vadd.f32 %v1381, %v2286
        %v2671 = vadd.f32 %v1382, %v2287
        %v2672 = vadd.f32 %v1383, %v2288
        %v2673 = vadd.f32 %v1384, %v2289
        %v2674 = vadd.f32 %v1385, %v2290
        %v2675 = vadd.f32 %v1386, %v2291
        %v2676 = vadd.f32 %v1387, %v2292
        %v2677 = vadd.f32 %v1388, %v2293
        %v2678 = vadd.f32 %v1389, %v2294
        %v2679 = vadd.f32 %v1390, %v2295
        %v2680 = vadd.f32 %v1391, %v2296
        %v2681 = vadd.f32 %v1392, %v2297
        %v2682 = vadd.f32 %v1393, %v2298
        %v2683 = vadd.f32 %v1394, %v2299
        %v2684 = vadd.f32 %v1395, %v2300
        %v2685 = vadd.f32 %v1396, %v2301
        %v2686 = vadd.f32 %v1397, %v2302
        %v2687 = vadd.f32 %v1398, %v2303
        %v2688 = vadd.f32 %v1399, %v2304
        %v2689 = vadd.f32 %v1400, %v2305
        %v2690 = vadd.f32 %v1401, %v2306
        %v2691 = vadd.f32 %v1402, %v2307
        %v2692 = vadd.f32 %v1403, %v2308
        %v2693 = vadd.f32 %v1404, %v2309
        %v2694 = vadd.f32 %v1405, %v2310
        %v2695 = vadd.f32 %v1406, %v2311
        %v2696 = vadd.f32 %v1407, %v2312
        %v2697 = vadd.f32 %v1408, %v2313
        %v2698 = vadd.f32 %v1409, %v2314
        %v2699 = vadd.f32 %v1410, %v2315
        %v2700 = vadd.f32 %v1411, %v2316
        %v2701 = vadd.f32 %v1412, %v2317
        %v2702 = vadd.f32 %v1413, %v2318
        %v2703 = vadd.f32 %v1414, %v2319
        %v2704 = vadd.f32 %v1415, %v2320
        %v2705 = vadd.f32 %v1416, %v2321
        %v2706 = vadd.f32 %v1417, %v2322
        %v2707 = vadd.f32 %v1418, %v2323
        %v2708 = vadd.f32 %v1419, %v2324
        %v2709 = vadd.f32 %v1420, %v2325
        %v2710 = vadd.f32 %v1421, %v2326
        %v2711 = vadd.f32 %v1422, %v2327
        %v2712 = vadd.f32 %v1423, %v2328
        %v2713 = vadd.f32 %v1424, %v2329
        %v2714 = vadd.f32 %v1425, %v2330
        %v2715 = vadd.f32 %v1426, %v2331
        %v2716 = vadd.f32 %v1427, %v2332
        %v2717 = vadd.f32 %v1428, %v2333
        %v2718 = vadd.f32 %v1429, %v2334
        %v2719 = vadd.f32 %v1430, %v2335
        %v2720 = vadd.f32 %v1431, %v2336
        %v2721 = vadd.f32 %v1432, %v2337
        %v2722 = vadd.f32 %v1433, %v2338
        %v2723 = vadd.f32 %v1434, %v2339
        %v2724 = vadd.f32 %v1435, %v2340
        %v2725 = vadd.f32 %v1436, %v2341
        %v2726 = vadd.f32 %v1437, %v2342
        %v2727 = vadd.f32 %v1438, %v2343
        %v2728 = vadd.f32 %v1439, %v2344
        %v2729 = vadd.f32 %v1440, %v2345
        %v2730 = vadd.f32 %v1441, %v2346
        %v2731 = vadd.f32 %v1442, %v2347
        %v2732 = vadd.f32 %v1443, %v2348
        %v2733 = vadd.f32 %v1444, %v2349
        %v2734 = vadd.f32 %v1445, %v2350
        %v2735 = vadd.f32 %v1446, %v2351
        %v2736 = vadd.f32 %v1447, %v2352
        %v2737 = vadd.f32 %v1448, %v2353
        %v2738 = vadd.f32 %v1449, %v2354
        %v2739 = vadd.f32 %v1450, %v2355
        %v2740 = vadd.f32 %v1451, %v2356
        %v2741 = vadd.f32 %v1452, %v2357
        %v2742 = vadd.f32 %v1453, %v2358
        %v2743 = vadd.f32 %v1454, %v2359
        %v2744 = vadd.f32 %v1455, %v2360
        %v2745 = vadd.f32 %v1456, %v2361
        %v2746 = vadd.f32 %v1457, %v2362
        %v2747 = vadd.f32 %v1458, %v2363
        %v2748 = vadd.f32 %v1459, %v2364
        %v2749 = vadd.f32 %v1460, %v2365
        %v2750 = vadd.f32 %v1461, %v2366
        %v2751 = vadd.f32 %v1462, %v2367
        %v2752 = vadd.f32 %v1463, %v2368
        %v2753 = vadd.f32 %v1464, %v2369
        %v2754 = vadd.f32 %v1465, %v2370
        %v2755 = vadd.f32 %v1466, %v2371
        %v2756 = vadd.f32 %v1467, %v2372
        %v2757 = vadd.f32 %v1468, %v2373
        %v2758 = vadd.f32 %v1469, %v2374
        %v2759 = vadd.f32 %v1470, %v2375
        %v2760 = vadd.f32 %v1471, %v2376
        %v2761 = vadd.f32 %v1472, %v2377
        %v2762 = vadd.f32 %v1473, %v2378
        %v2763 = vadd.f32 %v1474, %v2379
        %v2764 = vadd.f32 %v1475, %v2380
        %v2765 = vadd.f32 %v1476, %v2381
        %v2766 = vadd.f32 %v1477, %v2382
        %v2767 = vadd.f32 %v1478, %v2383
        %v2768 = vadd.f32 %v1479, %v2384
        %v2769 = vadd.f32 %v1480, %v2385
        %v2770 = vadd.f32 %v1481, %v2386
        %v2771 = vadd.f32 %v1482, %v2387
        %v2772 = vadd.f32 %v1483, %v2388
        %v2773 = vadd.f32 %v1484, %v2389
        %v2774 = vadd.f32 %v1485, %v2390
        %v2775 = vadd.f32 %v1486, %v2391
        %v2776 = vadd.f32 %v1487, %v2392
        %v2777 = vadd.f32 %v1488, %v2393
        %v2778 = vadd.f32 %v1489, %v2394
        %v2779 = vadd.f32 %v1490, %v2395
        %v2780 = vadd.f32 %v1491, %v2396
        %v2781 = vadd.f32 %v1492, %v2397
        %v2782 = vadd.f32 %v1493, %v2398
        %v2783 = vadd.f32 %v1494, %v2399
        %v2784 = vadd.f32 %v1495, %v2400
        %v2785 = vadd.f32 %v1496, %v2401
        %v2786 = vadd.f32 %v1497, %v2402
        %v2787 = vadd.f32 %v1498, %v2403
        %v2788 = vadd.f32 %v1499, %v2404
        %v2789 = vadd.f32 %v1500, %v2405
        %v2790 = vadd.f32 %v1501, %v2406
        %v2791 = vadd.f32 %v1502, %v2407
        %v2792 = vadd.f32 %v1503, %v2408
        %v2793 = vadd.f32 %v1504, %v2409
        %v2794 = vadd.f32 %v1505, %v2410
        %v2795 = vadd.f32 %v1506, %v2411
        %v2796 = vadd.f32 %v1507, %v2412
        %v2797 = vadd.f32 %v1508, %v2413
        %v2798 = vadd.f32 %v1509, %v2414
        %v2799 = vadd.f32 %v1510, %v2415
        %v2800 = vadd.f32 %v1511, %v2416
        %v2801 = vadd.f32 %v1512, %v2417
        %v2802 = vadd.f32 %v1513, %v2418
        %v2803 = vadd.f32 %v1514, %v2419
        %v2804 = vadd.f32 %v1515, %v2420
        %v2805 = vadd.f32 %v1516, %v2421
        %v2806 = vadd.f32 %v1517, %v2422
        %v2807 = vadd.f32 %v1518, %v2423
        %v2808 = vadd.f32 %v1519, %v2424
        %v2809 = vadd.f32 %v1520, %v2425
        %v2810 = vadd.f32 %v1521, %v2426
        %v2811 = vadd.f32 %v1522, %v2427
        %v2812 = vadd.f32 %v1523, %v2428
        %v2813 = vadd.f32 %v1524, %v2429
        %v2814 = vadd.f32 %v1525, %v2430
        %v2815 = vadd.f32 %v1526, %v2431
        %v2816 = vadd.f32 %v1527, %v2432
        %v2817 = vadd.f32 %v1528, %v2433
        %v2818 = vadd.f32 %v1529, %v2434
        %v2819 = vadd.f32 %v1530, %v2435
        %v2820 = vadd.f32 %v1531, %v2436
        %v2821 = vadd.f32 %v1532, %v2437
        %v2822 = vadd.f32 %v1533, %v2438
        %v2823 = vadd.f32 %v1534, %v2439
        %v2824 = vadd.f32 %v1535, %v2440
        %v2825 = vadd.f32 %v1536, %v2441
        %v2826 = vadd.f32 %v1537, %v2442
        %v2827 = vadd.f32 %v1538, %v2443
        %v2828 = vadd.f32 %v1539, %v2444
        %v2829 = vadd.f32 %v1540, %v2445
        %v2830 = vadd.f32 %v1541, %v2446
        %v2831 = vadd.f32 %v1542, %v2447
        %v2832 = vadd.f32 %v1543, %v2448
        %v2833 = vadd.f32 %v1544, %v2449
        %v2834 = vadd.f32 %v1545, %v2450
        %v2835 = vadd.f32 %v1546, %v2451
        %v2836 = vadd.f32 %v1547, %v2452
        %v2837 = vadd.f32 %v1548, %v2453
        %v2838 = vadd.f32 %v1549, %v2454
        %v2839 = vadd.f32 %v1550, %v2455
        %v2840 = vadd.f32 %v1551, %v2456
        %v2841 = vadd.f32 %v1552, %v2457
        %v2842 = vadd.f32 %v1553, %v2458
        %v2844 = vperm.slane %v519, 0
        %v2845 = vperm.slane %v519, 1
        %v2846 = vperm.slane %v519, 2
        %v2850 = vadd.f32 %v2459, %v2844
        %v2851 = vadd.f32 %v2460, %v2845
        %v2852 = vadd.f32 %v2461, %v2846
        %v2853 = vadd.f32 %v2462, %v2844
        %v2854 = vadd.f32 %v2463, %v2845
        %v2855 = vadd.f32 %v2464, %v2846
        %v2856 = vadd.f32 %v2465, %v2844
        %v2857 = vadd.f32 %v2466, %v2845
        %v2858 = vadd.f32 %v2467, %v2846
        %v2859 = vadd.f32 %v2468, %v2844
        %v2860 = vadd.f32 %v2469, %v2845
        %v2861 = vadd.f32 %v2470, %v2846
        %v2862 = vadd.f32 %v2471, %v2844
        %v2863 = vadd.f32 %v2472, %v2845
        %v2864 = vadd.f32 %v2473, %v2846
        %v2865 = vadd.f32 %v2474, %v2844
        %v2866 = vadd.f32 %v2475, %v2845
        %v2867 = vadd.f32 %v2476, %v2846
        %v2868 = vadd.f32 %v2477, %v2844
        %v2869 = vadd.f32 %v2478, %v2845
        %v2870 = vadd.f32 %v2479, %v2846
        %v2871 = vadd.f32 %v2480, %v2844
        %v2872 = vadd.f32 %v2481, %v2845
        %v2873 = vadd.f32 %v2482, %v2846
        %v2874 = vadd.f32 %v2483, %v2844
        %v2875 = vadd.f32 %v2484, %v2845
        %v2876 = vadd.f32 %v2485, %v2846
        %v2877 = vadd.f32 %v2486, %v2844
        %v2878 = vadd.f32 %v2487, %v2845
        %v2879 = vadd.f32 %v2488, %v2846
        %v2880 = vadd.f32 %v2489, %v2844
        %v2881 = vadd.f32 %v2490, %v2845
        %v2882 = vadd.f32 %v2491, %v2846
        %v2883 = vadd.f32 %v2492, %v2844
        %v2884 = vadd.f32 %v2493, %v2845
        %v2885 = vadd.f32 %v2494, %v2846
        %v2886 = vadd.f32 %v2495, %v2844
        %v2887 = vadd.f32 %v2496, %v2845
        %v2888 = vadd.f32 %v2497, %v2846
        %v2889 = vadd.f32 %v2498, %v2844
        %v2890 = vadd.f32 %v2499, %v2845
        %v2891 = vadd.f32 %v2500, %v2846
        %v2892 = vadd.f32 %v2501, %v2844
        %v2893 = vadd.f32 %v2502, %v2845
        %v2894 = vadd.f32 %v2503, %v2846
        %v2895 = vadd.f32 %v2504, %v2844
        %v2896 = vadd.f32 %v2505, %v2845
        %v2897 = vadd.f32 %v2506, %v2846
        %v2898 = vadd.f32 %v2507, %v2844
        %v2899 = vadd.f32 %v2508, %v2845
        %v2900 = vadd.f32 %v2509, %v2846
        %v2901 = vadd.f32 %v2510, %v2844
        %v2902 = vadd.f32 %v2511, %v2845
        %v2903 = vadd.f32 %v2512, %v2846
        %v2904 = vadd.f32 %v2513, %v2844
        %v2905 = vadd.f32 %v2514, %v2845
        %v2906 = vadd.f32 %v2515, %v2846
        %v2907 = vadd.f32 %v2516, %v2844
        %v2908 = vadd.f32 %v2517, %v2845
        %v2909 = vadd.f32 %v2518, %v2846
        %v2910 = vadd.f32 %v2519, %v2844
        %v2911 = vadd.f32 %v2520, %v2845
        %v2912 = vadd.f32 %v2521, %v2846
        %v2913 = vadd.f32 %v2522, %v2844
        %v2914 = vadd.f32 %v2523, %v2845
        %v2915 = vadd.f32 %v2524, %v2846
        %v2916 = vadd.f32 %v2525, %v2844
        %v2917 = vadd.f32 %v2526, %v2845
        %v2918 = vadd.f32 %v2527, %v2846
        %v2919 = vadd.f32 %v2528, %v2844
        %v2920 = vadd.f32 %v2529, %v2845
        %v2921 = vadd.f32 %v2530, %v2846
        %v2922 = vadd.f32 %v2531, %v2844
        %v2923 = vadd.f32 %v2532, %v2845
        %v2924 = vadd.f32 %v2533, %v2846
        %v2925 = vadd.f32 %v2534, %v2844
        %v2926 = vadd.f32 %v2535, %v2845
        %v2927 = vadd.f32 %v2536, %v2846
        %v2928 = vadd.f32 %v2537, %v2844
        %v2929 = vadd.f32 %v2538, %v2845
        %v2930 = vadd.f32 %v2539, %v2846
        %v2931 = vadd.f32 %v2540, %v2844
        %v2932 = vadd.f32 %v2541, %v2845
        %v2933 = vadd.f32 %v2542, %v2846
        %v2934 = vadd.f32 %v2543, %v2844
        %v2935 = vadd.f32 %v2544, %v2845
        %v2936 = vadd.f32 %v2545, %v2846
        %v2937 = vadd.f32 %v2546, %v2844
        %v2938 = vadd.f32 %v2547, %v2845
        %v2939 = vadd.f32 %v2548, %v2846
        %v2940 = vadd.f32 %v2549, %v2844
        %v2941 = vadd.f32 %v2550, %v2845
        %v2942 = vadd.f32 %v2551, %v2846
        %v2943 = vadd.f32 %v2552, %v2844
        %v2944 = vadd.f32 %v2553, %v2845
        %v2945 = vadd.f32 %v2554, %v2846
        %v2946 = vadd.f32 %v2555, %v2844
        %v2947 = vadd.f32 %v2556, %v2845
        %v2948 = vadd.f32 %v2557, %v2846
        %v2949 = vadd.f32 %v2558, %v2844
        %v2950 = vadd.f32 %v2559, %v2845
        %v2951 = vadd.f32 %v2560, %v2846
        %v2952 = vadd.f32 %v2561, %v2844
        %v2953 = vadd.f32 %v2562, %v2845
        %v2954 = vadd.f32 %v2563, %v2846
        %v2955 = vadd.f32 %v2564, %v2844
        %v2956 = vadd.f32 %v2565, %v2845
        %v2957 = vadd.f32 %v2566, %v2846
        %v2958 = vadd.f32 %v2567, %v2844
        %v2959 = vadd.f32 %v2568, %v2845
        %v2960 = vadd.f32 %v2569, %v2846
        %v2961 = vadd.f32 %v2570, %v2844
        %v2962 = vadd.f32 %v2571, %v2845
        %v2963 = vadd.f32 %v2572, %v2846
        %v2964 = vadd.f32 %v2573, %v2844
        %v2965 = vadd.f32 %v2574, %v2845
        %v2966 = vadd.f32 %v2575, %v2846
        %v2967 = vadd.f32 %v2576, %v2844
        %v2968 = vadd.f32 %v2577, %v2845
        %v2969 = vadd.f32 %v2578, %v2846
        %v2970 = vadd.f32 %v2579, %v2844
        %v2971 = vadd.f32 %v2580, %v2845
        %v2972 = vadd.f32 %v2581, %v2846
        %v2973 = vadd.f32 %v2582, %v2844
        %v2974 = vadd.f32 %v2583, %v2845
        %v2975 = vadd.f32 %v2584, %v2846
        %v2976 = vadd.f32 %v2585, %v2844
        %v2977 = vadd.f32 %v2586, %v2845
        %v2978 = vadd.f32 %v2587, %v2846
        %v2979 = vadd.f32 %v2588, %v2844
        %v2980 = vadd.f32 %v2589, %v2845
        %v2981 = vadd.f32 %v2590, %v2846
        %v2982 = vadd.f32 %v2591, %v2844
        %v2983 = vadd.f32 %v2592, %v2845
        %v2984 = vadd.f32 %v2593, %v2846
        %v2985 = vadd.f32 %v2594, %v2844
        %v2986 = vadd.f32 %v2595, %v2845
        %v2987 = vadd.f32 %v2596, %v2846
        %v2988 = vadd.f32 %v2597, %v2844
        %v2989 = vadd.f32 %v2598, %v2845
        %v2990 = vadd.f32 %v2599, %v2846
        %v2991 = vadd.f32 %v2600, %v2844
        %v2992 = vadd.f32 %v2601, %v2845
        %v2993 = vadd.f32 %v2602, %v2846
        %v2994 = vadd.f32 %v2603, %v2844
        %v2995 = vadd.f32 %v2604, %v2845
        %v2996 = vadd.f32 %v2605, %v2846
        %v2997 = vadd.f32 %v2606, %v2844
        %v2998 = vadd.f32 %v2607, %v2845
        %v2999 = vadd.f32 %v2608, %v2846
        %v3000 = vadd.f32 %v2609, %v2844
        %v3001 = vadd.f32 %v2610, %v2845
        %v3002 = vadd.f32 %v2611, %v2846
        %v3003 = vadd.f32 %v2612, %v2844
        %v3004 = vadd.f32 %v2613, %v2845
        %v3005 = vadd.f32 %v2614, %v2846
        %v3006 = vadd.f32 %v2615, %v2844
        %v3007 = vadd.f32 %v2616, %v2845
        %v3008 = vadd.f32 %v2617, %v2846
        %v3009 = vadd.f32 %v2618, %v2844
        %v3010 = vadd.f32 %v2619, %v2845
        %v3011 = vadd.f32 %v2620, %v2846
        %v3012 = vadd.f32 %v2621, %v2844
        %v3013 = vadd.f32 %v2622, %v2845
        %v3014 = vadd.f32 %v2623, %v2846
        %v3015 = vadd.f32 %v2624, %v2844
        %v3016 = vadd.f32 %v2625, %v2845
        %v3017 = vadd.f32 %v2626, %v2846
        %v3018 = vadd.f32 %v2627, %v2844
        %v3019 = vadd.f32 %v2628, %v2845
        %v3020 = vadd.f32 %v2629, %v2846
        %v3021 = vadd.f32 %v2630, %v2844
        %v3022 = vadd.f32 %v2631, %v2845
        %v3023 = vadd.f32 %v2632, %v2846
        %v3024 = vadd.f32 %v2633, %v2844
        %v3025 = vadd.f32 %v2634, %v2845
        %v3026 = vadd.f32 %v2635, %v2846
        %v3027 = vadd.f32 %v2636, %v2844
        %v3028 = vadd.f32 %v2637, %v2845
        %v3029 = vadd.f32 %v2638, %v2846
        %v3030 = vadd.f32 %v2639, %v2844
        %v3031 = vadd.f32 %v2640, %v2845
        %v3032 = vadd.f32 %v2641, %v2846
        %v3033 = vadd.f32 %v2642, %v2844
        %v3034 = vadd.f32 %v2643, %v2845
        %v3035 = vadd.f32 %v2644, %v2846
        %v3036 = vadd.f32 %v2645, %v2844
        %v3037 = vadd.f32 %v2646, %v2845
        %v3038 = vadd.f32 %v2647, %v2846
        %v3039 = vadd.f32 %v2648, %v2844
        %v3040 = vadd.f32 %v2649, %v2845
        %v3041 = vadd.f32 %v2650, %v2846
        %v3042 = vadd.f32 %v2651, %v2844
        %v3043 = vadd.f32 %v2652, %v2845
        %v3044 = vadd.f32 %v2653, %v2846
        %v3045 = vadd.f32 %v2654, %v2844
        %v3046 = vadd.f32 %v2655, %v2845
        %v3047 = vadd.f32 %v2656, %v2846
        %v3048 = vadd.f32 %v2657, %v2844
        %v3049 = vadd.f32 %v2658, %v2845
        %v3050 = vadd.f32 %v2659, %v2846
        %v3051 = vadd.f32 %v2660, %v2844
        %v3052 = vadd.f32 %v2661, %v2845
        %v3053 = vadd.f32 %v2662, %v2846
        %v3054 = vadd.f32 %v2663, %v2844
        %v3055 = vadd.f32 %v2664, %v2845
        %v3056 = vadd.f32 %v2665, %v2846
        %v3057 = vadd.f32 %v2666, %v2844
        %v3058 = vadd.f32 %v2667, %v2845
        %v3059 = vadd.f32 %v2668, %v2846
        %v3060 = vadd.f32 %v2669, %v2844
        %v3061 = vadd.f32 %v2670, %v2845
        %v3062 = vadd.f32 %v2671, %v2846
        %v3063 = vadd.f32 %v2672, %v2844
        %v3064 = vadd.f32 %v2673, %v2845
        %v3065 = vadd.f32 %v2674, %v2846
        %v3066 = vadd.f32 %v2675, %v2844
        %v3067 = vadd.f32 %v2676, %v2845
        %v3068 = vadd.f32 %v2677, %v2846
        %v3069 = vadd.f32 %v2678, %v2844
        %v3070 = vadd.f32 %v2679, %v2845
        %v3071 = vadd.f32 %v2680, %v2846
        %v3072 = vadd.f32 %v2681, %v2844
        %v3073 = vadd.f32 %v2682, %v2845
        %v3074 = vadd.f32 %v2683, %v2846
        %v3075 = vadd.f32 %v2684, %v2844
        %v3076 = vadd.f32 %v2685, %v2845
        %v3077 = vadd.f32 %v2686, %v2846
        %v3078 = vadd.f32 %v2687, %v2844
        %v3079 = vadd.f32 %v2688, %v2845
        %v3080 = vadd.f32 %v2689, %v2846
        %v3081 = vadd.f32 %v2690, %v2844
        %v3082 = vadd.f32 %v2691, %v2845
        %v3083 = vadd.f32 %v2692, %v2846
        %v3084 = vadd.f32 %v2693, %v2844
        %v3085 = vadd.f32 %v2694, %v2845
        %v3086 = vadd.f32 %v2695, %v2846
        %v3087 = vadd.f32 %v2696, %v2844
        %v3088 = vadd.f32 %v2697, %v2845
        %v3089 = vadd.f32 %v2698, %v2846
        %v3090 = vadd.f32 %v2699, %v2844
        %v3091 = vadd.f32 %v2700, %v2845
        %v3092 = vadd.f32 %v2701, %v2846
        %v3093 = vadd.f32 %v2702, %v2844
        %v3094 = vadd.f32 %v2703, %v2845
        %v3095 = vadd.f32 %v2704, %v2846
        %v3096 = vadd.f32 %v2705, %v2844
        %v3097 = vadd.f32 %v2706, %v2845
        %v3098 = vadd.f32 %v2707, %v2846
        %v3099 = vadd.f32 %v2708, %v2844
        %v3100 = vadd.f32 %v2709, %v2845
        %v3101 = vadd.f32 %v2710, %v2846
        %v3102 = vadd.f32 %v2711, %v2844
        %v3103 = vadd.f32 %v2712, %v2845
        %v3104 = vadd.f32 %v2713, %v2846
        %v3105 = vadd.f32 %v2714, %v2844
        %v3106 = vadd.f32 %v2715, %v2845
        %v3107 = vadd.f32 %v2716, %v2846
        %v3108 = vadd.f32 %v2717, %v2844
        %v3109 = vadd.f32 %v2718, %v2845
        %v3110 = vadd.f32 %v2719, %v2846
        %v3111 = vadd.f32 %v2720, %v2844
        %v3112 = vadd.f32 %v2721, %v2845
        %v3113 = vadd.f32 %v2722, %v2846
        %v3114 = vadd.f32 %v2723, %v2844
        %v3115 = vadd.f32 %v2724, %v2845
        %v3116 = vadd.f32 %v2725, %v2846
        %v3117 = vadd.f32 %v2726, %v2844
        %v3118 = vadd.f32 %v2727, %v2845
        %v3119 = vadd.f32 %v2728, %v2846
        %v3120 = vadd.f32 %v2729, %v2844
        %v3121 = vadd.f32 %v2730, %v2845
        %v3122 = vadd.f32 %v2731, %v2846
        %v3123 = vadd.f32 %v2732, %v2844
        %v3124 = vadd.f32 %v2733, %v2845
        %v3125 = vadd.f32 %v2734, %v2846
        %v3126 = vadd.f32 %v2735, %v2844
        %v3127 = vadd.f32 %v2736, %v2845
        %v3128 = vadd.f32 %v2737, %v2846
        %v3129 = vadd.f32 %v2738, %v2844
        %v3130 = vadd.f32 %v2739, %v2845
        %v3131 = vadd.f32 %v2740, %v2846
        %v3132 = vadd.f32 %v2741, %v2844
        %v3133 = vadd.f32 %v2742, %v2845
        %v3134 = vadd.f32 %v2743, %v2846
        %v3135 = vadd.f32 %v2744, %v2844
        %v3136 = vadd.f32 %v2745, %v2845
        %v3137 = vadd.f32 %v2746, %v2846
        %v3138 = vadd.f32 %v2747, %v2844
        %v3139 = vadd.f32 %v2748, %v2845
        %v3140 = vadd.f32 %v2749, %v2846
        %v3141 = vadd.f32 %v2750, %v2844
        %v3142 = vadd.f32 %v2751, %v2845
        %v3143 = vadd.f32 %v2752, %v2846
        %v3144 = vadd.f32 %v2753, %v2844
        %v3145 = vadd.f32 %v2754, %v2845
        %v3146 = vadd.f32 %v2755, %v2846
        %v3147 = vadd.f32 %v2756, %v2844
        %v3148 = vadd.f32 %v2757, %v2845
        %v3149 = vadd.f32 %v2758, %v2846
        %v3150 = vadd.f32 %v2759, %v2844
        %v3151 = vadd.f32 %v2760, %v2845
        %v3152 = vadd.f32 %v2761, %v2846
        %v3153 = vadd.f32 %v2762, %v2844
        %v3154 = vadd.f32 %v2763, %v2845
        %v3155 = vadd.f32 %v2764, %v2846
        %v3156 = vadd.f32 %v2765, %v2844
        %v3157 = vadd.f32 %v2766, %v2845
        %v3158 = vadd.f32 %v2767, %v2846
        %v3159 = vadd.f32 %v2768, %v2844
        %v3160 = vadd.f32 %v2769, %v2845
        %v3161 = vadd.f32 %v2770, %v2846
        %v3162 = vadd.f32 %v2771, %v2844
        %v3163 = vadd.f32 %v2772, %v2845
        %v3164 = vadd.f32 %v2773, %v2846
        %v3165 = vadd.f32 %v2774, %v2844
        %v3166 = vadd.f32 %v2775, %v2845
        %v3167 = vadd.f32 %v2776, %v2846
        %v3168 = vadd.f32 %v2777, %v2844
        %v3169 = vadd.f32 %v2778, %v2845
        %v3170 = vadd.f32 %v2779, %v2846
        %v3171 = vadd.f32 %v2780, %v2844
        %v3172 = vadd.f32 %v2781, %v2845
        %v3173 = vadd.f32 %v2782, %v2846
        %v3174 = vadd.f32 %v2783, %v2844
        %v3175 = vadd.f32 %v2784, %v2845
        %v3176 = vadd.f32 %v2785, %v2846
        %v3177 = vadd.f32 %v2786, %v2844
        %v3178 = vadd.f32 %v2787, %v2845
        %v3179 = vadd.f32 %v2788, %v2846
        %v3180 = vadd.f32 %v2789, %v2844
        %v3181 = vadd.f32 %v2790, %v2845
        %v3182 = vadd.f32 %v2791, %v2846
        %v3183 = vadd.f32 %v2792, %v2844
        %v3184 = vadd.f32 %v2793, %v2845
        %v3185 = vadd.f32 %v2794, %v2846
        %v3186 = vadd.f32 %v2795, %v2844
        %v3187 = vadd.f32 %v2796, %v2845
        %v3188 = vadd.f32 %v2797, %v2846
        %v3189 = vadd.f32 %v2798, %v2844
        %v3190 = vadd.f32 %v2799, %v2845
        %v3191 = vadd.f32 %v2800, %v2846
        %v3192 = vadd.f32 %v2801, %v2844
        %v3193 = vadd.f32 %v2802, %v2845
        %v3194 = vadd.f32 %v2803, %v2846
        %v3195 = vadd.f32 %v2804, %v2844
        %v3196 = vadd.f32 %v2805, %v2845
        %v3197 = vadd.f32 %v2806, %v2846
        %v3198 = vadd.f32 %v2807, %v2844
        %v3199 = vadd.f32 %v2808, %v2845
        %v3200 = vadd.f32 %v2809, %v2846
        %v3201 = vadd.f32 %v2810, %v2844
        %v3202 = vadd.f32 %v2811, %v2845
        %v3203 = vadd.f32 %v2812, %v2846
        %v3204 = vadd.f32 %v2813, %v2844
        %v3205 = vadd.f32 %v2814, %v2845
        %v3206 = vadd.f32 %v2815, %v2846
        %v3207 = vadd.f32 %v2816, %v2844
        %v3208 = vadd.f32 %v2817, %v2845
        %v3209 = vadd.f32 %v2818, %v2846
        %v3210 = vadd.f32 %v2819, %v2844
        %v3211 = vadd.f32 %v2820, %v2845
        %v3212 = vadd.f32 %v2821, %v2846
        %v3213 = vadd.f32 %v2822, %v2844
        %v3214 = vadd.f32 %v2823, %v2845
        %v3215 = vadd.f32 %v2824, %v2846
        %v3216 = vadd.f32 %v2825, %v2844
        %v3217 = vadd.f32 %v2826, %v2845
        %v3218 = vadd.f32 %v2827, %v2846
        %v3219 = vadd.f32 %v2828, %v2844
        %v3220 = vadd.f32 %v2829, %v2845
        %v3221 = vadd.f32 %v2830, %v2846
        %v3222 = vadd.f32 %v2831, %v2844
        %v3223 = vadd.f32 %v2832, %v2845
        %v3224 = vadd.f32 %v2833, %v2846
        %v3225 = vadd.f32 %v2834, %v2844
        %v3226 = vadd.f32 %v2835, %v2845
        %v3227 = vadd.f32 %v2836, %v2846
        %v3228 = vadd.f32 %v2837, %v2844
        %v3229 = vadd.f32 %v2838, %v2845
        %v3230 = vadd.f32 %v2839, %v2846
        %v3231 = vadd.f32 %v2840, %v2844
        %v3232 = vadd.f32 %v2841, %v2845
        %v3233 = vadd.f32 %v2842, %v2846
        %v3234 = vtanh.pop %v2850
        %v3235 = vtanh.pop %v2851
        %v3236 = vtanh.pop %v2852
        %v3237 = vtanh.pop %v2853
        %v3238 = vtanh.pop %v2854
        %v3239 = vtanh.pop %v2855
        %v3240 = vtanh.pop %v2856
        %v3241 = vtanh.pop %v2857
        %v3242 = vtanh.pop %v2858
        %v3243 = vtanh.pop %v2859
        %v3244 = vtanh.pop %v2860
        %v3245 = vtanh.pop %v2861
        %v3246 = vtanh.pop %v2862
        %v3247 = vtanh.pop %v2863
        %v3248 = vtanh.pop %v2864
        %v3249 = vtanh.pop %v2865
        %v3250 = vtanh.pop %v2866
        %v3251 = vtanh.pop %v2867
        %v3252 = vtanh.pop %v2868
        %v3253 = vtanh.pop %v2869
        %v3254 = vtanh.pop %v2870
        %v3255 = vtanh.pop %v2871
        %v3256 = vtanh.pop %v2872
        %v3257 = vtanh.pop %v2873
        %v3258 = vtanh.pop %v2874
        %v3259 = vtanh.pop %v2875
        %v3260 = vtanh.pop %v2876
        %v3261 = vtanh.pop %v2877
        %v3262 = vtanh.pop %v2878
        %v3263 = vtanh.pop %v2879
        %v3264 = vtanh.pop %v2880
        %v3265 = vtanh.pop %v2881
        %v3266 = vtanh.pop %v2882
        %v3267 = vtanh.pop %v2883
        %v3268 = vtanh.pop %v2884
        %v3269 = vtanh.pop %v2885
        %v3270 = vtanh.pop %v2886
        %v3271 = vtanh.pop %v2887
        %v3272 = vtanh.pop %v2888
        %v3273 = vtanh.pop %v2889
        %v3274 = vtanh.pop %v2890
        %v3275 = vtanh.pop %v2891
        %v3276 = vtanh.pop %v2892
        %v3277 = vtanh.pop %v2893
        %v3278 = vtanh.pop %v2894
        %v3279 = vtanh.pop %v2895
        %v3280 = vtanh.pop %v2896
        %v3281 = vtanh.pop %v2897
        %v3282 = vtanh.pop %v2898
        %v3283 = vtanh.pop %v2899
        %v3284 = vtanh.pop %v2900
        %v3285 = vtanh.pop %v2901
        %v3286 = vtanh.pop %v2902
        %v3287 = vtanh.pop %v2903
        %v3288 = vtanh.pop %v2904
        %v3289 = vtanh.pop %v2905
        %v3290 = vtanh.pop %v2906
        %v3291 = vtanh.pop %v2907
        %v3292 = vtanh.pop %v2908
        %v3293 = vtanh.pop %v2909
        %v3294 = vtanh.pop %v2910
        %v3295 = vtanh.pop %v2911
        %v3296 = vtanh.pop %v2912
        %v3297 = vtanh.pop %v2913
        %v3298 = vtanh.pop %v2914
        %v3299 = vtanh.pop %v2915
        %v3300 = vtanh.pop %v2916
        %v3301 = vtanh.pop %v2917
        %v3302 = vtanh.pop %v2918
        %v3303 = vtanh.pop %v2919
        %v3304 = vtanh.pop %v2920
        %v3305 = vtanh.pop %v2921
        %v3306 = vtanh.pop %v2922
        %v3307 = vtanh.pop %v2923
        %v3308 = vtanh.pop %v2924
        %v3309 = vtanh.pop %v2925
        %v3310 = vtanh.pop %v2926
        %v3311 = vtanh.pop %v2927
        %v3312 = vtanh.pop %v2928
        %v3313 = vtanh.pop %v2929
        %v3314 = vtanh.pop %v2930
        %v3315 = vtanh.pop %v2931
        %v3316 = vtanh.pop %v2932
        %v3317 = vtanh.pop %v2933
        %v3318 = vtanh.pop %v2934
        %v3319 = vtanh.pop %v2935
        %v3320 = vtanh.pop %v2936
        %v3321 = vtanh.pop %v2937
        %v3322 = vtanh.pop %v2938
        %v3323 = vtanh.pop %v2939
        %v3324 = vtanh.pop %v2940
        %v3325 = vtanh.pop %v2941
        %v3326 = vtanh.pop %v2942
        %v3327 = vtanh.pop %v2943
        %v3328 = vtanh.pop %v2944
        %v3329 = vtanh.pop %v2945
        %v3330 = vtanh.pop %v2946
        %v3331 = vtanh.pop %v2947
        %v3332 = vtanh.pop %v2948
        %v3333 = vtanh.pop %v2949
        %v3334 = vtanh.pop %v2950
        %v3335 = vtanh.pop %v2951
        %v3336 = vtanh.pop %v2952
        %v3337 = vtanh.pop %v2953
        %v3338 = vtanh.pop %v2954
        %v3339 = vtanh.pop %v2955
        %v3340 = vtanh.pop %v2956
        %v3341 = vtanh.pop %v2957
        %v3342 = vtanh.pop %v2958
        %v3343 = vtanh.pop %v2959
        %v3344 = vtanh.pop %v2960
        %v3345 = vtanh.pop %v2961
        %v3346 = vtanh.pop %v2962
        %v3347 = vtanh.pop %v2963
        %v3348 = vtanh.pop %v2964
        %v3349 = vtanh.pop %v2965
        %v3350 = vtanh.pop %v2966
        %v3351 = vtanh.pop %v2967
        %v3352 = vtanh.pop %v2968
        %v3353 = vtanh.pop %v2969
        %v3354 = vtanh.pop %v2970
        %v3355 = vtanh.pop %v2971
        %v3356 = vtanh.pop %v2972
        %v3357 = vtanh.pop %v2973
        %v3358 = vtanh.pop %v2974
        %v3359 = vtanh.pop %v2975
        %v3360 = vtanh.pop %v2976
        %v3361 = vtanh.pop %v2977
        %v3362 = vtanh.pop %v2978
        %v3363 = vtanh.pop %v2979
        %v3364 = vtanh.pop %v2980
        %v3365 = vtanh.pop %v2981
        %v3366 = vtanh.pop %v2982
        %v3367 = vtanh.pop %v2983
        %v3368 = vtanh.pop %v2984
        %v3369 = vtanh.pop %v2985
        %v3370 = vtanh.pop %v2986
        %v3371 = vtanh.pop %v2987
        %v3372 = vtanh.pop %v2988
        %v3373 = vtanh.pop %v2989
        %v3374 = vtanh.pop %v2990
        %v3375 = vtanh.pop %v2991
        %v3376 = vtanh.pop %v2992
        %v3377 = vtanh.pop %v2993
        %v3378 = vtanh.pop %v2994
        %v3379 = vtanh.pop %v2995
        %v3380 = vtanh.pop %v2996
        %v3381 = vtanh.pop %v2997
        %v3382 = vtanh.pop %v2998
        %v3383 = vtanh.pop %v2999
        %v3384 = vtanh.pop %v3000
        %v3385 = vtanh.pop %v3001
        %v3386 = vtanh.pop %v3002
        %v3387 = vtanh.pop %v3003
        %v3388 = vtanh.pop %v3004
        %v3389 = vtanh.pop %v3005
        %v3390 = vtanh.pop %v3006
        %v3391 = vtanh.pop %v3007
        %v3392 = vtanh.pop %v3008
        %v3393 = vtanh.pop %v3009
        %v3394 = vtanh.pop %v3010
        %v3395 = vtanh.pop %v3011
        %v3396 = vtanh.pop %v3012
        %v3397 = vtanh.pop %v3013
        %v3398 = vtanh.pop %v3014
        %v3399 = vtanh.pop %v3015
        %v3400 = vtanh.pop %v3016
        %v3401 = vtanh.pop %v3017
        %v3402 = vtanh.pop %v3018
        %v3403 = vtanh.pop %v3019
        %v3404 = vtanh.pop %v3020
        %v3405 = vtanh.pop %v3021
        %v3406 = vtanh.pop %v3022
        %v3407 = vtanh.pop %v3023
        %v3408 = vtanh.pop %v3024
        %v3409 = vtanh.pop %v3025
        %v3410 = vtanh.pop %v3026
        %v3411 = vtanh.pop %v3027
        %v3412 = vtanh.pop %v3028
        %v3413 = vtanh.pop %v3029
        %v3414 = vtanh.pop %v3030
        %v3415 = vtanh.pop %v3031
        %v3416 = vtanh.pop %v3032
        %v3417 = vtanh.pop %v3033
        %v3418 = vtanh.pop %v3034
        %v3419 = vtanh.pop %v3035
        %v3420 = vtanh.pop %v3036
        %v3421 = vtanh.pop %v3037
        %v3422 = vtanh.pop %v3038
        %v3423 = vtanh.pop %v3039
        %v3424 = vtanh.pop %v3040
        %v3425 = vtanh.pop %v3041
        %v3426 = vtanh.pop %v3042
        %v3427 = vtanh.pop %v3043
        %v3428 = vtanh.pop %v3044
        %v3429 = vtanh.pop %v3045
        %v3430 = vtanh.pop %v3046
        %v3431 = vtanh.pop %v3047
        %v3432 = vtanh.pop %v3048
        %v3433 = vtanh.pop %v3049
        %v3434 = vtanh.pop %v3050
        %v3435 = vtanh.pop %v3051
        %v3436 = vtanh.pop %v3052
        %v3437 = vtanh.pop %v3053
        %v3438 = vtanh.pop %v3054
        %v3439 = vtanh.pop %v3055
        %v3440 = vtanh.pop %v3056
        %v3441 = vtanh.pop %v3057
        %v3442 = vtanh.pop %v3058
        %v3443 = vtanh.pop %v3059
        %v3444 = vtanh.pop %v3060
        %v3445 = vtanh.pop %v3061
        %v3446 = vtanh.pop %v3062
        %v3447 = vtanh.pop %v3063
        %v3448 = vtanh.pop %v3064
        %v3449 = vtanh.pop %v3065
        %v3450 = vtanh.pop %v3066
        %v3451 = vtanh.pop %v3067
        %v3452 = vtanh.pop %v3068
        %v3453 = vtanh.pop %v3069
        %v3454 = vtanh.pop %v3070
        %v3455 = vtanh.pop %v3071
        %v3456 = vtanh.pop %v3072
        %v3457 = vtanh.pop %v3073
        %v3458 = vtanh.pop %v3074
        %v3459 = vtanh.pop %v3075
        %v3460 = vtanh.pop %v3076
        %v3461 = vtanh.pop %v3077
        %v3462 = vtanh.pop %v3078
        %v3463 = vtanh.pop %v3079
        %v3464 = vtanh.pop %v3080
        %v3465 = vtanh.pop %v3081
        %v3466 = vtanh.pop %v3082
        %v3467 = vtanh.pop %v3083
        %v3468 = vtanh.pop %v3084
        %v3469 = vtanh.pop %v3085
        %v3470 = vtanh.pop %v3086
        %v3471 = vtanh.pop %v3087
        %v3472 = vtanh.pop %v3088
        %v3473 = vtanh.pop %v3089
        %v3474 = vtanh.pop %v3090
        %v3475 = vtanh.pop %v3091
        %v3476 = vtanh.pop %v3092
        %v3477 = vtanh.pop %v3093
        %v3478 = vtanh.pop %v3094
        %v3479 = vtanh.pop %v3095
        %v3480 = vtanh.pop %v3096
        %v3481 = vtanh.pop %v3097
        %v3482 = vtanh.pop %v3098
        %v3483 = vtanh.pop %v3099
        %v3484 = vtanh.pop %v3100
        %v3485 = vtanh.pop %v3101
        %v3486 = vtanh.pop %v3102
        %v3487 = vtanh.pop %v3103
        %v3488 = vtanh.pop %v3104
        %v3489 = vtanh.pop %v3105
        %v3490 = vtanh.pop %v3106
        %v3491 = vtanh.pop %v3107
        %v3492 = vtanh.pop %v3108
        %v3493 = vtanh.pop %v3109
        %v3494 = vtanh.pop %v3110
        %v3495 = vtanh.pop %v3111
        %v3496 = vtanh.pop %v3112
        %v3497 = vtanh.pop %v3113
        %v3498 = vtanh.pop %v3114
        %v3499 = vtanh.pop %v3115
        %v3500 = vtanh.pop %v3116
        %v3501 = vtanh.pop %v3117
        %v3502 = vtanh.pop %v3118
        %v3503 = vtanh.pop %v3119
        %v3504 = vtanh.pop %v3120
        %v3505 = vtanh.pop %v3121
        %v3506 = vtanh.pop %v3122
        %v3507 = vtanh.pop %v3123
        %v3508 = vtanh.pop %v3124
        %v3509 = vtanh.pop %v3125
        %v3510 = vtanh.pop %v3126
        %v3511 = vtanh.pop %v3127
        %v3512 = vtanh.pop %v3128
        %v3513 = vtanh.pop %v3129
        %v3514 = vtanh.pop %v3130
        %v3515 = vtanh.pop %v3131
        %v3516 = vtanh.pop %v3132
        %v3517 = vtanh.pop %v3133
        %v3518 = vtanh.pop %v3134
        %v3519 = vtanh.pop %v3135
        %v3520 = vtanh.pop %v3136
        %v3521 = vtanh.pop %v3137
        %v3522 = vtanh.pop %v3138
        %v3523 = vtanh.pop %v3139
        %v3524 = vtanh.pop %v3140
        %v3525 = vtanh.pop %v3141
        %v3526 = vtanh.pop %v3142
        %v3527 = vtanh.pop %v3143
        %v3528 = vtanh.pop %v3144
        %v3529 = vtanh.pop %v3145
        %v3530 = vtanh.pop %v3146
        %v3531 = vtanh.pop %v3147
        %v3532 = vtanh.pop %v3148
        %v3533 = vtanh.pop %v3149
        %v3534 = vtanh.pop %v3150
        %v3535 = vtanh.pop %v3151
        %v3536 = vtanh.pop %v3152
        %v3537 = vtanh.pop %v3153
        %v3538 = vtanh.pop %v3154
        %v3539 = vtanh.pop %v3155
        %v3540 = vtanh.pop %v3156
        %v3541 = vtanh.pop %v3157
        %v3542 = vtanh.pop %v3158
        %v3543 = vtanh.pop %v3159
        %v3544 = vtanh.pop %v3160
        %v3545 = vtanh.pop %v3161
        %v3546 = vtanh.pop %v3162
        %v3547 = vtanh.pop %v3163
        %v3548 = vtanh.pop %v3164
        %v3549 = vtanh.pop %v3165
        %v3550 = vtanh.pop %v3166
        %v3551 = vtanh.pop %v3167
        %v3552 = vtanh.pop %v3168
        %v3553 = vtanh.pop %v3169
        %v3554 = vtanh.pop %v3170
        %v3555 = vtanh.pop %v3171
        %v3556 = vtanh.pop %v3172
        %v3557 = vtanh.pop %v3173
        %v3558 = vtanh.pop %v3174
        %v3559 = vtanh.pop %v3175
        %v3560 = vtanh.pop %v3176
        %v3561 = vtanh.pop %v3177
        %v3562 = vtanh.pop %v3178
        %v3563 = vtanh.pop %v3179
        %v3564 = vtanh.pop %v3180
        %v3565 = vtanh.pop %v3181
        %v3566 = vtanh.pop %v3182
        %v3567 = vtanh.pop %v3183
        %v3568 = vtanh.pop %v3184
        %v3569 = vtanh.pop %v3185
        %v3570 = vtanh.pop %v3186
        %v3571 = vtanh.pop %v3187
        %v3572 = vtanh.pop %v3188
        %v3573 = vtanh.pop %v3189
        %v3574 = vtanh.pop %v3190
        %v3575 = vtanh.pop %v3191
        %v3576 = vtanh.pop %v3192
        %v3577 = vtanh.pop %v3193
        %v3578 = vtanh.pop %v3194
        %v3579 = vtanh.pop %v3195
        %v3580 = vtanh.pop %v3196
        %v3581 = vtanh.pop %v3197
        %v3582 = vtanh.pop %v3198
        %v3583 = vtanh.pop %v3199
        %v3584 = vtanh.pop %v3200
        %v3585 = vtanh.pop %v3201
        %v3586 = vtanh.pop %v3202
        %v3587 = vtanh.pop %v3203
        %v3588 = vtanh.pop %v3204
        %v3589 = vtanh.pop %v3205
        %v3590 = vtanh.pop %v3206
        %v3591 = vtanh.pop %v3207
        %v3592 = vtanh.pop %v3208
        %v3593 = vtanh.pop %v3209
        %v3594 = vtanh.pop %v3210
        %v3595 = vtanh.pop %v3211
        %v3596 = vtanh.pop %v3212
        %v3597 = vtanh.pop %v3213
        %v3598 = vtanh.pop %v3214
        %v3599 = vtanh.pop %v3215
        %v3600 = vtanh.pop %v3216
        %v3601 = vtanh.pop %v3217
        %v3602 = vtanh.pop %v3218
        %v3603 = vtanh.pop %v3219
        %v3604 = vtanh.pop %v3220
        %v3605 = vtanh.pop %v3221
        %v3606 = vtanh.pop %v3222
        %v3607 = vtanh.pop %v3223
        %v3608 = vtanh.pop %v3224
        %v3609 = vtanh.pop %v3225
        %v3610 = vtanh.pop %v3226
        %v3611 = vtanh.pop %v3227
        %v3612 = vtanh.pop %v3228
        %v3613 = vtanh.pop %v3229
        %v3614 = vtanh.pop %v3230
        %v3615 = vtanh.pop %v3231
        %v3616 = vtanh.pop %v3232
        %v3617 = vtanh.pop %v3233
        %v3618 = vsub.f32 %v3235, %v3234
        %v3619 = vsub.f32 %v3238, %v3237
        %v3620 = vsub.f32 %v3241, %v3240
        %v3621 = vsub.f32 %v3244, %v3243
        %v3622 = vsub.f32 %v3247, %v3246
        %v3623 = vsub.f32 %v3250, %v3249
        %v3624 = vsub.f32 %v3253, %v3252
        %v3625 = vsub.f32 %v3256, %v3255
        %v3626 = vsub.f32 %v3259, %v3258
        %v3627 = vsub.f32 %v3262, %v3261
        %v3628 = vsub.f32 %v3265, %v3264
        %v3629 = vsub.f32 %v3268, %v3267
        %v3630 = vsub.f32 %v3271, %v3270
        %v3631 = vsub.f32 %v3274, %v3273
        %v3632 = vsub.f32 %v3277, %v3276
        %v3633 = vsub.f32 %v3280, %v3279
        %v3634 = vsub.f32 %v3283, %v3282
        %v3635 = vsub.f32 %v3286, %v3285
        %v3636 = vsub.f32 %v3289, %v3288
        %v3637 = vsub.f32 %v3292, %v3291
        %v3638 = vsub.f32 %v3295, %v3294
        %v3639 = vsub.f32 %v3298, %v3297
        %v3640 = vsub.f32 %v3301, %v3300
        %v3641 = vsub.f32 %v3304, %v3303
        %v3642 = vsub.f32 %v3307, %v3306
        %v3643 = vsub.f32 %v3310, %v3309
        %v3644 = vsub.f32 %v3313, %v3312
        %v3645 = vsub.f32 %v3316, %v3315
        %v3646 = vsub.f32 %v3319, %v3318
        %v3647 = vsub.f32 %v3322, %v3321
        %v3648 = vsub.f32 %v3325, %v3324
        %v3649 = vsub.f32 %v3328, %v3327
        %v3650 = vsub.f32 %v3331, %v3330
        %v3651 = vsub.f32 %v3334, %v3333
        %v3652 = vsub.f32 %v3337, %v3336
        %v3653 = vsub.f32 %v3340, %v3339
        %v3654 = vsub.f32 %v3343, %v3342
        %v3655 = vsub.f32 %v3346, %v3345
        %v3656 = vsub.f32 %v3349, %v3348
        %v3657 = vsub.f32 %v3352, %v3351
        %v3658 = vsub.f32 %v3355, %v3354
        %v3659 = vsub.f32 %v3358, %v3357
        %v3660 = vsub.f32 %v3361, %v3360
        %v3661 = vsub.f32 %v3364, %v3363
        %v3662 = vsub.f32 %v3367, %v3366
        %v3663 = vsub.f32 %v3370, %v3369
        %v3664 = vsub.f32 %v3373, %v3372
        %v3665 = vsub.f32 %v3376, %v3375
        %v3666 = vsub.f32 %v3379, %v3378
        %v3667 = vsub.f32 %v3382, %v3381
        %v3668 = vsub.f32 %v3385, %v3384
        %v3669 = vsub.f32 %v3388, %v3387
        %v3670 = vsub.f32 %v3391, %v3390
        %v3671 = vsub.f32 %v3394, %v3393
        %v3672 = vsub.f32 %v3397, %v3396
        %v3673 = vsub.f32 %v3400, %v3399
        %v3674 = vsub.f32 %v3403, %v3402
        %v3675 = vsub.f32 %v3406, %v3405
        %v3676 = vsub.f32 %v3409, %v3408
        %v3677 = vsub.f32 %v3412, %v3411
        %v3678 = vsub.f32 %v3415, %v3414
        %v3679 = vsub.f32 %v3418, %v3417
        %v3680 = vsub.f32 %v3421, %v3420
        %v3681 = vsub.f32 %v3424, %v3423
        %v3682 = vsub.f32 %v3427, %v3426
        %v3683 = vsub.f32 %v3430, %v3429
        %v3684 = vsub.f32 %v3433, %v3432
        %v3685 = vsub.f32 %v3436, %v3435
        %v3686 = vsub.f32 %v3439, %v3438
        %v3687 = vsub.f32 %v3442, %v3441
        %v3688 = vsub.f32 %v3445, %v3444
        %v3689 = vsub.f32 %v3448, %v3447
        %v3690 = vsub.f32 %v3451, %v3450
        %v3691 = vsub.f32 %v3454, %v3453
        %v3692 = vsub.f32 %v3457, %v3456
        %v3693 = vsub.f32 %v3460, %v3459
        %v3694 = vsub.f32 %v3463, %v3462
        %v3695 = vsub.f32 %v3466, %v3465
        %v3696 = vsub.f32 %v3469, %v3468
        %v3697 = vsub.f32 %v3472, %v3471
        %v3698 = vsub.f32 %v3475, %v3474
        %v3699 = vsub.f32 %v3478, %v3477
        %v3700 = vsub.f32 %v3481, %v3480
        %v3701 = vsub.f32 %v3484, %v3483
        %v3702 = vsub.f32 %v3487, %v3486
        %v3703 = vsub.f32 %v3490, %v3489
        %v3704 = vsub.f32 %v3493, %v3492
        %v3705 = vsub.f32 %v3496, %v3495
        %v3706 = vsub.f32 %v3499, %v3498
        %v3707 = vsub.f32 %v3502, %v3501
        %v3708 = vsub.f32 %v3505, %v3504
        %v3709 = vsub.f32 %v3508, %v3507
        %v3710 = vsub.f32 %v3511, %v3510
        %v3711 = vsub.f32 %v3514, %v3513
        %v3712 = vsub.f32 %v3517, %v3516
        %v3713 = vsub.f32 %v3520, %v3519
        %v3714 = vsub.f32 %v3523, %v3522
        %v3715 = vsub.f32 %v3526, %v3525
        %v3716 = vsub.f32 %v3529, %v3528
        %v3717 = vsub.f32 %v3532, %v3531
        %v3718 = vsub.f32 %v3535, %v3534
        %v3719 = vsub.f32 %v3538, %v3537
        %v3720 = vsub.f32 %v3541, %v3540
        %v3721 = vsub.f32 %v3544, %v3543
        %v3722 = vsub.f32 %v3547, %v3546
        %v3723 = vsub.f32 %v3550, %v3549
        %v3724 = vsub.f32 %v3553, %v3552
        %v3725 = vsub.f32 %v3556, %v3555
        %v3726 = vsub.f32 %v3559, %v3558
        %v3727 = vsub.f32 %v3562, %v3561
        %v3728 = vsub.f32 %v3565, %v3564
        %v3729 = vsub.f32 %v3568, %v3567
        %v3730 = vsub.f32 %v3571, %v3570
        %v3731 = vsub.f32 %v3574, %v3573
        %v3732 = vsub.f32 %v3577, %v3576
        %v3733 = vsub.f32 %v3580, %v3579
        %v3734 = vsub.f32 %v3583, %v3582
        %v3735 = vsub.f32 %v3586, %v3585
        %v3736 = vsub.f32 %v3589, %v3588
        %v3737 = vsub.f32 %v3592, %v3591
        %v3738 = vsub.f32 %v3595, %v3594
        %v3739 = vsub.f32 %v3598, %v3597
        %v3740 = vsub.f32 %v3601, %v3600
        %v3741 = vsub.f32 %v3604, %v3603
        %v3742 = vsub.f32 %v3607, %v3606
        %v3743 = vsub.f32 %v3610, %v3609
        %v3744 = vsub.f32 %v3613, %v3612
        %v3745 = vsub.f32 %v3616, %v3615
        %v3746 = vld [vmem:[%s3] sm:$0xff]
        %v3747 = vld [vmem:[%s3 + $0x8] sm:$0xff]
        %v3748 = vld [vmem:[%s3 + $0x10] sm:$0xff]
        %v3749 = vld [vmem:[%s3 + $0x18] sm:$0xff]
        %v3750 = vld [vmem:[%s3 + $0x20] sm:$0xff]
        %v3751 = vld [vmem:[%s3 + $0x28] sm:$0xff]
        %v3752 = vld [vmem:[%s3 + $0x30] sm:$0xff]
        %v3753 = vld [vmem:[%s3 + $0x38] sm:$0xff]
        %v3754 = vld [vmem:[%s3 + $0x40] sm:$0xff]
        %v3755 = vld [vmem:[%s3 + $0x48] sm:$0xff]
        %v3756 = vld [vmem:[%s3 + $0x50] sm:$0xff]
        %v3757 = vld [vmem:[%s3 + $0x58] sm:$0xff]
        %v3758 = vld [vmem:[%s3 + $0x60] sm:$0xff]
        %v3759 = vld [vmem:[%s3 + $0x68] sm:$0xff]
        %v3760 = vld [vmem:[%s3 + $0x70] sm:$0xff]
        %v3761 = vld [vmem:[%s3 + $0x78] sm:$0xff]
        %v3762 = vld [vmem:[%s4] sm:$0x1]
        %v3764 = vperm.slane %v3762, 0
        %3766 = vmatpush.msra.mxu0 %v3761
        %3767 = vmatpush.msra.mxu0 %v3760
        %3768 = vmatpush.msra.mxu0 %v3759
        %3769 = vmatpush.msra.mxu0 %v3758
        %3770 = vmatpush.msra.mxu0 %v3757
        %3771 = vmatpush.msra.mxu0 %v3756
        %3772 = vmatpush.msra.mxu0 %v3755
        %3773 = vmatpush.msra.mxu0 %v3754
        %3774 = vmatpush.msra.mxu0 %v3753
        %3775 = vmatpush.msra.mxu0 %v3752
        %3776 = vmatpush.msra.mxu0 %v3751
        %3777 = vmatpush.msra.mxu0 %v3750
        %3778 = vmatpush.msra.mxu0 %v3749
        %3779 = vmatpush.msra.mxu0 %v3748
        %3780 = vmatpush.msra.mxu0 %v3747
        %3781 = vmatpush.msra.mxu0 %v3746
        %3782 = vmatmul.f32.gmra.mxu0 %v3236
        %v3783 = vpop.f32.mrf.mxu0
        %v3784 = vadd.f32 %v3764, %v3783
        %3785 = vmatmul.f32.gmra.mxu0 %v3239
        %v3786 = vpop.f32.mrf.mxu0
        %v3787 = vadd.f32 %v3764, %v3786
        %3788 = vmatmul.f32.gmra.mxu0 %v3242
        %v3789 = vpop.f32.mrf.mxu0
        %v3790 = vadd.f32 %v3764, %v3789
        %3791 = vmatmul.f32.gmra.mxu0 %v3245
        %v3792 = vpop.f32.mrf.mxu0
        %v3793 = vadd.f32 %v3764, %v3792
        %3794 = vmatmul.f32.gmra.mxu0 %v3248
        %v3795 = vpop.f32.mrf.mxu0
        %v3796 = vadd.f32 %v3764, %v3795
        %3797 = vmatmul.f32.gmra.mxu0 %v3251
        %v3798 = vpop.f32.mrf.mxu0
        %v3799 = vadd.f32 %v3764, %v3798
        %3800 = vmatmul.f32.gmra.mxu0 %v3254
        %v3801 = vpop.f32.mrf.mxu0
        %v3802 = vadd.f32 %v3764, %v3801
        %3803 = vmatmul.f32.gmra.mxu0 %v3257
        %v3804 = vpop.f32.mrf.mxu0
        %v3805 = vadd.f32 %v3764, %v3804
        %3806 = vmatmul.f32.gmra.mxu0 %v3260
        %v3807 = vpop.f32.mrf.mxu0
        %v3808 = vadd.f32 %v3764, %v3807
        %3809 = vmatmul.f32.gmra.mxu0 %v3263
        %v3810 = vpop.f32.mrf.mxu0
        %v3811 = vadd.f32 %v3764, %v3810
        %3812 = vmatmul.f32.gmra.mxu0 %v3266
        %v3813 = vpop.f32.mrf.mxu0
        %v3814 = vadd.f32 %v3764, %v3813
        %3815 = vmatmul.f32.gmra.mxu0 %v3269
        %v3816 = vpop.f32.mrf.mxu0
        %v3817 = vadd.f32 %v3764, %v3816
        %3818 = vmatmul.f32.gmra.mxu0 %v3272
        %v3819 = vpop.f32.mrf.mxu0
        %v3820 = vadd.f32 %v3764, %v3819
        %3821 = vmatmul.f32.gmra.mxu0 %v3275
        %v3822 = vpop.f32.mrf.mxu0
        %v3823 = vadd.f32 %v3764, %v3822
        %3824 = vmatmul.f32.gmra.mxu0 %v3278
        %v3825 = vpop.f32.mrf.mxu0
        %v3826 = vadd.f32 %v3764, %v3825
        %3827 = vmatmul.f32.gmra.mxu0 %v3281
        %v3828 = vpop.f32.mrf.mxu0
        %v3829 = vadd.f32 %v3764, %v3828
        %3830 = vmatmul.f32.gmra.mxu0 %v3284
        %v3831 = vpop.f32.mrf.mxu0
        %v3832 = vadd.f32 %v3764, %v3831
        %3833 = vmatmul.f32.gmra.mxu0 %v3287
        %v3834 = vpop.f32.mrf.mxu0
        %v3835 = vadd.f32 %v3764, %v3834
        %3836 = vmatmul.f32.gmra.mxu0 %v3290
        %v3837 = vpop.f32.mrf.mxu0
        %v3838 = vadd.f32 %v3764, %v3837
        %3839 = vmatmul.f32.gmra.mxu0 %v3293
        %v3840 = vpop.f32.mrf.mxu0
        %v3841 = vadd.f32 %v3764, %v3840
        %3842 = vmatmul.f32.gmra.mxu0 %v3296
        %v3843 = vpop.f32.mrf.mxu0
        %v3844 = vadd.f32 %v3764, %v3843
        %3845 = vmatmul.f32.gmra.mxu0 %v3299
        %v3846 = vpop.f32.mrf.mxu0
        %v3847 = vadd.f32 %v3764, %v3846
        %3848 = vmatmul.f32.gmra.mxu0 %v3302
        %v3849 = vpop.f32.mrf.mxu0
        %v3850 = vadd.f32 %v3764, %v3849
        %3851 = vmatmul.f32.gmra.mxu0 %v3305
        %v3852 = vpop.f32.mrf.mxu0
        %v3853 = vadd.f32 %v3764, %v3852
        %3854 = vmatmul.f32.gmra.mxu0 %v3308
        %v3855 = vpop.f32.mrf.mxu0
        %v3856 = vadd.f32 %v3764, %v3855
        %3857 = vmatmul.f32.gmra.mxu0 %v3311
        %v3858 = vpop.f32.mrf.mxu0
        %v3859 = vadd.f32 %v3764, %v3858
        %3860 = vmatmul.f32.gmra.mxu0 %v3314
        %v3861 = vpop.f32.mrf.mxu0
        %v3862 = vadd.f32 %v3764, %v3861
        %3863 = vmatmul.f32.gmra.mxu0 %v3317
        %v3864 = vpop.f32.mrf.mxu0
        %v3865 = vadd.f32 %v3764, %v3864
        %3866 = vmatmul.f32.gmra.mxu0 %v3320
        %v3867 = vpop.f32.mrf.mxu0
        %v3868 = vadd.f32 %v3764, %v3867
        %3869 = vmatmul.f32.gmra.mxu0 %v3323
        %v3870 = vpop.f32.mrf.mxu0
        %v3871 = vadd.f32 %v3764, %v3870
        %3872 = vmatmul.f32.gmra.mxu0 %v3326
        %v3873 = vpop.f32.mrf.mxu0
        %v3874 = vadd.f32 %v3764, %v3873
        %3875 = vmatmul.f32.gmra.mxu0 %v3329
        %v3876 = vpop.f32.mrf.mxu0
        %v3877 = vadd.f32 %v3764, %v3876
        %3878 = vmatmul.f32.gmra.mxu0 %v3332
        %v3879 = vpop.f32.mrf.mxu0
        %v3880 = vadd.f32 %v3764, %v3879
        %3881 = vmatmul.f32.gmra.mxu0 %v3335
        %v3882 = vpop.f32.mrf.mxu0
        %v3883 = vadd.f32 %v3764, %v3882
        %3884 = vmatmul.f32.gmra.mxu0 %v3338
        %v3885 = vpop.f32.mrf.mxu0
        %v3886 = vadd.f32 %v3764, %v3885
        %3887 = vmatmul.f32.gmra.mxu0 %v3341
        %v3888 = vpop.f32.mrf.mxu0
        %v3889 = vadd.f32 %v3764, %v3888
        %3890 = vmatmul.f32.gmra.mxu0 %v3344
        %v3891 = vpop.f32.mrf.mxu0
        %v3892 = vadd.f32 %v3764, %v3891
        %3893 = vmatmul.f32.gmra.mxu0 %v3347
        %v3894 = vpop.f32.mrf.mxu0
        %v3895 = vadd.f32 %v3764, %v3894
        %3896 = vmatmul.f32.gmra.mxu0 %v3350
        %v3897 = vpop.f32.mrf.mxu0
        %v3898 = vadd.f32 %v3764, %v3897
        %3899 = vmatmul.f32.gmra.mxu0 %v3353
        %v3900 = vpop.f32.mrf.mxu0
        %v3901 = vadd.f32 %v3764, %v3900
        %3902 = vmatmul.f32.gmra.mxu0 %v3356
        %v3903 = vpop.f32.mrf.mxu0
        %v3904 = vadd.f32 %v3764, %v3903
        %3905 = vmatmul.f32.gmra.mxu0 %v3359
        %v3906 = vpop.f32.mrf.mxu0
        %v3907 = vadd.f32 %v3764, %v3906
        %3908 = vmatmul.f32.gmra.mxu0 %v3362
        %v3909 = vpop.f32.mrf.mxu0
        %v3910 = vadd.f32 %v3764, %v3909
        %3911 = vmatmul.f32.gmra.mxu0 %v3365
        %v3912 = vpop.f32.mrf.mxu0
        %v3913 = vadd.f32 %v3764, %v3912
        %3914 = vmatmul.f32.gmra.mxu0 %v3368
        %v3915 = vpop.f32.mrf.mxu0
        %v3916 = vadd.f32 %v3764, %v3915
        %3917 = vmatmul.f32.gmra.mxu0 %v3371
        %v3918 = vpop.f32.mrf.mxu0
        %v3919 = vadd.f32 %v3764, %v3918
        %3920 = vmatmul.f32.gmra.mxu0 %v3374
        %v3921 = vpop.f32.mrf.mxu0
        %v3922 = vadd.f32 %v3764, %v3921
        %3923 = vmatmul.f32.gmra.mxu0 %v3377
        %v3924 = vpop.f32.mrf.mxu0
        %v3925 = vadd.f32 %v3764, %v3924
        %3926 = vmatmul.f32.gmra.mxu0 %v3380
        %v3927 = vpop.f32.mrf.mxu0
        %v3928 = vadd.f32 %v3764, %v3927
        %3929 = vmatmul.f32.gmra.mxu0 %v3383
        %v3930 = vpop.f32.mrf.mxu0
        %v3931 = vadd.f32 %v3764, %v3930
        %3932 = vmatmul.f32.gmra.mxu0 %v3386
        %v3933 = vpop.f32.mrf.mxu0
        %v3934 = vadd.f32 %v3764, %v3933
        %3935 = vmatmul.f32.gmra.mxu0 %v3389
        %v3936 = vpop.f32.mrf.mxu0
        %v3937 = vadd.f32 %v3764, %v3936
        %3938 = vmatmul.f32.gmra.mxu0 %v3392
        %v3939 = vpop.f32.mrf.mxu0
        %v3940 = vadd.f32 %v3764, %v3939
        %3941 = vmatmul.f32.gmra.mxu0 %v3395
        %v3942 = vpop.f32.mrf.mxu0
        %v3943 = vadd.f32 %v3764, %v3942
        %3944 = vmatmul.f32.gmra.mxu0 %v3398
        %v3945 = vpop.f32.mrf.mxu0
        %v3946 = vadd.f32 %v3764, %v3945
        %3947 = vmatmul.f32.gmra.mxu0 %v3401
        %v3948 = vpop.f32.mrf.mxu0
        %v3949 = vadd.f32 %v3764, %v3948
        %3950 = vmatmul.f32.gmra.mxu0 %v3404
        %v3951 = vpop.f32.mrf.mxu0
        %v3952 = vadd.f32 %v3764, %v3951
        %3953 = vmatmul.f32.gmra.mxu0 %v3407
        %v3954 = vpop.f32.mrf.mxu0
        %v3955 = vadd.f32 %v3764, %v3954
        %3956 = vmatmul.f32.gmra.mxu0 %v3410
        %v3957 = vpop.f32.mrf.mxu0
        %v3958 = vadd.f32 %v3764, %v3957
        %3959 = vmatmul.f32.gmra.mxu0 %v3413
        %v3960 = vpop.f32.mrf.mxu0
        %v3961 = vadd.f32 %v3764, %v3960
        %3962 = vmatmul.f32.gmra.mxu0 %v3416
        %v3963 = vpop.f32.mrf.mxu0
        %v3964 = vadd.f32 %v3764, %v3963
        %3965 = vmatmul.f32.gmra.mxu0 %v3419
        %v3966 = vpop.f32.mrf.mxu0
        %v3967 = vadd.f32 %v3764, %v3966
        %3968 = vmatmul.f32.gmra.mxu0 %v3422
        %v3969 = vpop.f32.mrf.mxu0
        %v3970 = vadd.f32 %v3764, %v3969
        %3971 = vmatmul.f32.gmra.mxu0 %v3425
        %v3972 = vpop.f32.mrf.mxu0
        %v3973 = vadd.f32 %v3764, %v3972
        %3974 = vmatmul.f32.gmra.mxu0 %v3428
        %v3975 = vpop.f32.mrf.mxu0
        %v3976 = vadd.f32 %v3764, %v3975
        %3977 = vmatmul.f32.gmra.mxu0 %v3431
        %v3978 = vpop.f32.mrf.mxu0
        %v3979 = vadd.f32 %v3764, %v3978
        %3980 = vmatmul.f32.gmra.mxu0 %v3434
        %v3981 = vpop.f32.mrf.mxu0
        %v3982 = vadd.f32 %v3764, %v3981
        %3983 = vmatmul.f32.gmra.mxu0 %v3437
        %v3984 = vpop.f32.mrf.mxu0
        %v3985 = vadd.f32 %v3764, %v3984
        %3986 = vmatmul.f32.gmra.mxu0 %v3440
        %v3987 = vpop.f32.mrf.mxu0
        %v3988 = vadd.f32 %v3764, %v3987
        %3989 = vmatmul.f32.gmra.mxu0 %v3443
        %v3990 = vpop.f32.mrf.mxu0
        %v3991 = vadd.f32 %v3764, %v3990
        %3992 = vmatmul.f32.gmra.mxu0 %v3446
        %v3993 = vpop.f32.mrf.mxu0
        %v3994 = vadd.f32 %v3764, %v3993
        %3995 = vmatmul.f32.gmra.mxu0 %v3449
        %v3996 = vpop.f32.mrf.mxu0
        %v3997 = vadd.f32 %v3764, %v3996
        %3998 = vmatmul.f32.gmra.mxu0 %v3452
        %v3999 = vpop.f32.mrf.mxu0
        %v4000 = vadd.f32 %v3764, %v3999
        %4001 = vmatmul.f32.gmra.mxu0 %v3455
        %v4002 = vpop.f32.mrf.mxu0
        %v4003 = vadd.f32 %v3764, %v4002
        %4004 = vmatmul.f32.gmra.mxu0 %v3458
        %v4005 = vpop.f32.mrf.mxu0
        %v4006 = vadd.f32 %v3764, %v4005
        %4007 = vmatmul.f32.gmra.mxu0 %v3461
        %v4008 = vpop.f32.mrf.mxu0
        %v4009 = vadd.f32 %v3764, %v4008
        %4010 = vmatmul.f32.gmra.mxu0 %v3464
        %v4011 = vpop.f32.mrf.mxu0
        %v4012 = vadd.f32 %v3764, %v4011
        %4013 = vmatmul.f32.gmra.mxu0 %v3467
        %v4014 = vpop.f32.mrf.mxu0
        %v4015 = vadd.f32 %v3764, %v4014
        %4016 = vmatmul.f32.gmra.mxu0 %v3470
        %v4017 = vpop.f32.mrf.mxu0
        %v4018 = vadd.f32 %v3764, %v4017
        %4019 = vmatmul.f32.gmra.mxu0 %v3473
        %v4020 = vpop.f32.mrf.mxu0
        %v4021 = vadd.f32 %v3764, %v4020
        %4022 = vmatmul.f32.gmra.mxu0 %v3476
        %v4023 = vpop.f32.mrf.mxu0
        %v4024 = vadd.f32 %v3764, %v4023
        %4025 = vmatmul.f32.gmra.mxu0 %v3479
        %v4026 = vpop.f32.mrf.mxu0
        %v4027 = vadd.f32 %v3764, %v4026
        %4028 = vmatmul.f32.gmra.mxu0 %v3482
        %v4029 = vpop.f32.mrf.mxu0
        %v4030 = vadd.f32 %v3764, %v4029
        %4031 = vmatmul.f32.gmra.mxu0 %v3485
        %v4032 = vpop.f32.mrf.mxu0
        %v4033 = vadd.f32 %v3764, %v4032
        %4034 = vmatmul.f32.gmra.mxu0 %v3488
        %v4035 = vpop.f32.mrf.mxu0
        %v4036 = vadd.f32 %v3764, %v4035
        %4037 = vmatmul.f32.gmra.mxu0 %v3491
        %v4038 = vpop.f32.mrf.mxu0
        %v4039 = vadd.f32 %v3764, %v4038
        %4040 = vmatmul.f32.gmra.mxu0 %v3494
        %v4041 = vpop.f32.mrf.mxu0
        %v4042 = vadd.f32 %v3764, %v4041
        %4043 = vmatmul.f32.gmra.mxu0 %v3497
        %v4044 = vpop.f32.mrf.mxu0
        %v4045 = vadd.f32 %v3764, %v4044
        %4046 = vmatmul.f32.gmra.mxu0 %v3500
        %v4047 = vpop.f32.mrf.mxu0
        %v4048 = vadd.f32 %v3764, %v4047
        %4049 = vmatmul.f32.gmra.mxu0 %v3503
        %v4050 = vpop.f32.mrf.mxu0
        %v4051 = vadd.f32 %v3764, %v4050
        %4052 = vmatmul.f32.gmra.mxu0 %v3506
        %v4053 = vpop.f32.mrf.mxu0
        %v4054 = vadd.f32 %v3764, %v4053
        %4055 = vmatmul.f32.gmra.mxu0 %v3509
        %v4056 = vpop.f32.mrf.mxu0
        %v4057 = vadd.f32 %v3764, %v4056
        %4058 = vmatmul.f32.gmra.mxu0 %v3512
        %v4059 = vpop.f32.mrf.mxu0
        %v4060 = vadd.f32 %v3764, %v4059
        %4061 = vmatmul.f32.gmra.mxu0 %v3515
        %v4062 = vpop.f32.mrf.mxu0
        %v4063 = vadd.f32 %v3764, %v4062
        %4064 = vmatmul.f32.gmra.mxu0 %v3518
        %v4065 = vpop.f32.mrf.mxu0
        %v4066 = vadd.f32 %v3764, %v4065
        %4067 = vmatmul.f32.gmra.mxu0 %v3521
        %v4068 = vpop.f32.mrf.mxu0
        %v4069 = vadd.f32 %v3764, %v4068
        %4070 = vmatmul.f32.gmra.mxu0 %v3524
        %v4071 = vpop.f32.mrf.mxu0
        %v4072 = vadd.f32 %v3764, %v4071
        %4073 = vmatmul.f32.gmra.mxu0 %v3527
        %v4074 = vpop.f32.mrf.mxu0
        %v4075 = vadd.f32 %v3764, %v4074
        %4076 = vmatmul.f32.gmra.mxu0 %v3530
        %v4077 = vpop.f32.mrf.mxu0
        %v4078 = vadd.f32 %v3764, %v4077
        %4079 = vmatmul.f32.gmra.mxu0 %v3533
        %v4080 = vpop.f32.mrf.mxu0
        %v4081 = vadd.f32 %v3764, %v4080
        %4082 = vmatmul.f32.gmra.mxu0 %v3536
        %v4083 = vpop.f32.mrf.mxu0
        %v4084 = vadd.f32 %v3764, %v4083
        %4085 = vmatmul.f32.gmra.mxu0 %v3539
        %v4086 = vpop.f32.mrf.mxu0
        %v4087 = vadd.f32 %v3764, %v4086
        %4088 = vmatmul.f32.gmra.mxu0 %v3542
        %v4089 = vpop.f32.mrf.mxu0
        %v4090 = vadd.f32 %v3764, %v4089
        %4091 = vmatmul.f32.gmra.mxu0 %v3545
        %v4092 = vpop.f32.mrf.mxu0
        %v4093 = vadd.f32 %v3764, %v4092
        %4094 = vmatmul.f32.gmra.mxu0 %v3548
        %v4095 = vpop.f32.mrf.mxu0
        %v4096 = vadd.f32 %v3764, %v4095
        %4097 = vmatmul.f32.gmra.mxu0 %v3551
        %v4098 = vpop.f32.mrf.mxu0
        %v4099 = vadd.f32 %v3764, %v4098
        %4100 = vmatmul.f32.gmra.mxu0 %v3554
        %v4101 = vpop.f32.mrf.mxu0
        %v4102 = vadd.f32 %v3764, %v4101
        %4103 = vmatmul.f32.gmra.mxu0 %v3557
        %v4104 = vpop.f32.mrf.mxu0
        %v4105 = vadd.f32 %v3764, %v4104
        %4106 = vmatmul.f32.gmra.mxu0 %v3560
        %v4107 = vpop.f32.mrf.mxu0
        %v4108 = vadd.f32 %v3764, %v4107
        %4109 = vmatmul.f32.gmra.mxu0 %v3563
        %v4110 = vpop.f32.mrf.mxu0
        %v4111 = vadd.f32 %v3764, %v4110
        %4112 = vmatmul.f32.gmra.mxu0 %v3566
        %v4113 = vpop.f32.mrf.mxu0
        %v4114 = vadd.f32 %v3764, %v4113
        %4115 = vmatmul.f32.gmra.mxu0 %v3569
        %v4116 = vpop.f32.mrf.mxu0
        %v4117 = vadd.f32 %v3764, %v4116
        %4118 = vmatmul.f32.gmra.mxu0 %v3572
        %v4119 = vpop.f32.mrf.mxu0
        %v4120 = vadd.f32 %v3764, %v4119
        %4121 = vmatmul.f32.gmra.mxu0 %v3575
        %v4122 = vpop.f32.mrf.mxu0
        %v4123 = vadd.f32 %v3764, %v4122
        %4124 = vmatmul.f32.gmra.mxu0 %v3578
        %v4125 = vpop.f32.mrf.mxu0
        %v4126 = vadd.f32 %v3764, %v4125
        %4127 = vmatmul.f32.gmra.mxu0 %v3581
        %v4128 = vpop.f32.mrf.mxu0
        %v4129 = vadd.f32 %v3764, %v4128
        %4130 = vmatmul.f32.gmra.mxu0 %v3584
        %v4131 = vpop.f32.mrf.mxu0
        %v4132 = vadd.f32 %v3764, %v4131
        %4133 = vmatmul.f32.gmra.mxu0 %v3587
        %v4134 = vpop.f32.mrf.mxu0
        %v4135 = vadd.f32 %v3764, %v4134
        %4136 = vmatmul.f32.gmra.mxu0 %v3590
        %v4137 = vpop.f32.mrf.mxu0
        %v4138 = vadd.f32 %v3764, %v4137
        %4139 = vmatmul.f32.gmra.mxu0 %v3593
        %v4140 = vpop.f32.mrf.mxu0
        %v4141 = vadd.f32 %v3764, %v4140
        %4142 = vmatmul.f32.gmra.mxu0 %v3596
        %v4143 = vpop.f32.mrf.mxu0
        %v4144 = vadd.f32 %v3764, %v4143
        %4145 = vmatmul.f32.gmra.mxu0 %v3599
        %v4146 = vpop.f32.mrf.mxu0
        %v4147 = vadd.f32 %v3764, %v4146
        %4148 = vmatmul.f32.gmra.mxu0 %v3602
        %v4149 = vpop.f32.mrf.mxu0
        %v4150 = vadd.f32 %v3764, %v4149
        %4151 = vmatmul.f32.gmra.mxu0 %v3605
        %v4152 = vpop.f32.mrf.mxu0
        %v4153 = vadd.f32 %v3764, %v4152
        %4154 = vmatmul.f32.gmra.mxu0 %v3608
        %v4155 = vpop.f32.mrf.mxu0
        %v4156 = vadd.f32 %v3764, %v4155
        %4157 = vmatmul.f32.gmra.mxu0 %v3611
        %v4158 = vpop.f32.mrf.mxu0
        %v4159 = vadd.f32 %v3764, %v4158
        %4160 = vmatmul.f32.gmra.mxu0 %v3614
        %v4161 = vpop.f32.mrf.mxu0
        %v4162 = vadd.f32 %v3764, %v4161
        %4163 = vmatmul.f32.gmra.mxu0 %v3617
        %v4164 = vpop.f32.mrf.mxu0
        %v4165 = vadd.f32 %v3764, %v4164
        %4166 = vdwg.mxu0
        %v4167 = vtanh.pop %v3784
        %v4168 = vtanh.pop %v3787
        %v4169 = vtanh.pop %v3790
        %v4170 = vtanh.pop %v3793
        %v4171 = vtanh.pop %v3796
        %v4172 = vtanh.pop %v3799
        %v4173 = vtanh.pop %v3802
        %v4174 = vtanh.pop %v3805
        %v4175 = vtanh.pop %v3808
        %v4176 = vtanh.pop %v3811
        %v4177 = vtanh.pop %v3814
        %v4178 = vtanh.pop %v3817
        %v4179 = vtanh.pop %v3820
        %v4180 = vtanh.pop %v3823
        %v4181 = vtanh.pop %v3826
        %v4182 = vtanh.pop %v3829
        %v4183 = vtanh.pop %v3832
        %v4184 = vtanh.pop %v3835
        %v4185 = vtanh.pop %v3838
        %v4186 = vtanh.pop %v3841
        %v4187 = vtanh.pop %v3844
        %v4188 = vtanh.pop %v3847
        %v4189 = vtanh.pop %v3850
        %v4190 = vtanh.pop %v3853
        %v4191 = vtanh.pop %v3856
        %v4192 = vtanh.pop %v3859
        %v4193 = vtanh.pop %v3862
        %v4194 = vtanh.pop %v3865
        %v4195 = vtanh.pop %v3868
        %v4196 = vtanh.pop %v3871
        %v4197 = vtanh.pop %v3874
        %v4198 = vtanh.pop %v3877
        %v4199 = vtanh.pop %v3880
        %v4200 = vtanh.pop %v3883
        %v4201 = vtanh.pop %v3886
        %v4202 = vtanh.pop %v3889
        %v4203 = vtanh.pop %v3892
        %v4204 = vtanh.pop %v3895
        %v4205 = vtanh.pop %v3898
        %v4206 = vtanh.pop %v3901
        %v4207 = vtanh.pop %v3904
        %v4208 = vtanh.pop %v3907
        %v4209 = vtanh.pop %v3910
        %v4210 = vtanh.pop %v3913
        %v4211 = vtanh.pop %v3916
        %v4212 = vtanh.pop %v3919
        %v4213 = vtanh.pop %v3922
        %v4214 = vtanh.pop %v3925
        %v4215 = vtanh.pop %v3928
        %v4216 = vtanh.pop %v3931
        %v4217 = vtanh.pop %v3934
        %v4218 = vtanh.pop %v3937
        %v4219 = vtanh.pop %v3940
        %v4220 = vtanh.pop %v3943
        %v4221 = vtanh.pop %v3946
        %v4222 = vtanh.pop %v3949
        %v4223 = vtanh.pop %v3952
        %v4224 = vtanh.pop %v3955
        %v4225 = vtanh.pop %v3958
        %v4226 = vtanh.pop %v3961
        %v4227 = vtanh.pop %v3964
        %v4228 = vtanh.pop %v3967
        %v4229 = vtanh.pop %v3970
        %v4230 = vtanh.pop %v3973
        %v4231 = vtanh.pop %v3976
        %v4232 = vtanh.pop %v3979
        %v4233 = vtanh.pop %v3982
        %v4234 = vtanh.pop %v3985
        %v4235 = vtanh.pop %v3988
        %v4236 = vtanh.pop %v3991
        %v4237 = vtanh.pop %v3994
        %v4238 = vtanh.pop %v3997
        %v4239 = vtanh.pop %v4000
        %v4240 = vtanh.pop %v4003
        %v4241 = vtanh.pop %v4006
        %v4242 = vtanh.pop %v4009
        %v4243 = vtanh.pop %v4012
        %v4244 = vtanh.pop %v4015
        %v4245 = vtanh.pop %v4018
        %v4246 = vtanh.pop %v4021
        %v4247 = vtanh.pop %v4024
        %v4248 = vtanh.pop %v4027
        %v4249 = vtanh.pop %v4030
        %v4250 = vtanh.pop %v4033
        %v4251 = vtanh.pop %v4036
        %v4252 = vtanh.pop %v4039
        %v4253 = vtanh.pop %v4042
        %v4254 = vtanh.pop %v4045
        %v4255 = vtanh.pop %v4048
        %v4256 = vtanh.pop %v4051
        %v4257 = vtanh.pop %v4054
        %v4258 = vtanh.pop %v4057
        %v4259 = vtanh.pop %v4060
        %v4260 = vtanh.pop %v4063
        %v4261 = vtanh.pop %v4066
        %v4262 = vtanh.pop %v4069
        %v4263 = vtanh.pop %v4072
        %v4264 = vtanh.pop %v4075
        %v4265 = vtanh.pop %v4078
        %v4266 = vtanh.pop %v4081
        %v4267 = vtanh.pop %v4084
        %v4268 = vtanh.pop %v4087
        %v4269 = vtanh.pop %v4090
        %v4270 = vtanh.pop %v4093
        %v4271 = vtanh.pop %v4096
        %v4272 = vtanh.pop %v4099
        %v4273 = vtanh.pop %v4102
        %v4274 = vtanh.pop %v4105
        %v4275 = vtanh.pop %v4108
        %v4276 = vtanh.pop %v4111
        %v4277 = vtanh.pop %v4114
        %v4278 = vtanh.pop %v4117
        %v4279 = vtanh.pop %v4120
        %v4280 = vtanh.pop %v4123
        %v4281 = vtanh.pop %v4126
        %v4282 = vtanh.pop %v4129
        %v4283 = vtanh.pop %v4132
        %v4284 = vtanh.pop %v4135
        %v4285 = vtanh.pop %v4138
        %v4286 = vtanh.pop %v4141
        %v4287 = vtanh.pop %v4144
        %v4288 = vtanh.pop %v4147
        %v4289 = vtanh.pop %v4150
        %v4290 = vtanh.pop %v4153
        %v4291 = vtanh.pop %v4156
        %v4292 = vtanh.pop %v4159
        %v4293 = vtanh.pop %v4162
        %v4294 = vtanh.pop %v4165
        %v4295 = vmul.f32 %v4167, %v3618
        %v4296 = vmul.f32 %v4168, %v3619
        %v4297 = vmul.f32 %v4169, %v3620
        %v4298 = vmul.f32 %v4170, %v3621
        %v4299 = vmul.f32 %v4171, %v3622
        %v4300 = vmul.f32 %v4172, %v3623
        %v4301 = vmul.f32 %v4173, %v3624
        %v4302 = vmul.f32 %v4174, %v3625
        %v4303 = vmul.f32 %v4175, %v3626
        %v4304 = vmul.f32 %v4176, %v3627
        %v4305 = vmul.f32 %v4177, %v3628
        %v4306 = vmul.f32 %v4178, %v3629
        %v4307 = vmul.f32 %v4179, %v3630
        %v4308 = vmul.f32 %v4180, %v3631
        %v4309 = vmul.f32 %v4181, %v3632
        %v4310 = vmul.f32 %v4182, %v3633
        %v4311 = vmul.f32 %v4183, %v3634
        %v4312 = vmul.f32 %v4184, %v3635
        %v4313 = vmul.f32 %v4185, %v3636
        %v4314 = vmul.f32 %v4186, %v3637
        %v4315 = vmul.f32 %v4187, %v3638
        %v4316 = vmul.f32 %v4188, %v3639
        %v4317 = vmul.f32 %v4189, %v3640
        %v4318 = vmul.f32 %v4190, %v3641
        %v4319 = vmul.f32 %v4191, %v3642
        %v4320 = vmul.f32 %v4192, %v3643
        %v4321 = vmul.f32 %v4193, %v3644
        %v4322 = vmul.f32 %v4194, %v3645
        %v4323 = vmul.f32 %v4195, %v3646
        %v4324 = vmul.f32 %v4196, %v3647
        %v4325 = vmul.f32 %v4197, %v3648
        %v4326 = vmul.f32 %v4198, %v3649
        %v4327 = vmul.f32 %v4199, %v3650
        %v4328 = vmul.f32 %v4200, %v3651
        %v4329 = vmul.f32 %v4201, %v3652
        %v4330 = vmul.f32 %v4202, %v3653
        %v4331 = vmul.f32 %v4203, %v3654
        %v4332 = vmul.f32 %v4204, %v3655
        %v4333 = vmul.f32 %v4205, %v3656
        %v4334 = vmul.f32 %v4206, %v3657
        %v4335 = vmul.f32 %v4207, %v3658
        %v4336 = vmul.f32 %v4208, %v3659
        %v4337 = vmul.f32 %v4209, %v3660
        %v4338 = vmul.f32 %v4210, %v3661
        %v4339 = vmul.f32 %v4211, %v3662
        %v4340 = vmul.f32 %v4212, %v3663
        %v4341 = vmul.f32 %v4213, %v3664
        %v4342 = vmul.f32 %v4214, %v3665
        %v4343 = vmul.f32 %v4215, %v3666
        %v4344 = vmul.f32 %v4216, %v3667
        %v4345 = vmul.f32 %v4217, %v3668
        %v4346 = vmul.f32 %v4218, %v3669
        %v4347 = vmul.f32 %v4219, %v3670
        %v4348 = vmul.f32 %v4220, %v3671
        %v4349 = vmul.f32 %v4221, %v3672
        %v4350 = vmul.f32 %v4222, %v3673
        %v4351 = vmul.f32 %v4223, %v3674
        %v4352 = vmul.f32 %v4224, %v3675
        %v4353 = vmul.f32 %v4225, %v3676
        %v4354 = vmul.f32 %v4226, %v3677
        %v4355 = vmul.f32 %v4227, %v3678
        %v4356 = vmul.f32 %v4228, %v3679
        %v4357 = vmul.f32 %v4229, %v3680
        %v4358 = vmul.f32 %v4230, %v3681
        %v4359 = vmul.f32 %v4231, %v3682
        %v4360 = vmul.f32 %v4232, %v3683
        %v4361 = vmul.f32 %v4233, %v3684
        %v4362 = vmul.f32 %v4234, %v3685
        %v4363 = vmul.f32 %v4235, %v3686
        %v4364 = vmul.f32 %v4236, %v3687
        %v4365 = vmul.f32 %v4237, %v3688
        %v4366 = vmul.f32 %v4238, %v3689
        %v4367 = vmul.f32 %v4239, %v3690
        %v4368 = vmul.f32 %v4240, %v3691
        %v4369 = vmul.f32 %v4241, %v3692
        %v4370 = vmul.f32 %v4242, %v3693
        %v4371 = vmul.f32 %v4243, %v3694
        %v4372 = vmul.f32 %v4244, %v3695
        %v4373 = vmul.f32 %v4245, %v3696
        %v4374 = vmul.f32 %v4246, %v3697
        %v4375 = vmul.f32 %v4247, %v3698
        %v4376 = vmul.f32 %v4248, %v3699
        %v4377 = vmul.f32 %v4249, %v3700
        %v4378 = vmul.f32 %v4250, %v3701
        %v4379 = vmul.f32 %v4251, %v3702
        %v4380 = vmul.f32 %v4252, %v3703
        %v4381 = vmul.f32 %v4253, %v3704
        %v4382 = vmul.f32 %v4254, %v3705
        %v4383 = vmul.f32 %v4255, %v3706
        %v4384 = vmul.f32 %v4256, %v3707
        %v4385 = vmul.f32 %v4257, %v3708
        %v4386 = vmul.f32 %v4258, %v3709
        %v4387 = vmul.f32 %v4259, %v3710
        %v4388 = vmul.f32 %v4260, %v3711
        %v4389 = vmul.f32 %v4261, %v3712
        %v4390 = vmul.f32 %v4262, %v3713
        %v4391 = vmul.f32 %v4263, %v3714
        %v4392 = vmul.f32 %v4264, %v3715
        %v4393 = vmul.f32 %v4265, %v3716
        %v4394 = vmul.f32 %v4266, %v3717
        %v4395 = vmul.f32 %v4267, %v3718
        %v4396 = vmul.f32 %v4268, %v3719
        %v4397 = vmul.f32 %v4269, %v3720
        %v4398 = vmul.f32 %v4270, %v3721
        %v4399 = vmul.f32 %v4271, %v3722
        %v4400 = vmul.f32 %v4272, %v3723
        %v4401 = vmul.f32 %v4273, %v3724
        %v4402 = vmul.f32 %v4274, %v3725
        %v4403 = vmul.f32 %v4275, %v3726
        %v4404 = vmul.f32 %v4276, %v3727
        %v4405 = vmul.f32 %v4277, %v3728
        %v4406 = vmul.f32 %v4278, %v3729
        %v4407 = vmul.f32 %v4279, %v3730
        %v4408 = vmul.f32 %v4280, %v3731
        %v4409 = vmul.f32 %v4281, %v3732
        %v4410 = vmul.f32 %v4282, %v3733
        %v4411 = vmul.f32 %v4283, %v3734
        %v4412 = vmul.f32 %v4284, %v3735
        %v4413 = vmul.f32 %v4285, %v3736
        %v4414 = vmul.f32 %v4286, %v3737
        %v4415 = vmul.f32 %v4287, %v3738
        %v4416 = vmul.f32 %v4288, %v3739
        %v4417 = vmul.f32 %v4289, %v3740
        %v4418 = vmul.f32 %v4290, %v3741
        %v4419 = vmul.f32 %v4291, %v3742
        %v4420 = vmul.f32 %v4292, %v3743
        %v4421 = vmul.f32 %v4293, %v3744
        %v4422 = vmul.f32 %v4294, %v3745
        %v4423 = vadd.f32 %v3234, %v4295
        %v4424 = vadd.f32 %v3237, %v4296
        %v4425 = vadd.f32 %v3240, %v4297
        %v4426 = vadd.f32 %v3243, %v4298
        %v4427 = vadd.f32 %v3246, %v4299
        %v4428 = vadd.f32 %v3249, %v4300
        %v4429 = vadd.f32 %v3252, %v4301
        %v4430 = vadd.f32 %v3255, %v4302
        %v4431 = vadd.f32 %v3258, %v4303
        %v4432 = vadd.f32 %v3261, %v4304
        %v4433 = vadd.f32 %v3264, %v4305
        %v4434 = vadd.f32 %v3267, %v4306
        %v4435 = vadd.f32 %v3270, %v4307
        %v4436 = vadd.f32 %v3273, %v4308
        %v4437 = vadd.f32 %v3276, %v4309
        %v4438 = vadd.f32 %v3279, %v4310
        %v4439 = vadd.f32 %v3282, %v4311
        %v4440 = vadd.f32 %v3285, %v4312
        %v4441 = vadd.f32 %v3288, %v4313
        %v4442 = vadd.f32 %v3291, %v4314
        %v4443 = vadd.f32 %v3294, %v4315
        %v4444 = vadd.f32 %v3297, %v4316
        %v4445 = vadd.f32 %v3300, %v4317
        %v4446 = vadd.f32 %v3303, %v4318
        %v4447 = vadd.f32 %v3306, %v4319
        %v4448 = vadd.f32 %v3309, %v4320
        %v4449 = vadd.f32 %v3312, %v4321
        %v4450 = vadd.f32 %v3315, %v4322
        %v4451 = vadd.f32 %v3318, %v4323
        %v4452 = vadd.f32 %v3321, %v4324
        %v4453 = vadd.f32 %v3324, %v4325
        %v4454 = vadd.f32 %v3327, %v4326
        %v4455 = vadd.f32 %v3330, %v4327
        %v4456 = vadd.f32 %v3333, %v4328
        %v4457 = vadd.f32 %v3336, %v4329
        %v4458 = vadd.f32 %v3339, %v4330
        %v4459 = vadd.f32 %v3342, %v4331
        %v4460 = vadd.f32 %v3345, %v4332
        %v4461 = vadd.f32 %v3348, %v4333
        %v4462 = vadd.f32 %v3351, %v4334
        %v4463 = vadd.f32 %v3354, %v4335
        %v4464 = vadd.f32 %v3357, %v4336
        %v4465 = vadd.f32 %v3360, %v4337
        %v4466 = vadd.f32 %v3363, %v4338
        %v4467 = vadd.f32 %v3366, %v4339
        %v4468 = vadd.f32 %v3369, %v4340
        %v4469 = vadd.f32 %v3372, %v4341
        %v4470 = vadd.f32 %v3375, %v4342
        %v4471 = vadd.f32 %v3378, %v4343
        %v4472 = vadd.f32 %v3381, %v4344
        %v4473 = vadd.f32 %v3384, %v4345
        %v4474 = vadd.f32 %v3387, %v4346
        %v4475 = vadd.f32 %v3390, %v4347
        %v4476 = vadd.f32 %v3393, %v4348
        %v4477 = vadd.f32 %v3396, %v4349
        %v4478 = vadd.f32 %v3399, %v4350
        %v4479 = vadd.f32 %v3402, %v4351
        %v4480 = vadd.f32 %v3405, %v4352
        %v4481 = vadd.f32 %v3408, %v4353
        %v4482 = vadd.f32 %v3411, %v4354
        %v4483 = vadd.f32 %v3414, %v4355
        %v4484 = vadd.f32 %v3417, %v4356
        %v4485 = vadd.f32 %v3420, %v4357
        %v4486 = vadd.f32 %v3423, %v4358
        %v4487 = vadd.f32 %v3426, %v4359
        %v4488 = vadd.f32 %v3429, %v4360
        %v4489 = vadd.f32 %v3432, %v4361
        %v4490 = vadd.f32 %v3435, %v4362
        %v4491 = vadd.f32 %v3438, %v4363
        %v4492 = vadd.f32 %v3441, %v4364
        %v4493 = vadd.f32 %v3444, %v4365
        %v4494 = vadd.f32 %v3447, %v4366
        %v4495 = vadd.f32 %v3450, %v4367
        %v4496 = vadd.f32 %v3453, %v4368
        %v4497 = vadd.f32 %v3456, %v4369
        %v4498 = vadd.f32 %v3459, %v4370
        %v4499 = vadd.f32 %v3462, %v4371
        %v4500 = vadd.f32 %v3465, %v4372
        %v4501 = vadd.f32 %v3468, %v4373
        %v4502 = vadd.f32 %v3471, %v4374
        %v4503 = vadd.f32 %v3474, %v4375
        %v4504 = vadd.f32 %v3477, %v4376
        %v4505 = vadd.f32 %v3480, %v4377
        %v4506 = vadd.f32 %v3483, %v4378
        %v4507 = vadd.f32 %v3486, %v4379
        %v4508 = vadd.f32 %v3489, %v4380
        %v4509 = vadd.f32 %v3492, %v4381
        %v4510 = vadd.f32 %v3495, %v4382
        %v4511 = vadd.f32 %v3498, %v4383
        %v4512 = vadd.f32 %v3501, %v4384
        %v4513 = vadd.f32 %v3504, %v4385
        %v4514 = vadd.f32 %v3507, %v4386
        %v4515 = vadd.f32 %v3510, %v4387
        %v4516 = vadd.f32 %v3513, %v4388
        %v4517 = vadd.f32 %v3516, %v4389
        %v4518 = vadd.f32 %v3519, %v4390
        %v4519 = vadd.f32 %v3522, %v4391
        %v4520 = vadd.f32 %v3525, %v4392
        %v4521 = vadd.f32 %v3528, %v4393
        %v4522 = vadd.f32 %v3531, %v4394
        %v4523 = vadd.f32 %v3534, %v4395
        %v4524 = vadd.f32 %v3537, %v4396
        %v4525 = vadd.f32 %v3540, %v4397
        %v4526 = vadd.f32 %v3543, %v4398
        %v4527 = vadd.f32 %v3546, %v4399
        %v4528 = vadd.f32 %v3549, %v4400
        %v4529 = vadd.f32 %v3552, %v4401
        %v4530 = vadd.f32 %v3555, %v4402
        %v4531 = vadd.f32 %v3558, %v4403
        %v4532 = vadd.f32 %v3561, %v4404
        %v4533 = vadd.f32 %v3564, %v4405
        %v4534 = vadd.f32 %v3567, %v4406
        %v4535 = vadd.f32 %v3570, %v4407
        %v4536 = vadd.f32 %v3573, %v4408
        %v4537 = vadd.f32 %v3576, %v4409
        %v4538 = vadd.f32 %v3579, %v4410
        %v4539 = vadd.f32 %v3582, %v4411
        %v4540 = vadd.f32 %v3585, %v4412
        %v4541 = vadd.f32 %v3588, %v4413
        %v4542 = vadd.f32 %v3591, %v4414
        %v4543 = vadd.f32 %v3594, %v4415
        %v4544 = vadd.f32 %v3597, %v4416
        %v4545 = vadd.f32 %v3600, %v4417
        %v4546 = vadd.f32 %v3603, %v4418
        %v4547 = vadd.f32 %v3606, %v4419
        %v4548 = vadd.f32 %v3609, %v4420
        %v4549 = vadd.f32 %v3612, %v4421
        %v4550 = vadd.f32 %v3615, %v4422
        %v4551 = vld [vmem:[%s5] sm:$0xff]
        %v4552 = vld [vmem:[%s5 + $0x8] sm:$0xff]
        %v4553 = vld [vmem:[%s5 + $0x10] sm:$0xff]
        %v4554 = vld [vmem:[%s5 + $0x18] sm:$0xff]
        %v4555 = vld [vmem:[%s5 + $0x20] sm:$0xff]
        %v4556 = vld [vmem:[%s5 + $0x28] sm:$0xff]
        %v4557 = vld [vmem:[%s5 + $0x30] sm:$0xff]
        %v4558 = vld [vmem:[%s5 + $0x38] sm:$0xff]
        %v4559 = vld [vmem:[%s5 + $0x40] sm:$0xff]
        %v4560 = vld [vmem:[%s5 + $0x48] sm:$0xff]
        %v4561 = vld [vmem:[%s5 + $0x50] sm:$0xff]
        %v4562 = vld [vmem:[%s5 + $0x58] sm:$0xff]
        %v4563 = vld [vmem:[%s5 + $0x60] sm:$0xff]
        %v4564 = vld [vmem:[%s5 + $0x68] sm:$0xff]
        %v4565 = vld [vmem:[%s5 + $0x70] sm:$0xff]
        %v4566 = vld [vmem:[%s5 + $0x78] sm:$0xff]
        %v4567 = vld [vmem:[%s6] sm:$0x1]
        %v4569 = vperm.slane %v4567, 0
        %4571 = vmatpush.msra.mxu0 %v4566
        %4572 = vmatpush.msra.mxu0 %v4565
        %4573 = vmatpush.msra.mxu0 %v4564
        %4574 = vmatpush.msra.mxu0 %v4563
        %4575 = vmatpush.msra.mxu0 %v4562
        %4576 = vmatpush.msra.mxu0 %v4561
        %4577 = vmatpush.msra.mxu0 %v4560
        %4578 = vmatpush.msra.mxu0 %v4559
        %4579 = vmatpush.msra.mxu0 %v4558
        %4580 = vmatpush.msra.mxu0 %v4557
        %4581 = vmatpush.msra.mxu0 %v4556
        %4582 = vmatpush.msra.mxu0 %v4555
        %4583 = vmatpush.msra.mxu0 %v4554
        %4584 = vmatpush.msra.mxu0 %v4553
        %4585 = vmatpush.msra.mxu0 %v4552
        %4586 = vmatpush.msra.mxu0 %v4551
        %4587 = vmatmul.f32.gmra.mxu0 %v4423
        %v4588 = vpop.f32.mrf.mxu0
        %v4589 = vadd.f32 %v4569, %v4588
        %4590 = vmatmul.f32.gmra.mxu0 %v4424
        %v4591 = vpop.f32.mrf.mxu0
        %v4592 = vadd.f32 %v4569, %v4591
        %4593 = vmatmul.f32.gmra.mxu0 %v4425
        %v4594 = vpop.f32.mrf.mxu0
        %v4595 = vadd.f32 %v4569, %v4594
        %4596 = vmatmul.f32.gmra.mxu0 %v4426
        %v4597 = vpop.f32.mrf.mxu0
        %v4598 = vadd.f32 %v4569, %v4597
        %4599 = vmatmul.f32.gmra.mxu0 %v4427
        %v4600 = vpop.f32.mrf.mxu0
        %v4601 = vadd.f32 %v4569, %v4600
        %4602 = vmatmul.f32.gmra.mxu0 %v4428
        %v4603 = vpop.f32.mrf.mxu0
        %v4604 = vadd.f32 %v4569, %v4603
        %4605 = vmatmul.f32.gmra.mxu0 %v4429
        %v4606 = vpop.f32.mrf.mxu0
        %v4607 = vadd.f32 %v4569, %v4606
        %4608 = vmatmul.f32.gmra.mxu0 %v4430
        %v4609 = vpop.f32.mrf.mxu0
        %v4610 = vadd.f32 %v4569, %v4609
        %4611 = vmatmul.f32.gmra.mxu0 %v4431
        %v4612 = vpop.f32.mrf.mxu0
        %v4613 = vadd.f32 %v4569, %v4612
        %4614 = vmatmul.f32.gmra.mxu0 %v4432
        %v4615 = vpop.f32.mrf.mxu0
        %v4616 = vadd.f32 %v4569, %v4615
        %4617 = vmatmul.f32.gmra.mxu0 %v4433
        %v4618 = vpop.f32.mrf.mxu0
        %v4619 = vadd.f32 %v4569, %v4618
        %4620 = vmatmul.f32.gmra.mxu0 %v4434
        %v4621 = vpop.f32.mrf.mxu0
        %v4622 = vadd.f32 %v4569, %v4621
        %4623 = vmatmul.f32.gmra.mxu0 %v4435
        %v4624 = vpop.f32.mrf.mxu0
        %v4625 = vadd.f32 %v4569, %v4624
        %4626 = vmatmul.f32.gmra.mxu0 %v4436
        %v4627 = vpop.f32.mrf.mxu0
        %v4628 = vadd.f32 %v4569, %v4627
        %4629 = vmatmul.f32.gmra.mxu0 %v4437
        %v4630 = vpop.f32.mrf.mxu0
        %v4631 = vadd.f32 %v4569, %v4630
        %4632 = vmatmul.f32.gmra.mxu0 %v4438
        %v4633 = vpop.f32.mrf.mxu0
        %v4634 = vadd.f32 %v4569, %v4633
        %4635 = vmatmul.f32.gmra.mxu0 %v4439
        %v4636 = vpop.f32.mrf.mxu0
        %v4637 = vadd.f32 %v4569, %v4636
        %4638 = vmatmul.f32.gmra.mxu0 %v4440
        %v4639 = vpop.f32.mrf.mxu0
        %v4640 = vadd.f32 %v4569, %v4639
        %4641 = vmatmul.f32.gmra.mxu0 %v4441
        %v4642 = vpop.f32.mrf.mxu0
        %v4643 = vadd.f32 %v4569, %v4642
        %4644 = vmatmul.f32.gmra.mxu0 %v4442
        %v4645 = vpop.f32.mrf.mxu0
        %v4646 = vadd.f32 %v4569, %v4645
        %4647 = vmatmul.f32.gmra.mxu0 %v4443
        %v4648 = vpop.f32.mrf.mxu0
        %v4649 = vadd.f32 %v4569, %v4648
        %4650 = vmatmul.f32.gmra.mxu0 %v4444
        %v4651 = vpop.f32.mrf.mxu0
        %v4652 = vadd.f32 %v4569, %v4651
        %4653 = vmatmul.f32.gmra.mxu0 %v4445
        %v4654 = vpop.f32.mrf.mxu0
        %v4655 = vadd.f32 %v4569, %v4654
        %4656 = vmatmul.f32.gmra.mxu0 %v4446
        %v4657 = vpop.f32.mrf.mxu0
        %v4658 = vadd.f32 %v4569, %v4657
        %4659 = vmatmul.f32.gmra.mxu0 %v4447
        %v4660 = vpop.f32.mrf.mxu0
        %v4661 = vadd.f32 %v4569, %v4660
        %4662 = vmatmul.f32.gmra.mxu0 %v4448
        %v4663 = vpop.f32.mrf.mxu0
        %v4664 = vadd.f32 %v4569, %v4663
        %4665 = vmatmul.f32.gmra.mxu0 %v4449
        %v4666 = vpop.f32.mrf.mxu0
        %v4667 = vadd.f32 %v4569, %v4666
        %4668 = vmatmul.f32.gmra.mxu0 %v4450
        %v4669 = vpop.f32.mrf.mxu0
        %v4670 = vadd.f32 %v4569, %v4669
        %4671 = vmatmul.f32.gmra.mxu0 %v4451
        %v4672 = vpop.f32.mrf.mxu0
        %v4673 = vadd.f32 %v4569, %v4672
        %4674 = vmatmul.f32.gmra.mxu0 %v4452
        %v4675 = vpop.f32.mrf.mxu0
        %v4676 = vadd.f32 %v4569, %v4675
        %4677 = vmatmul.f32.gmra.mxu0 %v4453
        %v4678 = vpop.f32.mrf.mxu0
        %v4679 = vadd.f32 %v4569, %v4678
        %4680 = vmatmul.f32.gmra.mxu0 %v4454
        %v4681 = vpop.f32.mrf.mxu0
        %v4682 = vadd.f32 %v4569, %v4681
        %4683 = vmatmul.f32.gmra.mxu0 %v4455
        %v4684 = vpop.f32.mrf.mxu0
        %v4685 = vadd.f32 %v4569, %v4684
        %4686 = vmatmul.f32.gmra.mxu0 %v4456
        %v4687 = vpop.f32.mrf.mxu0
        %v4688 = vadd.f32 %v4569, %v4687
        %4689 = vmatmul.f32.gmra.mxu0 %v4457
        %v4690 = vpop.f32.mrf.mxu0
        %v4691 = vadd.f32 %v4569, %v4690
        %4692 = vmatmul.f32.gmra.mxu0 %v4458
        %v4693 = vpop.f32.mrf.mxu0
        %v4694 = vadd.f32 %v4569, %v4693
        %4695 = vmatmul.f32.gmra.mxu0 %v4459
        %v4696 = vpop.f32.mrf.mxu0
        %v4697 = vadd.f32 %v4569, %v4696
        %4698 = vmatmul.f32.gmra.mxu0 %v4460
        %v4699 = vpop.f32.mrf.mxu0
        %v4700 = vadd.f32 %v4569, %v4699
        %4701 = vmatmul.f32.gmra.mxu0 %v4461
        %v4702 = vpop.f32.mrf.mxu0
        %v4703 = vadd.f32 %v4569, %v4702
        %4704 = vmatmul.f32.gmra.mxu0 %v4462
        %v4705 = vpop.f32.mrf.mxu0
        %v4706 = vadd.f32 %v4569, %v4705
        %4707 = vmatmul.f32.gmra.mxu0 %v4463
        %v4708 = vpop.f32.mrf.mxu0
        %v4709 = vadd.f32 %v4569, %v4708
        %4710 = vmatmul.f32.gmra.mxu0 %v4464
        %v4711 = vpop.f32.mrf.mxu0
        %v4712 = vadd.f32 %v4569, %v4711
        %4713 = vmatmul.f32.gmra.mxu0 %v4465
        %v4714 = vpop.f32.mrf.mxu0
        %v4715 = vadd.f32 %v4569, %v4714
        %4716 = vmatmul.f32.gmra.mxu0 %v4466
        %v4717 = vpop.f32.mrf.mxu0
        %v4718 = vadd.f32 %v4569, %v4717
        %4719 = vmatmul.f32.gmra.mxu0 %v4467
        %v4720 = vpop.f32.mrf.mxu0
        %v4721 = vadd.f32 %v4569, %v4720
        %4722 = vmatmul.f32.gmra.mxu0 %v4468
        %v4723 = vpop.f32.mrf.mxu0
        %v4724 = vadd.f32 %v4569, %v4723
        %4725 = vmatmul.f32.gmra.mxu0 %v4469
        %v4726 = vpop.f32.mrf.mxu0
        %v4727 = vadd.f32 %v4569, %v4726
        %4728 = vmatmul.f32.gmra.mxu0 %v4470
        %v4729 = vpop.f32.mrf.mxu0
        %v4730 = vadd.f32 %v4569, %v4729
        %4731 = vmatmul.f32.gmra.mxu0 %v4471
        %v4732 = vpop.f32.mrf.mxu0
        %v4733 = vadd.f32 %v4569, %v4732
        %4734 = vmatmul.f32.gmra.mxu0 %v4472
        %v4735 = vpop.f32.mrf.mxu0
        %v4736 = vadd.f32 %v4569, %v4735
        %4737 = vmatmul.f32.gmra.mxu0 %v4473
        %v4738 = vpop.f32.mrf.mxu0
        %v4739 = vadd.f32 %v4569, %v4738
        %4740 = vmatmul.f32.gmra.mxu0 %v4474
        %v4741 = vpop.f32.mrf.mxu0
        %v4742 = vadd.f32 %v4569, %v4741
        %4743 = vmatmul.f32.gmra.mxu0 %v4475
        %v4744 = vpop.f32.mrf.mxu0
        %v4745 = vadd.f32 %v4569, %v4744
        %4746 = vmatmul.f32.gmra.mxu0 %v4476
        %v4747 = vpop.f32.mrf.mxu0
        %v4748 = vadd.f32 %v4569, %v4747
        %4749 = vmatmul.f32.gmra.mxu0 %v4477
        %v4750 = vpop.f32.mrf.mxu0
        %v4751 = vadd.f32 %v4569, %v4750
        %4752 = vmatmul.f32.gmra.mxu0 %v4478
        %v4753 = vpop.f32.mrf.mxu0
        %v4754 = vadd.f32 %v4569, %v4753
        %4755 = vmatmul.f32.gmra.mxu0 %v4479
        %v4756 = vpop.f32.mrf.mxu0
        %v4757 = vadd.f32 %v4569, %v4756
        %4758 = vmatmul.f32.gmra.mxu0 %v4480
        %v4759 = vpop.f32.mrf.mxu0
        %v4760 = vadd.f32 %v4569, %v4759
        %4761 = vmatmul.f32.gmra.mxu0 %v4481
        %v4762 = vpop.f32.mrf.mxu0
        %v4763 = vadd.f32 %v4569, %v4762
        %4764 = vmatmul.f32.gmra.mxu0 %v4482
        %v4765 = vpop.f32.mrf.mxu0
        %v4766 = vadd.f32 %v4569, %v4765
        %4767 = vmatmul.f32.gmra.mxu0 %v4483
        %v4768 = vpop.f32.mrf.mxu0
        %v4769 = vadd.f32 %v4569, %v4768
        %4770 = vmatmul.f32.gmra.mxu0 %v4484
        %v4771 = vpop.f32.mrf.mxu0
        %v4772 = vadd.f32 %v4569, %v4771
        %4773 = vmatmul.f32.gmra.mxu0 %v4485
        %v4774 = vpop.f32.mrf.mxu0
        %v4775 = vadd.f32 %v4569, %v4774
        %4776 = vmatmul.f32.gmra.mxu0 %v4486
        %v4777 = vpop.f32.mrf.mxu0
        %v4778 = vadd.f32 %v4569, %v4777
        %4779 = vmatmul.f32.gmra.mxu0 %v4487
        %v4780 = vpop.f32.mrf.mxu0
        %v4781 = vadd.f32 %v4569, %v4780
        %4782 = vmatmul.f32.gmra.mxu0 %v4488
        %v4783 = vpop.f32.mrf.mxu0
        %v4784 = vadd.f32 %v4569, %v4783
        %4785 = vmatmul.f32.gmra.mxu0 %v4489
        %v4786 = vpop.f32.mrf.mxu0
        %v4787 = vadd.f32 %v4569, %v4786
        %4788 = vmatmul.f32.gmra.mxu0 %v4490
        %v4789 = vpop.f32.mrf.mxu0
        %v4790 = vadd.f32 %v4569, %v4789
        %4791 = vmatmul.f32.gmra.mxu0 %v4491
        %v4792 = vpop.f32.mrf.mxu0
        %v4793 = vadd.f32 %v4569, %v4792
        %4794 = vmatmul.f32.gmra.mxu0 %v4492
        %v4795 = vpop.f32.mrf.mxu0
        %v4796 = vadd.f32 %v4569, %v4795
        %4797 = vmatmul.f32.gmra.mxu0 %v4493
        %v4798 = vpop.f32.mrf.mxu0
        %v4799 = vadd.f32 %v4569, %v4798
        %4800 = vmatmul.f32.gmra.mxu0 %v4494
        %v4801 = vpop.f32.mrf.mxu0
        %v4802 = vadd.f32 %v4569, %v4801
        %4803 = vmatmul.f32.gmra.mxu0 %v4495
        %v4804 = vpop.f32.mrf.mxu0
        %v4805 = vadd.f32 %v4569, %v4804
        %4806 = vmatmul.f32.gmra.mxu0 %v4496
        %v4807 = vpop.f32.mrf.mxu0
        %v4808 = vadd.f32 %v4569, %v4807
        %4809 = vmatmul.f32.gmra.mxu0 %v4497
        %v4810 = vpop.f32.mrf.mxu0
        %v4811 = vadd.f32 %v4569, %v4810
        %4812 = vmatmul.f32.gmra.mxu0 %v4498
        %v4813 = vpop.f32.mrf.mxu0
        %v4814 = vadd.f32 %v4569, %v4813
        %4815 = vmatmul.f32.gmra.mxu0 %v4499
        %v4816 = vpop.f32.mrf.mxu0
        %v4817 = vadd.f32 %v4569, %v4816
        %4818 = vmatmul.f32.gmra.mxu0 %v4500
        %v4819 = vpop.f32.mrf.mxu0
        %v4820 = vadd.f32 %v4569, %v4819
        %4821 = vmatmul.f32.gmra.mxu0 %v4501
        %v4822 = vpop.f32.mrf.mxu0
        %v4823 = vadd.f32 %v4569, %v4822
        %4824 = vmatmul.f32.gmra.mxu0 %v4502
        %v4825 = vpop.f32.mrf.mxu0
        %v4826 = vadd.f32 %v4569, %v4825
        %4827 = vmatmul.f32.gmra.mxu0 %v4503
        %v4828 = vpop.f32.mrf.mxu0
        %v4829 = vadd.f32 %v4569, %v4828
        %4830 = vmatmul.f32.gmra.mxu0 %v4504
        %v4831 = vpop.f32.mrf.mxu0
        %v4832 = vadd.f32 %v4569, %v4831
        %4833 = vmatmul.f32.gmra.mxu0 %v4505
        %v4834 = vpop.f32.mrf.mxu0
        %v4835 = vadd.f32 %v4569, %v4834
        %4836 = vmatmul.f32.gmra.mxu0 %v4506
        %v4837 = vpop.f32.mrf.mxu0
        %v4838 = vadd.f32 %v4569, %v4837
        %4839 = vmatmul.f32.gmra.mxu0 %v4507
        %v4840 = vpop.f32.mrf.mxu0
        %v4841 = vadd.f32 %v4569, %v4840
        %4842 = vmatmul.f32.gmra.mxu0 %v4508
        %v4843 = vpop.f32.mrf.mxu0
        %v4844 = vadd.f32 %v4569, %v4843
        %4845 = vmatmul.f32.gmra.mxu0 %v4509
        %v4846 = vpop.f32.mrf.mxu0
        %v4847 = vadd.f32 %v4569, %v4846
        %4848 = vmatmul.f32.gmra.mxu0 %v4510
        %v4849 = vpop.f32.mrf.mxu0
        %v4850 = vadd.f32 %v4569, %v4849
        %4851 = vmatmul.f32.gmra.mxu0 %v4511
        %v4852 = vpop.f32.mrf.mxu0
        %v4853 = vadd.f32 %v4569, %v4852
        %4854 = vmatmul.f32.gmra.mxu0 %v4512
        %v4855 = vpop.f32.mrf.mxu0
        %v4856 = vadd.f32 %v4569, %v4855
        %4857 = vmatmul.f32.gmra.mxu0 %v4513
        %v4858 = vpop.f32.mrf.mxu0
        %v4859 = vadd.f32 %v4569, %v4858
        %4860 = vmatmul.f32.gmra.mxu0 %v4514
        %v4861 = vpop.f32.mrf.mxu0
        %v4862 = vadd.f32 %v4569, %v4861
        %4863 = vmatmul.f32.gmra.mxu0 %v4515
        %v4864 = vpop.f32.mrf.mxu0
        %v4865 = vadd.f32 %v4569, %v4864
        %4866 = vmatmul.f32.gmra.mxu0 %v4516
        %v4867 = vpop.f32.mrf.mxu0
        %v4868 = vadd.f32 %v4569, %v4867
        %4869 = vmatmul.f32.gmra.mxu0 %v4517
        %v4870 = vpop.f32.mrf.mxu0
        %v4871 = vadd.f32 %v4569, %v4870
        %4872 = vmatmul.f32.gmra.mxu0 %v4518
        %v4873 = vpop.f32.mrf.mxu0
        %v4874 = vadd.f32 %v4569, %v4873
        %4875 = vmatmul.f32.gmra.mxu0 %v4519
        %v4876 = vpop.f32.mrf.mxu0
        %v4877 = vadd.f32 %v4569, %v4876
        %4878 = vmatmul.f32.gmra.mxu0 %v4520
        %v4879 = vpop.f32.mrf.mxu0
        %v4880 = vadd.f32 %v4569, %v4879
        %4881 = vmatmul.f32.gmra.mxu0 %v4521
        %v4882 = vpop.f32.mrf.mxu0
        %v4883 = vadd.f32 %v4569, %v4882
        %4884 = vmatmul.f32.gmra.mxu0 %v4522
        %v4885 = vpop.f32.mrf.mxu0
        %v4886 = vadd.f32 %v4569, %v4885
        %4887 = vmatmul.f32.gmra.mxu0 %v4523
        %v4888 = vpop.f32.mrf.mxu0
        %v4889 = vadd.f32 %v4569, %v4888
        %4890 = vmatmul.f32.gmra.mxu0 %v4524
        %v4891 = vpop.f32.mrf.mxu0
        %v4892 = vadd.f32 %v4569, %v4891
        %4893 = vmatmul.f32.gmra.mxu0 %v4525
        %v4894 = vpop.f32.mrf.mxu0
        %v4895 = vadd.f32 %v4569, %v4894
        %4896 = vmatmul.f32.gmra.mxu0 %v4526
        %v4897 = vpop.f32.mrf.mxu0
        %v4898 = vadd.f32 %v4569, %v4897
        %4899 = vmatmul.f32.gmra.mxu0 %v4527
        %v4900 = vpop.f32.mrf.mxu0
        %v4901 = vadd.f32 %v4569, %v4900
        %4902 = vmatmul.f32.gmra.mxu0 %v4528
        %v4903 = vpop.f32.mrf.mxu0
        %v4904 = vadd.f32 %v4569, %v4903
        %4905 = vmatmul.f32.gmra.mxu0 %v4529
        %v4906 = vpop.f32.mrf.mxu0
        %v4907 = vadd.f32 %v4569, %v4906
        %4908 = vmatmul.f32.gmra.mxu0 %v4530
        %v4909 = vpop.f32.mrf.mxu0
        %v4910 = vadd.f32 %v4569, %v4909
        %4911 = vmatmul.f32.gmra.mxu0 %v4531
        %v4912 = vpop.f32.mrf.mxu0
        %v4913 = vadd.f32 %v4569, %v4912
        %4914 = vmatmul.f32.gmra.mxu0 %v4532
        %v4915 = vpop.f32.mrf.mxu0
        %v4916 = vadd.f32 %v4569, %v4915
        %4917 = vmatmul.f32.gmra.mxu0 %v4533
        %v4918 = vpop.f32.mrf.mxu0
        %v4919 = vadd.f32 %v4569, %v4918
        %4920 = vmatmul.f32.gmra.mxu0 %v4534
        %v4921 = vpop.f32.mrf.mxu0
        %v4922 = vadd.f32 %v4569, %v4921
        %4923 = vmatmul.f32.gmra.mxu0 %v4535
        %v4924 = vpop.f32.mrf.mxu0
        %v4925 = vadd.f32 %v4569, %v4924
        %4926 = vmatmul.f32.gmra.mxu0 %v4536
        %v4927 = vpop.f32.mrf.mxu0
        %v4928 = vadd.f32 %v4569, %v4927
        %4929 = vmatmul.f32.gmra.mxu0 %v4537
        %v4930 = vpop.f32.mrf.mxu0
        %v4931 = vadd.f32 %v4569, %v4930
        %4932 = vmatmul.f32.gmra.mxu0 %v4538
        %v4933 = vpop.f32.mrf.mxu0
        %v4934 = vadd.f32 %v4569, %v4933
        %4935 = vmatmul.f32.gmra.mxu0 %v4539
        %v4936 = vpop.f32.mrf.mxu0
        %v4937 = vadd.f32 %v4569, %v4936
        %4938 = vmatmul.f32.gmra.mxu0 %v4540
        %v4939 = vpop.f32.mrf.mxu0
        %v4940 = vadd.f32 %v4569, %v4939
        %4941 = vmatmul.f32.gmra.mxu0 %v4541
        %v4942 = vpop.f32.mrf.mxu0
        %v4943 = vadd.f32 %v4569, %v4942
        %4944 = vmatmul.f32.gmra.mxu0 %v4542
        %v4945 = vpop.f32.mrf.mxu0
        %v4946 = vadd.f32 %v4569, %v4945
        %4947 = vmatmul.f32.gmra.mxu0 %v4543
        %v4948 = vpop.f32.mrf.mxu0
        %v4949 = vadd.f32 %v4569, %v4948
        %4950 = vmatmul.f32.gmra.mxu0 %v4544
        %v4951 = vpop.f32.mrf.mxu0
        %v4952 = vadd.f32 %v4569, %v4951
        %4953 = vmatmul.f32.gmra.mxu0 %v4545
        %v4954 = vpop.f32.mrf.mxu0
        %v4955 = vadd.f32 %v4569, %v4954
        %4956 = vmatmul.f32.gmra.mxu0 %v4546
        %v4957 = vpop.f32.mrf.mxu0
        %v4958 = vadd.f32 %v4569, %v4957
        %4959 = vmatmul.f32.gmra.mxu0 %v4547
        %v4960 = vpop.f32.mrf.mxu0
        %v4961 = vadd.f32 %v4569, %v4960
        %4962 = vmatmul.f32.gmra.mxu0 %v4548
        %v4963 = vpop.f32.mrf.mxu0
        %v4964 = vadd.f32 %v4569, %v4963
        %4965 = vmatmul.f32.gmra.mxu0 %v4549
        %v4966 = vpop.f32.mrf.mxu0
        %v4967 = vadd.f32 %v4569, %v4966
        %4968 = vmatmul.f32.gmra.mxu0 %v4550
        %v4969 = vpop.f32.mrf.mxu0
        %v4970 = vadd.f32 %v4569, %v4969
        %4971 = vdwg.mxu0
        %v4972 = vtanh.pop %v4589
        %v4973 = vtanh.pop %v4592
        %v4974 = vtanh.pop %v4595
        %v4975 = vtanh.pop %v4598
        %v4976 = vtanh.pop %v4601
        %v4977 = vtanh.pop %v4604
        %v4978 = vtanh.pop %v4607
        %v4979 = vtanh.pop %v4610
        %v4980 = vtanh.pop %v4613
        %v4981 = vtanh.pop %v4616
        %v4982 = vtanh.pop %v4619
        %v4983 = vtanh.pop %v4622
        %v4984 = vtanh.pop %v4625
        %v4985 = vtanh.pop %v4628
        %v4986 = vtanh.pop %v4631
        %v4987 = vtanh.pop %v4634
        %v4988 = vtanh.pop %v4637
        %v4989 = vtanh.pop %v4640
        %v4990 = vtanh.pop %v4643
        %v4991 = vtanh.pop %v4646
        %v4992 = vtanh.pop %v4649
        %v4993 = vtanh.pop %v4652
        %v4994 = vtanh.pop %v4655
        %v4995 = vtanh.pop %v4658
        %v4996 = vtanh.pop %v4661
        %v4997 = vtanh.pop %v4664
        %v4998 = vtanh.pop %v4667
        %v4999 = vtanh.pop %v4670
        %v5000 = vtanh.pop %v4673
        %v5001 = vtanh.pop %v4676
        %v5002 = vtanh.pop %v4679
        %v5003 = vtanh.pop %v4682
        %v5004 = vtanh.pop %v4685
        %v5005 = vtanh.pop %v4688
        %v5006 = vtanh.pop %v4691
        %v5007 = vtanh.pop %v4694
        %v5008 = vtanh.pop %v4697
        %v5009 = vtanh.pop %v4700
        %v5010 = vtanh.pop %v4703
        %v5011 = vtanh.pop %v4706
        %v5012 = vtanh.pop %v4709
        %v5013 = vtanh.pop %v4712
        %v5014 = vtanh.pop %v4715
        %v5015 = vtanh.pop %v4718
        %v5016 = vtanh.pop %v4721
        %v5017 = vtanh.pop %v4724
        %v5018 = vtanh.pop %v4727
        %v5019 = vtanh.pop %v4730
        %v5020 = vtanh.pop %v4733
        %v5021 = vtanh.pop %v4736
        %v5022 = vtanh.pop %v4739
        %v5023 = vtanh.pop %v4742
        %v5024 = vtanh.pop %v4745
        %v5025 = vtanh.pop %v4748
        %v5026 = vtanh.pop %v4751
        %v5027 = vtanh.pop %v4754
        %v5028 = vtanh.pop %v4757
        %v5029 = vtanh.pop %v4760
        %v5030 = vtanh.pop %v4763
        %v5031 = vtanh.pop %v4766
        %v5032 = vtanh.pop %v4769
        %v5033 = vtanh.pop %v4772
        %v5034 = vtanh.pop %v4775
        %v5035 = vtanh.pop %v4778
        %v5036 = vtanh.pop %v4781
        %v5037 = vtanh.pop %v4784
        %v5038 = vtanh.pop %v4787
        %v5039 = vtanh.pop %v4790
        %v5040 = vtanh.pop %v4793
        %v5041 = vtanh.pop %v4796
        %v5042 = vtanh.pop %v4799
        %v5043 = vtanh.pop %v4802
        %v5044 = vtanh.pop %v4805
        %v5045 = vtanh.pop %v4808
        %v5046 = vtanh.pop %v4811
        %v5047 = vtanh.pop %v4814
        %v5048 = vtanh.pop %v4817
        %v5049 = vtanh.pop %v4820
        %v5050 = vtanh.pop %v4823
        %v5051 = vtanh.pop %v4826
        %v5052 = vtanh.pop %v4829
        %v5053 = vtanh.pop %v4832
        %v5054 = vtanh.pop %v4835
        %v5055 = vtanh.pop %v4838
        %v5056 = vtanh.pop %v4841
        %v5057 = vtanh.pop %v4844
        %v5058 = vtanh.pop %v4847
        %v5059 = vtanh.pop %v4850
        %v5060 = vtanh.pop %v4853
        %v5061 = vtanh.pop %v4856
        %v5062 = vtanh.pop %v4859
        %v5063 = vtanh.pop %v4862
        %v5064 = vtanh.pop %v4865
        %v5065 = vtanh.pop %v4868
        %v5066 = vtanh.pop %v4871
        %v5067 = vtanh.pop %v4874
        %v5068 = vtanh.pop %v4877
        %v5069 = vtanh.pop %v4880
        %v5070 = vtanh.pop %v4883
        %v5071 = vtanh.pop %v4886
        %v5072 = vtanh.pop %v4889
        %v5073 = vtanh.pop %v4892
        %v5074 = vtanh.pop %v4895
        %v5075 = vtanh.pop %v4898
        %v5076 = vtanh.pop %v4901
        %v5077 = vtanh.pop %v4904
        %v5078 = vtanh.pop %v4907
        %v5079 = vtanh.pop %v4910
        %v5080 = vtanh.pop %v4913
        %v5081 = vtanh.pop %v4916
        %v5082 = vtanh.pop %v4919
        %v5083 = vtanh.pop %v4922
        %v5084 = vtanh.pop %v4925
        %v5085 = vtanh.pop %v4928
        %v5086 = vtanh.pop %v4931
        %v5087 = vtanh.pop %v4934
        %v5088 = vtanh.pop %v4937
        %v5089 = vtanh.pop %v4940
        %v5090 = vtanh.pop %v4943
        %v5091 = vtanh.pop %v4946
        %v5092 = vtanh.pop %v4949
        %v5093 = vtanh.pop %v4952
        %v5094 = vtanh.pop %v4955
        %v5095 = vtanh.pop %v4958
        %v5096 = vtanh.pop %v4961
        %v5097 = vtanh.pop %v4964
        %v5098 = vtanh.pop %v4967
        %v5099 = vtanh.pop %v4970
        %v5100 = vmul.f32 %v4972, %v3618
        %v5101 = vmul.f32 %v4973, %v3619
        %v5102 = vmul.f32 %v4974, %v3620
        %v5103 = vmul.f32 %v4975, %v3621
        %v5104 = vmul.f32 %v4976, %v3622
        %v5105 = vmul.f32 %v4977, %v3623
        %v5106 = vmul.f32 %v4978, %v3624
        %v5107 = vmul.f32 %v4979, %v3625
        %v5108 = vmul.f32 %v4980, %v3626
        %v5109 = vmul.f32 %v4981, %v3627
        %v5110 = vmul.f32 %v4982, %v3628
        %v5111 = vmul.f32 %v4983, %v3629
        %v5112 = vmul.f32 %v4984, %v3630
        %v5113 = vmul.f32 %v4985, %v3631
        %v5114 = vmul.f32 %v4986, %v3632
        %v5115 = vmul.f32 %v4987, %v3633
        %v5116 = vmul.f32 %v4988, %v3634
        %v5117 = vmul.f32 %v4989, %v3635
        %v5118 = vmul.f32 %v4990, %v3636
        %v5119 = vmul.f32 %v4991, %v3637
        %v5120 = vmul.f32 %v4992, %v3638
        %v5121 = vmul.f32 %v4993, %v3639
        %v5122 = vmul.f32 %v4994, %v3640
        %v5123 = vmul.f32 %v4995, %v3641
        %v5124 = vmul.f32 %v4996, %v3642
        %v5125 = vmul.f32 %v4997, %v3643
        %v5126 = vmul.f32 %v4998, %v3644
        %v5127 = vmul.f32 %v4999, %v3645
        %v5128 = vmul.f32 %v5000, %v3646
        %v5129 = vmul.f32 %v5001, %v3647
        %v5130 = vmul.f32 %v5002, %v3648
        %v5131 = vmul.f32 %v5003, %v3649
        %v5132 = vmul.f32 %v5004, %v3650
        %v5133 = vmul.f32 %v5005, %v3651
        %v5134 = vmul.f32 %v5006, %v3652
        %v5135 = vmul.f32 %v5007, %v3653
        %v5136 = vmul.f32 %v5008, %v3654
        %v5137 = vmul.f32 %v5009, %v3655
        %v5138 = vmul.f32 %v5010, %v3656
        %v5139 = vmul.f32 %v5011, %v3657
        %v5140 = vmul.f32 %v5012, %v3658
        %v5141 = vmul.f32 %v5013, %v3659
        %v5142 = vmul.f32 %v5014, %v3660
        %v5143 = vmul.f32 %v5015, %v3661
        %v5144 = vmul.f32 %v5016, %v3662
        %v5145 = vmul.f32 %v5017, %v3663
        %v5146 = vmul.f32 %v5018, %v3664
        %v5147 = vmul.f32 %v5019, %v3665
        %v5148 = vmul.f32 %v5020, %v3666
        %v5149 = vmul.f32 %v5021, %v3667
        %v5150 = vmul.f32 %v5022, %v3668
        %v5151 = vmul.f32 %v5023, %v3669
        %v5152 = vmul.f32 %v5024, %v3670
        %v5153 = vmul.f32 %v5025, %v3671
        %v5154 = vmul.f32 %v5026, %v3672
        %v5155 = vmul.f32 %v5027, %v3673
        %v5156 = vmul.f32 %v5028, %v3674
        %v5157 = vmul.f32 %v5029, %v3675
        %v5158 = vmul.f32 %v5030, %v3676
        %v5159 = vmul.f32 %v5031, %v3677
        %v5160 = vmul.f32 %v5032, %v3678
        %v5161 = vmul.f32 %v5033, %v3679
        %v5162 = vmul.f32 %v5034, %v3680
        %v5163 = vmul.f32 %v5035, %v3681
        %v5164 = vmul.f32 %v5036, %v3682
        %v5165 = vmul.f32 %v5037, %v3683
        %v5166 = vmul.f32 %v5038, %v3684
        %v5167 = vmul.f32 %v5039, %v3685
        %v5168 = vmul.f32 %v5040, %v3686
        %v5169 = vmul.f32 %v5041, %v3687
        %v5170 = vmul.f32 %v5042, %v3688
        %v5171 = vmul.f32 %v5043, %v3689
        %v5172 = vmul.f32 %v5044, %v3690
        %v5173 = vmul.f32 %v5045, %v3691
        %v5174 = vmul.f32 %v5046, %v3692
        %v5175 = vmul.f32 %v5047, %v3693
        %v5176 = vmul.f32 %v5048, %v3694
        %v5177 = vmul.f32 %v5049, %v3695
        %v5178 = vmul.f32 %v5050, %v3696
        %v5179 = vmul.f32 %v5051, %v3697
        %v5180 = vmul.f32 %v5052, %v3698
        %v5181 = vmul.f32 %v5053, %v3699
        %v5182 = vmul.f32 %v5054, %v3700
        %v5183 = vmul.f32 %v5055, %v3701
        %v5184 = vmul.f32 %v5056, %v3702
        %v5185 = vmul.f32 %v5057, %v3703
        %v5186 = vmul.f32 %v5058, %v3704
        %v5187 = vmul.f32 %v5059, %v3705
        %v5188 = vmul.f32 %v5060, %v3706
        %v5189 = vmul.f32 %v5061, %v3707
        %v5190 = vmul.f32 %v5062, %v3708
        %v5191 = vmul.f32 %v5063, %v3709
        %v5192 = vmul.f32 %v5064, %v3710
        %v5193 = vmul.f32 %v5065, %v3711
        %v5194 = vmul.f32 %v5066, %v3712
        %v5195 = vmul.f32 %v5067, %v3713
        %v5196 = vmul.f32 %v5068, %v3714
        %v5197 = vmul.f32 %v5069, %v3715
        %v5198 = vmul.f32 %v5070, %v3716
        %v5199 = vmul.f32 %v5071, %v3717
        %v5200 = vmul.f32 %v5072, %v3718
        %v5201 = vmul.f32 %v5073, %v3719
        %v5202 = vmul.f32 %v5074, %v3720
        %v5203 = vmul.f32 %v5075, %v3721
        %v5204 = vmul.f32 %v5076, %v3722
        %v5205 = vmul.f32 %v5077, %v3723
        %v5206 = vmul.f32 %v5078, %v3724
        %v5207 = vmul.f32 %v5079, %v3725
        %v5208 = vmul.f32 %v5080, %v3726
        %v5209 = vmul.f32 %v5081, %v3727
        %v5210 = vmul.f32 %v5082, %v3728
        %v5211 = vmul.f32 %v5083, %v3729
        %v5212 = vmul.f32 %v5084, %v3730
        %v5213 = vmul.f32 %v5085, %v3731
        %v5214 = vmul.f32 %v5086, %v3732
        %v5215 = vmul.f32 %v5087, %v3733
        %v5216 = vmul.f32 %v5088, %v3734
        %v5217 = vmul.f32 %v5089, %v3735
        %v5218 = vmul.f32 %v5090, %v3736
        %v5219 = vmul.f32 %v5091, %v3737
        %v5220 = vmul.f32 %v5092, %v3738
        %v5221 = vmul.f32 %v5093, %v3739
        %v5222 = vmul.f32 %v5094, %v3740
        %v5223 = vmul.f32 %v5095, %v3741
        %v5224 = vmul.f32 %v5096, %v3742
        %v5225 = vmul.f32 %v5097, %v3743
        %v5226 = vmul.f32 %v5098, %v3744
        %v5227 = vmul.f32 %v5099, %v3745
        %v5228 = vadd.f32 %v3234, %v5100
        %v5229 = vadd.f32 %v3237, %v5101
        %v5230 = vadd.f32 %v3240, %v5102
        %v5231 = vadd.f32 %v3243, %v5103
        %v5232 = vadd.f32 %v3246, %v5104
        %v5233 = vadd.f32 %v3249, %v5105
        %v5234 = vadd.f32 %v3252, %v5106
        %v5235 = vadd.f32 %v3255, %v5107
        %v5236 = vadd.f32 %v3258, %v5108
        %v5237 = vadd.f32 %v3261, %v5109
        %v5238 = vadd.f32 %v3264, %v5110
        %v5239 = vadd.f32 %v3267, %v5111
        %v5240 = vadd.f32 %v3270, %v5112
        %v5241 = vadd.f32 %v3273, %v5113
        %v5242 = vadd.f32 %v3276, %v5114
        %v5243 = vadd.f32 %v3279, %v5115
        %v5244 = vadd.f32 %v3282, %v5116
        %v5245 = vadd.f32 %v3285, %v5117
        %v5246 = vadd.f32 %v3288, %v5118
        %v5247 = vadd.f32 %v3291, %v5119
        %v5248 = vadd.f32 %v3294, %v5120
        %v5249 = vadd.f32 %v3297, %v5121
        %v5250 = vadd.f32 %v3300, %v5122
        %v5251 = vadd.f32 %v3303, %v5123
        %v5252 = vadd.f32 %v3306, %v5124
        %v5253 = vadd.f32 %v3309, %v5125
        %v5254 = vadd.f32 %v3312, %v5126
        %v5255 = vadd.f32 %v3315, %v5127
        %v5256 = vadd.f32 %v3318, %v5128
        %v5257 = vadd.f32 %v3321, %v5129
        %v5258 = vadd.f32 %v3324, %v5130
        %v5259 = vadd.f32 %v3327, %v5131
        %v5260 = vadd.f32 %v3330, %v5132
        %v5261 = vadd.f32 %v3333, %v5133
        %v5262 = vadd.f32 %v3336, %v5134
        %v5263 = vadd.f32 %v3339, %v5135
        %v5264 = vadd.f32 %v3342, %v5136
        %v5265 = vadd.f32 %v3345, %v5137
        %v5266 = vadd.f32 %v3348, %v5138
        %v5267 = vadd.f32 %v3351, %v5139
        %v5268 = vadd.f32 %v3354, %v5140
        %v5269 = vadd.f32 %v3357, %v5141
        %v5270 = vadd.f32 %v3360, %v5142
        %v5271 = vadd.f32 %v3363, %v5143
        %v5272 = vadd.f32 %v3366, %v5144
        %v5273 = vadd.f32 %v3369, %v5145
        %v5274 = vadd.f32 %v3372, %v5146
        %v5275 = vadd.f32 %v3375, %v5147
        %v5276 = vadd.f32 %v3378, %v5148
        %v5277 = vadd.f32 %v3381, %v5149
        %v5278 = vadd.f32 %v3384, %v5150
        %v5279 = vadd.f32 %v3387, %v5151
        %v5280 = vadd.f32 %v3390, %v5152
        %v5281 = vadd.f32 %v3393, %v5153
        %v5282 = vadd.f32 %v3396, %v5154
        %v5283 = vadd.f32 %v3399, %v5155
        %v5284 = vadd.f32 %v3402, %v5156
        %v5285 = vadd.f32 %v3405, %v5157
        %v5286 = vadd.f32 %v3408, %v5158
        %v5287 = vadd.f32 %v3411, %v5159
        %v5288 = vadd.f32 %v3414, %v5160
        %v5289 = vadd.f32 %v3417, %v5161
        %v5290 = vadd.f32 %v3420, %v5162
        %v5291 = vadd.f32 %v3423, %v5163
        %v5292 = vadd.f32 %v3426, %v5164
        %v5293 = vadd.f32 %v3429, %v5165
        %v5294 = vadd.f32 %v3432, %v5166
        %v5295 = vadd.f32 %v3435, %v5167
        %v5296 = vadd.f32 %v3438, %v5168
        %v5297 = vadd.f32 %v3441, %v5169
        %v5298 = vadd.f32 %v3444, %v5170
        %v5299 = vadd.f32 %v3447, %v5171
        %v5300 = vadd.f32 %v3450, %v5172
        %v5301 = vadd.f32 %v3453, %v5173
        %v5302 = vadd.f32 %v3456, %v5174
        %v5303 = vadd.f32 %v3459, %v5175
        %v5304 = vadd.f32 %v3462, %v5176
        %v5305 = vadd.f32 %v3465, %v5177
        %v5306 = vadd.f32 %v3468, %v5178
        %v5307 = vadd.f32 %v3471, %v5179
        %v5308 = vadd.f32 %v3474, %v5180
        %v5309 = vadd.f32 %v3477, %v5181
        %v5310 = vadd.f32 %v3480, %v5182
        %v5311 = vadd.f32 %v3483, %v5183
        %v5312 = vadd.f32 %v3486, %v5184
        %v5313 = vadd.f32 %v3489, %v5185
        %v5314 = vadd.f32 %v3492, %v5186
        %v5315 = vadd.f32 %v3495, %v5187
        %v5316 = vadd.f32 %v3498, %v5188
        %v5317 = vadd.f32 %v3501, %v5189
        %v5318 = vadd.f32 %v3504, %v5190
        %v5319 = vadd.f32 %v3507, %v5191
        %v5320 = vadd.f32 %v3510, %v5192
        %v5321 = vadd.f32 %v3513, %v5193
        %v5322 = vadd.f32 %v3516, %v5194
        %v5323 = vadd.f32 %v3519, %v5195
        %v5324 = vadd.f32 %v3522, %v5196
        %v5325 = vadd.f32 %v3525, %v5197
        %v5326 = vadd.f32 %v3528, %v5198
        %v5327 = vadd.f32 %v3531, %v5199
        %v5328 = vadd.f32 %v3534, %v5200
        %v5329 = vadd.f32 %v3537, %v5201
        %v5330 = vadd.f32 %v3540, %v5202
        %v5331 = vadd.f32 %v3543, %v5203
        %v5332 = vadd.f32 %v3546, %v5204
        %v5333 = vadd.f32 %v3549, %v5205
        %v5334 = vadd.f32 %v3552, %v5206
        %v5335 = vadd.f32 %v3555, %v5207
        %v5336 = vadd.f32 %v3558, %v5208
        %v5337 = vadd.f32 %v3561, %v5209
        %v5338 = vadd.f32 %v3564, %v5210
        %v5339 = vadd.f32 %v3567, %v5211
        %v5340 = vadd.f32 %v3570, %v5212
        %v5341 = vadd.f32 %v3573, %v5213
        %v5342 = vadd.f32 %v3576, %v5214
        %v5343 = vadd.f32 %v3579, %v5215
        %v5344 = vadd.f32 %v3582, %v5216
        %v5345 = vadd.f32 %v3585, %v5217
        %v5346 = vadd.f32 %v3588, %v5218
        %v5347 = vadd.f32 %v3591, %v5219
        %v5348 = vadd.f32 %v3594, %v5220
        %v5349 = vadd.f32 %v3597, %v5221
        %v5350 = vadd.f32 %v3600, %v5222
        %v5351 = vadd.f32 %v3603, %v5223
        %v5352 = vadd.f32 %v3606, %v5224
        %v5353 = vadd.f32 %v3609, %v5225
        %v5354 = vadd.f32 %v3612, %v5226
        %v5355 = vadd.f32 %v3615, %v5227
        %v5356 = vld [vmem:[%s7] sm:$0xff]
        %v5357 = vld [vmem:[%s7 + $0x8] sm:$0xff]
        %v5358 = vld [vmem:[%s7 + $0x10] sm:$0xff]
        %v5359 = vld [vmem:[%s7 + $0x18] sm:$0xff]
        %v5360 = vld [vmem:[%s7 + $0x20] sm:$0xff]
        %v5361 = vld [vmem:[%s7 + $0x28] sm:$0xff]
        %v5362 = vld [vmem:[%s7 + $0x30] sm:$0xff]
        %v5363 = vld [vmem:[%s7 + $0x38] sm:$0xff]
        %v5364 = vld [vmem:[%s7 + $0x40] sm:$0xff]
        %v5365 = vld [vmem:[%s7 + $0x48] sm:$0xff]
        %v5366 = vld [vmem:[%s7 + $0x50] sm:$0xff]
        %v5367 = vld [vmem:[%s7 + $0x58] sm:$0xff]
        %v5368 = vld [vmem:[%s7 + $0x60] sm:$0xff]
        %v5369 = vld [vmem:[%s7 + $0x68] sm:$0xff]
        %v5370 = vld [vmem:[%s7 + $0x70] sm:$0xff]
        %v5371 = vld [vmem:[%s7 + $0x78] sm:$0xff]
        %v5372 = vld [vmem:[%s8] sm:$0x1]
        %v5374 = vperm.slane %v5372, 0
        %5376 = vmatpush.msra.mxu0 %v5371
        %5377 = vmatpush.msra.mxu0 %v5370
        %5378 = vmatpush.msra.mxu0 %v5369
        %5379 = vmatpush.msra.mxu0 %v5368
        %5380 = vmatpush.msra.mxu0 %v5367
        %5381 = vmatpush.msra.mxu0 %v5366
        %5382 = vmatpush.msra.mxu0 %v5365
        %5383 = vmatpush.msra.mxu0 %v5364
        %5384 = vmatpush.msra.mxu0 %v5363
        %5385 = vmatpush.msra.mxu0 %v5362
        %5386 = vmatpush.msra.mxu0 %v5361
        %5387 = vmatpush.msra.mxu0 %v5360
        %5388 = vmatpush.msra.mxu0 %v5359
        %5389 = vmatpush.msra.mxu0 %v5358
        %5390 = vmatpush.msra.mxu0 %v5357
        %5391 = vmatpush.msra.mxu0 %v5356
        %5392 = vmatmul.f32.gmra.mxu0 %v5228
        %v5393 = vpop.f32.mrf.mxu0
        %v5394 = vadd.f32 %v5374, %v5393
        %5395 = vmatmul.f32.gmra.mxu0 %v5229
        %v5396 = vpop.f32.mrf.mxu0
        %v5397 = vadd.f32 %v5374, %v5396
        %5398 = vmatmul.f32.gmra.mxu0 %v5230
        %v5399 = vpop.f32.mrf.mxu0
        %v5400 = vadd.f32 %v5374, %v5399
        %5401 = vmatmul.f32.gmra.mxu0 %v5231
        %v5402 = vpop.f32.mrf.mxu0
        %v5403 = vadd.f32 %v5374, %v5402
        %5404 = vmatmul.f32.gmra.mxu0 %v5232
        %v5405 = vpop.f32.mrf.mxu0
        %v5406 = vadd.f32 %v5374, %v5405
        %5407 = vmatmul.f32.gmra.mxu0 %v5233
        %v5408 = vpop.f32.mrf.mxu0
        %v5409 = vadd.f32 %v5374, %v5408
        %5410 = vmatmul.f32.gmra.mxu0 %v5234
        %v5411 = vpop.f32.mrf.mxu0
        %v5412 = vadd.f32 %v5374, %v5411
        %5413 = vmatmul.f32.gmra.mxu0 %v5235
        %v5414 = vpop.f32.mrf.mxu0
        %v5415 = vadd.f32 %v5374, %v5414
        %5416 = vmatmul.f32.gmra.mxu0 %v5236
        %v5417 = vpop.f32.mrf.mxu0
        %v5418 = vadd.f32 %v5374, %v5417
        %5419 = vmatmul.f32.gmra.mxu0 %v5237
        %v5420 = vpop.f32.mrf.mxu0
        %v5421 = vadd.f32 %v5374, %v5420
        %5422 = vmatmul.f32.gmra.mxu0 %v5238
        %v5423 = vpop.f32.mrf.mxu0
        %v5424 = vadd.f32 %v5374, %v5423
        %5425 = vmatmul.f32.gmra.mxu0 %v5239
        %v5426 = vpop.f32.mrf.mxu0
        %v5427 = vadd.f32 %v5374, %v5426
        %5428 = vmatmul.f32.gmra.mxu0 %v5240
        %v5429 = vpop.f32.mrf.mxu0
        %v5430 = vadd.f32 %v5374, %v5429
        %5431 = vmatmul.f32.gmra.mxu0 %v5241
        %v5432 = vpop.f32.mrf.mxu0
        %v5433 = vadd.f32 %v5374, %v5432
        %5434 = vmatmul.f32.gmra.mxu0 %v5242
        %v5435 = vpop.f32.mrf.mxu0
        %v5436 = vadd.f32 %v5374, %v5435
        %5437 = vmatmul.f32.gmra.mxu0 %v5243
        %v5438 = vpop.f32.mrf.mxu0
        %v5439 = vadd.f32 %v5374, %v5438
        %5440 = vmatmul.f32.gmra.mxu0 %v5244
        %v5441 = vpop.f32.mrf.mxu0
        %v5442 = vadd.f32 %v5374, %v5441
        %5443 = vmatmul.f32.gmra.mxu0 %v5245
        %v5444 = vpop.f32.mrf.mxu0
        %v5445 = vadd.f32 %v5374, %v5444
        %5446 = vmatmul.f32.gmra.mxu0 %v5246
        %v5447 = vpop.f32.mrf.mxu0
        %v5448 = vadd.f32 %v5374, %v5447
        %5449 = vmatmul.f32.gmra.mxu0 %v5247
        %v5450 = vpop.f32.mrf.mxu0
        %v5451 = vadd.f32 %v5374, %v5450
        %5452 = vmatmul.f32.gmra.mxu0 %v5248
        %v5453 = vpop.f32.mrf.mxu0
        %v5454 = vadd.f32 %v5374, %v5453
        %5455 = vmatmul.f32.gmra.mxu0 %v5249
        %v5456 = vpop.f32.mrf.mxu0
        %v5457 = vadd.f32 %v5374, %v5456
        %5458 = vmatmul.f32.gmra.mxu0 %v5250
        %v5459 = vpop.f32.mrf.mxu0
        %v5460 = vadd.f32 %v5374, %v5459
        %5461 = vmatmul.f32.gmra.mxu0 %v5251
        %v5462 = vpop.f32.mrf.mxu0
        %v5463 = vadd.f32 %v5374, %v5462
        %5464 = vmatmul.f32.gmra.mxu0 %v5252
        %v5465 = vpop.f32.mrf.mxu0
        %v5466 = vadd.f32 %v5374, %v5465
        %5467 = vmatmul.f32.gmra.mxu0 %v5253
        %v5468 = vpop.f32.mrf.mxu0
        %v5469 = vadd.f32 %v5374, %v5468
        %5470 = vmatmul.f32.gmra.mxu0 %v5254
        %v5471 = vpop.f32.mrf.mxu0
        %v5472 = vadd.f32 %v5374, %v5471
        %5473 = vmatmul.f32.gmra.mxu0 %v5255
        %v5474 = vpop.f32.mrf.mxu0
        %v5475 = vadd.f32 %v5374, %v5474
        %5476 = vmatmul.f32.gmra.mxu0 %v5256
        %v5477 = vpop.f32.mrf.mxu0
        %v5478 = vadd.f32 %v5374, %v5477
        %5479 = vmatmul.f32.gmra.mxu0 %v5257
        %v5480 = vpop.f32.mrf.mxu0
        %v5481 = vadd.f32 %v5374, %v5480
        %5482 = vmatmul.f32.gmra.mxu0 %v5258
        %v5483 = vpop.f32.mrf.mxu0
        %v5484 = vadd.f32 %v5374, %v5483
        %5485 = vmatmul.f32.gmra.mxu0 %v5259
        %v5486 = vpop.f32.mrf.mxu0
        %v5487 = vadd.f32 %v5374, %v5486
        %5488 = vmatmul.f32.gmra.mxu0 %v5260
        %v5489 = vpop.f32.mrf.mxu0
        %v5490 = vadd.f32 %v5374, %v5489
        %5491 = vmatmul.f32.gmra.mxu0 %v5261
        %v5492 = vpop.f32.mrf.mxu0
        %v5493 = vadd.f32 %v5374, %v5492
        %5494 = vmatmul.f32.gmra.mxu0 %v5262
        %v5495 = vpop.f32.mrf.mxu0
        %v5496 = vadd.f32 %v5374, %v5495
        %5497 = vmatmul.f32.gmra.mxu0 %v5263
        %v5498 = vpop.f32.mrf.mxu0
        %v5499 = vadd.f32 %v5374, %v5498
        %5500 = vmatmul.f32.gmra.mxu0 %v5264
        %v5501 = vpop.f32.mrf.mxu0
        %v5502 = vadd.f32 %v5374, %v5501
        %5503 = vmatmul.f32.gmra.mxu0 %v5265
        %v5504 = vpop.f32.mrf.mxu0
        %v5505 = vadd.f32 %v5374, %v5504
        %5506 = vmatmul.f32.gmra.mxu0 %v5266
        %v5507 = vpop.f32.mrf.mxu0
        %v5508 = vadd.f32 %v5374, %v5507
        %5509 = vmatmul.f32.gmra.mxu0 %v5267
        %v5510 = vpop.f32.mrf.mxu0
        %v5511 = vadd.f32 %v5374, %v5510
        %5512 = vmatmul.f32.gmra.mxu0 %v5268
        %v5513 = vpop.f32.mrf.mxu0
        %v5514 = vadd.f32 %v5374, %v5513
        %5515 = vmatmul.f32.gmra.mxu0 %v5269
        %v5516 = vpop.f32.mrf.mxu0
        %v5517 = vadd.f32 %v5374, %v5516
        %5518 = vmatmul.f32.gmra.mxu0 %v5270
        %v5519 = vpop.f32.mrf.mxu0
        %v5520 = vadd.f32 %v5374, %v5519
        %5521 = vmatmul.f32.gmra.mxu0 %v5271
        %v5522 = vpop.f32.mrf.mxu0
        %v5523 = vadd.f32 %v5374, %v5522
        %5524 = vmatmul.f32.gmra.mxu0 %v5272
        %v5525 = vpop.f32.mrf.mxu0
        %v5526 = vadd.f32 %v5374, %v5525
        %5527 = vmatmul.f32.gmra.mxu0 %v5273
        %v5528 = vpop.f32.mrf.mxu0
        %v5529 = vadd.f32 %v5374, %v5528
        %5530 = vmatmul.f32.gmra.mxu0 %v5274
        %v5531 = vpop.f32.mrf.mxu0
        %v5532 = vadd.f32 %v5374, %v5531
        %5533 = vmatmul.f32.gmra.mxu0 %v5275
        %v5534 = vpop.f32.mrf.mxu0
        %v5535 = vadd.f32 %v5374, %v5534
        %5536 = vmatmul.f32.gmra.mxu0 %v5276
        %v5537 = vpop.f32.mrf.mxu0
        %v5538 = vadd.f32 %v5374, %v5537
        %5539 = vmatmul.f32.gmra.mxu0 %v5277
        %v5540 = vpop.f32.mrf.mxu0
        %v5541 = vadd.f32 %v5374, %v5540
        %5542 = vmatmul.f32.gmra.mxu0 %v5278
        %v5543 = vpop.f32.mrf.mxu0
        %v5544 = vadd.f32 %v5374, %v5543
        %5545 = vmatmul.f32.gmra.mxu0 %v5279
        %v5546 = vpop.f32.mrf.mxu0
        %v5547 = vadd.f32 %v5374, %v5546
        %5548 = vmatmul.f32.gmra.mxu0 %v5280
        %v5549 = vpop.f32.mrf.mxu0
        %v5550 = vadd.f32 %v5374, %v5549
        %5551 = vmatmul.f32.gmra.mxu0 %v5281
        %v5552 = vpop.f32.mrf.mxu0
        %v5553 = vadd.f32 %v5374, %v5552
        %5554 = vmatmul.f32.gmra.mxu0 %v5282
        %v5555 = vpop.f32.mrf.mxu0
        %v5556 = vadd.f32 %v5374, %v5555
        %5557 = vmatmul.f32.gmra.mxu0 %v5283
        %v5558 = vpop.f32.mrf.mxu0
        %v5559 = vadd.f32 %v5374, %v5558
        %5560 = vmatmul.f32.gmra.mxu0 %v5284
        %v5561 = vpop.f32.mrf.mxu0
        %v5562 = vadd.f32 %v5374, %v5561
        %5563 = vmatmul.f32.gmra.mxu0 %v5285
        %v5564 = vpop.f32.mrf.mxu0
        %v5565 = vadd.f32 %v5374, %v5564
        %5566 = vmatmul.f32.gmra.mxu0 %v5286
        %v5567 = vpop.f32.mrf.mxu0
        %v5568 = vadd.f32 %v5374, %v5567
        %5569 = vmatmul.f32.gmra.mxu0 %v5287
        %v5570 = vpop.f32.mrf.mxu0
        %v5571 = vadd.f32 %v5374, %v5570
        %5572 = vmatmul.f32.gmra.mxu0 %v5288
        %v5573 = vpop.f32.mrf.mxu0
        %v5574 = vadd.f32 %v5374, %v5573
        %5575 = vmatmul.f32.gmra.mxu0 %v5289
        %v5576 = vpop.f32.mrf.mxu0
        %v5577 = vadd.f32 %v5374, %v5576
        %5578 = vmatmul.f32.gmra.mxu0 %v5290
        %v5579 = vpop.f32.mrf.mxu0
        %v5580 = vadd.f32 %v5374, %v5579
        %5581 = vmatmul.f32.gmra.mxu0 %v5291
        %v5582 = vpop.f32.mrf.mxu0
        %v5583 = vadd.f32 %v5374, %v5582
        %5584 = vmatmul.f32.gmra.mxu0 %v5292
        %v5585 = vpop.f32.mrf.mxu0
        %v5586 = vadd.f32 %v5374, %v5585
        %5587 = vmatmul.f32.gmra.mxu0 %v5293
        %v5588 = vpop.f32.mrf.mxu0
        %v5589 = vadd.f32 %v5374, %v5588
        %5590 = vmatmul.f32.gmra.mxu0 %v5294
        %v5591 = vpop.f32.mrf.mxu0
        %v5592 = vadd.f32 %v5374, %v5591
        %5593 = vmatmul.f32.gmra.mxu0 %v5295
        %v5594 = vpop.f32.mrf.mxu0
        %v5595 = vadd.f32 %v5374, %v5594
        %5596 = vmatmul.f32.gmra.mxu0 %v5296
        %v5597 = vpop.f32.mrf.mxu0
        %v5598 = vadd.f32 %v5374, %v5597
        %5599 = vmatmul.f32.gmra.mxu0 %v5297
        %v5600 = vpop.f32.mrf.mxu0
        %v5601 = vadd.f32 %v5374, %v5600
        %5602 = vmatmul.f32.gmra.mxu0 %v5298
        %v5603 = vpop.f32.mrf.mxu0
        %v5604 = vadd.f32 %v5374, %v5603
        %5605 = vmatmul.f32.gmra.mxu0 %v5299
        %v5606 = vpop.f32.mrf.mxu0
        %v5607 = vadd.f32 %v5374, %v5606
        %5608 = vmatmul.f32.gmra.mxu0 %v5300
        %v5609 = vpop.f32.mrf.mxu0
        %v5610 = vadd.f32 %v5374, %v5609
        %5611 = vmatmul.f32.gmra.mxu0 %v5301
        %v5612 = vpop.f32.mrf.mxu0
        %v5613 = vadd.f32 %v5374, %v5612
        %5614 = vmatmul.f32.gmra.mxu0 %v5302
        %v5615 = vpop.f32.mrf.mxu0
        %v5616 = vadd.f32 %v5374, %v5615
        %5617 = vmatmul.f32.gmra.mxu0 %v5303
        %v5618 = vpop.f32.mrf.mxu0
        %v5619 = vadd.f32 %v5374, %v5618
        %5620 = vmatmul.f32.gmra.mxu0 %v5304
        %v5621 = vpop.f32.mrf.mxu0
        %v5622 = vadd.f32 %v5374, %v5621
        %5623 = vmatmul.f32.gmra.mxu0 %v5305
        %v5624 = vpop.f32.mrf.mxu0
        %v5625 = vadd.f32 %v5374, %v5624
        %5626 = vmatmul.f32.gmra.mxu0 %v5306
        %v5627 = vpop.f32.mrf.mxu0
        %v5628 = vadd.f32 %v5374, %v5627
        %5629 = vmatmul.f32.gmra.mxu0 %v5307
        %v5630 = vpop.f32.mrf.mxu0
        %v5631 = vadd.f32 %v5374, %v5630
        %5632 = vmatmul.f32.gmra.mxu0 %v5308
        %v5633 = vpop.f32.mrf.mxu0
        %v5634 = vadd.f32 %v5374, %v5633
        %5635 = vmatmul.f32.gmra.mxu0 %v5309
        %v5636 = vpop.f32.mrf.mxu0
        %v5637 = vadd.f32 %v5374, %v5636
        %5638 = vmatmul.f32.gmra.mxu0 %v5310
        %v5639 = vpop.f32.mrf.mxu0
        %v5640 = vadd.f32 %v5374, %v5639
        %5641 = vmatmul.f32.gmra.mxu0 %v5311
        %v5642 = vpop.f32.mrf.mxu0
        %v5643 = vadd.f32 %v5374, %v5642
        %5644 = vmatmul.f32.gmra.mxu0 %v5312
        %v5645 = vpop.f32.mrf.mxu0
        %v5646 = vadd.f32 %v5374, %v5645
        %5647 = vmatmul.f32.gmra.mxu0 %v5313
        %v5648 = vpop.f32.mrf.mxu0
        %v5649 = vadd.f32 %v5374, %v5648
        %5650 = vmatmul.f32.gmra.mxu0 %v5314
        %v5651 = vpop.f32.mrf.mxu0
        %v5652 = vadd.f32 %v5374, %v5651
        %5653 = vmatmul.f32.gmra.mxu0 %v5315
        %v5654 = vpop.f32.mrf.mxu0
        %v5655 = vadd.f32 %v5374, %v5654
        %5656 = vmatmul.f32.gmra.mxu0 %v5316
        %v5657 = vpop.f32.mrf.mxu0
        %v5658 = vadd.f32 %v5374, %v5657
        %5659 = vmatmul.f32.gmra.mxu0 %v5317
        %v5660 = vpop.f32.mrf.mxu0
        %v5661 = vadd.f32 %v5374, %v5660
        %5662 = vmatmul.f32.gmra.mxu0 %v5318
        %v5663 = vpop.f32.mrf.mxu0
        %v5664 = vadd.f32 %v5374, %v5663
        %5665 = vmatmul.f32.gmra.mxu0 %v5319
        %v5666 = vpop.f32.mrf.mxu0
        %v5667 = vadd.f32 %v5374, %v5666
        %5668 = vmatmul.f32.gmra.mxu0 %v5320
        %v5669 = vpop.f32.mrf.mxu0
        %v5670 = vadd.f32 %v5374, %v5669
        %5671 = vmatmul.f32.gmra.mxu0 %v5321
        %v5672 = vpop.f32.mrf.mxu0
        %v5673 = vadd.f32 %v5374, %v5672
        %5674 = vmatmul.f32.gmra.mxu0 %v5322
        %v5675 = vpop.f32.mrf.mxu0
        %v5676 = vadd.f32 %v5374, %v5675
        %5677 = vmatmul.f32.gmra.mxu0 %v5323
        %v5678 = vpop.f32.mrf.mxu0
        %v5679 = vadd.f32 %v5374, %v5678
        %5680 = vmatmul.f32.gmra.mxu0 %v5324
        %v5681 = vpop.f32.mrf.mxu0
        %v5682 = vadd.f32 %v5374, %v5681
        %5683 = vmatmul.f32.gmra.mxu0 %v5325
        %v5684 = vpop.f32.mrf.mxu0
        %v5685 = vadd.f32 %v5374, %v5684
        %5686 = vmatmul.f32.gmra.mxu0 %v5326
        %v5687 = vpop.f32.mrf.mxu0
        %v5688 = vadd.f32 %v5374, %v5687
        %5689 = vmatmul.f32.gmra.mxu0 %v5327
        %v5690 = vpop.f32.mrf.mxu0
        %v5691 = vadd.f32 %v5374, %v5690
        %5692 = vmatmul.f32.gmra.mxu0 %v5328
        %v5693 = vpop.f32.mrf.mxu0
        %v5694 = vadd.f32 %v5374, %v5693
        %5695 = vmatmul.f32.gmra.mxu0 %v5329
        %v5696 = vpop.f32.mrf.mxu0
        %v5697 = vadd.f32 %v5374, %v5696
        %5698 = vmatmul.f32.gmra.mxu0 %v5330
        %v5699 = vpop.f32.mrf.mxu0
        %v5700 = vadd.f32 %v5374, %v5699
        %5701 = vmatmul.f32.gmra.mxu0 %v5331
        %v5702 = vpop.f32.mrf.mxu0
        %v5703 = vadd.f32 %v5374, %v5702
        %5704 = vmatmul.f32.gmra.mxu0 %v5332
        %v5705 = vpop.f32.mrf.mxu0
        %v5706 = vadd.f32 %v5374, %v5705
        %5707 = vmatmul.f32.gmra.mxu0 %v5333
        %v5708 = vpop.f32.mrf.mxu0
        %v5709 = vadd.f32 %v5374, %v5708
        %5710 = vmatmul.f32.gmra.mxu0 %v5334
        %v5711 = vpop.f32.mrf.mxu0
        %v5712 = vadd.f32 %v5374, %v5711
        %5713 = vmatmul.f32.gmra.mxu0 %v5335
        %v5714 = vpop.f32.mrf.mxu0
        %v5715 = vadd.f32 %v5374, %v5714
        %5716 = vmatmul.f32.gmra.mxu0 %v5336
        %v5717 = vpop.f32.mrf.mxu0
        %v5718 = vadd.f32 %v5374, %v5717
        %5719 = vmatmul.f32.gmra.mxu0 %v5337
        %v5720 = vpop.f32.mrf.mxu0
        %v5721 = vadd.f32 %v5374, %v5720
        %5722 = vmatmul.f32.gmra.mxu0 %v5338
        %v5723 = vpop.f32.mrf.mxu0
        %v5724 = vadd.f32 %v5374, %v5723
        %5725 = vmatmul.f32.gmra.mxu0 %v5339
        %v5726 = vpop.f32.mrf.mxu0
        %v5727 = vadd.f32 %v5374, %v5726
        %5728 = vmatmul.f32.gmra.mxu0 %v5340
        %v5729 = vpop.f32.mrf.mxu0
        %v5730 = vadd.f32 %v5374, %v5729
        %5731 = vmatmul.f32.gmra.mxu0 %v5341
        %v5732 = vpop.f32.mrf.mxu0
        %v5733 = vadd.f32 %v5374, %v5732
        %5734 = vmatmul.f32.gmra.mxu0 %v5342
        %v5735 = vpop.f32.mrf.mxu0
        %v5736 = vadd.f32 %v5374, %v5735
        %5737 = vmatmul.f32.gmra.mxu0 %v5343
        %v5738 = vpop.f32.mrf.mxu0
        %v5739 = vadd.f32 %v5374, %v5738
        %5740 = vmatmul.f32.gmra.mxu0 %v5344
        %v5741 = vpop.f32.mrf.mxu0
        %v5742 = vadd.f32 %v5374, %v5741
        %5743 = vmatmul.f32.gmra.mxu0 %v5345
        %v5744 = vpop.f32.mrf.mxu0
        %v5745 = vadd.f32 %v5374, %v5744
        %5746 = vmatmul.f32.gmra.mxu0 %v5346
        %v5747 = vpop.f32.mrf.mxu0
        %v5748 = vadd.f32 %v5374, %v5747
        %5749 = vmatmul.f32.gmra.mxu0 %v5347
        %v5750 = vpop.f32.mrf.mxu0
        %v5751 = vadd.f32 %v5374, %v5750
        %5752 = vmatmul.f32.gmra.mxu0 %v5348
        %v5753 = vpop.f32.mrf.mxu0
        %v5754 = vadd.f32 %v5374, %v5753
        %5755 = vmatmul.f32.gmra.mxu0 %v5349
        %v5756 = vpop.f32.mrf.mxu0
        %v5757 = vadd.f32 %v5374, %v5756
        %5758 = vmatmul.f32.gmra.mxu0 %v5350
        %v5759 = vpop.f32.mrf.mxu0
        %v5760 = vadd.f32 %v5374, %v5759
        %5761 = vmatmul.f32.gmra.mxu0 %v5351
        %v5762 = vpop.f32.mrf.mxu0
        %v5763 = vadd.f32 %v5374, %v5762
        %5764 = vmatmul.f32.gmra.mxu0 %v5352
        %v5765 = vpop.f32.mrf.mxu0
        %v5766 = vadd.f32 %v5374, %v5765
        %5767 = vmatmul.f32.gmra.mxu0 %v5353
        %v5768 = vpop.f32.mrf.mxu0
        %v5769 = vadd.f32 %v5374, %v5768
        %5770 = vmatmul.f32.gmra.mxu0 %v5354
        %v5771 = vpop.f32.mrf.mxu0
        %v5772 = vadd.f32 %v5374, %v5771
        %5773 = vmatmul.f32.gmra.mxu0 %v5355
        %v5774 = vpop.f32.mrf.mxu0
        %v5775 = vadd.f32 %v5374, %v5774
        %5776 = vdwg.mxu0
        %v5777 = vtanh.pop %v5394
        %v5778 = vtanh.pop %v5397
        %v5779 = vtanh.pop %v5400
        %v5780 = vtanh.pop %v5403
        %v5781 = vtanh.pop %v5406
        %v5782 = vtanh.pop %v5409
        %v5783 = vtanh.pop %v5412
        %v5784 = vtanh.pop %v5415
        %v5785 = vtanh.pop %v5418
        %v5786 = vtanh.pop %v5421
        %v5787 = vtanh.pop %v5424
        %v5788 = vtanh.pop %v5427
        %v5789 = vtanh.pop %v5430
        %v5790 = vtanh.pop %v5433
        %v5791 = vtanh.pop %v5436
        %v5792 = vtanh.pop %v5439
        %v5793 = vtanh.pop %v5442
        %v5794 = vtanh.pop %v5445
        %v5795 = vtanh.pop %v5448
        %v5796 = vtanh.pop %v5451
        %v5797 = vtanh.pop %v5454
        %v5798 = vtanh.pop %v5457
        %v5799 = vtanh.pop %v5460
        %v5800 = vtanh.pop %v5463
        %v5801 = vtanh.pop %v5466
        %v5802 = vtanh.pop %v5469
        %v5803 = vtanh.pop %v5472
        %v5804 = vtanh.pop %v5475
        %v5805 = vtanh.pop %v5478
        %v5806 = vtanh.pop %v5481
        %v5807 = vtanh.pop %v5484
        %v5808 = vtanh.pop %v5487
        %v5809 = vtanh.pop %v5490
        %v5810 = vtanh.pop %v5493
        %v5811 = vtanh.pop %v5496
        %v5812 = vtanh.pop %v5499
        %v5813 = vtanh.pop %v5502
        %v5814 = vtanh.pop %v5505
        %v5815 = vtanh.pop %v5508
        %v5816 = vtanh.pop %v5511
        %v5817 = vtanh.pop %v5514
        %v5818 = vtanh.pop %v5517
        %v5819 = vtanh.pop %v5520
        %v5820 = vtanh.pop %v5523
        %v5821 = vtanh.pop %v5526
        %v5822 = vtanh.pop %v5529
        %v5823 = vtanh.pop %v5532
        %v5824 = vtanh.pop %v5535
        %v5825 = vtanh.pop %v5538
        %v5826 = vtanh.pop %v5541
        %v5827 = vtanh.pop %v5544
        %v5828 = vtanh.pop %v5547
        %v5829 = vtanh.pop %v5550
        %v5830 = vtanh.pop %v5553
        %v5831 = vtanh.pop %v5556
        %v5832 = vtanh.pop %v5559
        %v5833 = vtanh.pop %v5562
        %v5834 = vtanh.pop %v5565
        %v5835 = vtanh.pop %v5568
        %v5836 = vtanh.pop %v5571
        %v5837 = vtanh.pop %v5574
        %v5838 = vtanh.pop %v5577
        %v5839 = vtanh.pop %v5580
        %v5840 = vtanh.pop %v5583
        %v5841 = vtanh.pop %v5586
        %v5842 = vtanh.pop %v5589
        %v5843 = vtanh.pop %v5592
        %v5844 = vtanh.pop %v5595
        %v5845 = vtanh.pop %v5598
        %v5846 = vtanh.pop %v5601
        %v5847 = vtanh.pop %v5604
        %v5848 = vtanh.pop %v5607
        %v5849 = vtanh.pop %v5610
        %v5850 = vtanh.pop %v5613
        %v5851 = vtanh.pop %v5616
        %v5852 = vtanh.pop %v5619
        %v5853 = vtanh.pop %v5622
        %v5854 = vtanh.pop %v5625
        %v5855 = vtanh.pop %v5628
        %v5856 = vtanh.pop %v5631
        %v5857 = vtanh.pop %v5634
        %v5858 = vtanh.pop %v5637
        %v5859 = vtanh.pop %v5640
        %v5860 = vtanh.pop %v5643
        %v5861 = vtanh.pop %v5646
        %v5862 = vtanh.pop %v5649
        %v5863 = vtanh.pop %v5652
        %v5864 = vtanh.pop %v5655
        %v5865 = vtanh.pop %v5658
        %v5866 = vtanh.pop %v5661
        %v5867 = vtanh.pop %v5664
        %v5868 = vtanh.pop %v5667
        %v5869 = vtanh.pop %v5670
        %v5870 = vtanh.pop %v5673
        %v5871 = vtanh.pop %v5676
        %v5872 = vtanh.pop %v5679
        %v5873 = vtanh.pop %v5682
        %v5874 = vtanh.pop %v5685
        %v5875 = vtanh.pop %v5688
        %v5876 = vtanh.pop %v5691
        %v5877 = vtanh.pop %v5694
        %v5878 = vtanh.pop %v5697
        %v5879 = vtanh.pop %v5700
        %v5880 = vtanh.pop %v5703
        %v5881 = vtanh.pop %v5706
        %v5882 = vtanh.pop %v5709
        %v5883 = vtanh.pop %v5712
        %v5884 = vtanh.pop %v5715
        %v5885 = vtanh.pop %v5718
        %v5886 = vtanh.pop %v5721
        %v5887 = vtanh.pop %v5724
        %v5888 = vtanh.pop %v5727
        %v5889 = vtanh.pop %v5730
        %v5890 = vtanh.pop %v5733
        %v5891 = vtanh.pop %v5736
        %v5892 = vtanh.pop %v5739
        %v5893 = vtanh.pop %v5742
        %v5894 = vtanh.pop %v5745
        %v5895 = vtanh.pop %v5748
        %v5896 = vtanh.pop %v5751
        %v5897 = vtanh.pop %v5754
        %v5898 = vtanh.pop %v5757
        %v5899 = vtanh.pop %v5760
        %v5900 = vtanh.pop %v5763
        %v5901 = vtanh.pop %v5766
        %v5902 = vtanh.pop %v5769
        %v5903 = vtanh.pop %v5772
        %v5904 = vtanh.pop %v5775
        %v5905 = vmul.f32 %v5777, %v3618
        %v5906 = vmul.f32 %v5778, %v3619
        %v5907 = vmul.f32 %v5779, %v3620
        %v5908 = vmul.f32 %v5780, %v3621
        %v5909 = vmul.f32 %v5781, %v3622
        %v5910 = vmul.f32 %v5782, %v3623
        %v5911 = vmul.f32 %v5783, %v3624
        %v5912 = vmul.f32 %v5784, %v3625
        %v5913 = vmul.f32 %v5785, %v3626
        %v5914 = vmul.f32 %v5786, %v3627
        %v5915 = vmul.f32 %v5787, %v3628
        %v5916 = vmul.f32 %v5788, %v3629
        %v5917 = vmul.f32 %v5789, %v3630
        %v5918 = vmul.f32 %v5790, %v3631
        %v5919 = vmul.f32 %v5791, %v3632
        %v5920 = vmul.f32 %v5792, %v3633
        %v5921 = vmul.f32 %v5793, %v3634
        %v5922 = vmul.f32 %v5794, %v3635
        %v5923 = vmul.f32 %v5795, %v3636
        %v5924 = vmul.f32 %v5796, %v3637
        %v5925 = vmul.f32 %v5797, %v3638
        %v5926 = vmul.f32 %v5798, %v3639
        %v5927 = vmul.f32 %v5799, %v3640
        %v5928 = vmul.f32 %v5800, %v3641
        %v5929 = vmul.f32 %v5801, %v3642
        %v5930 = vmul.f32 %v5802, %v3643
        %v5931 = vmul.f32 %v5803, %v3644
        %v5932 = vmul.f32 %v5804, %v3645
        %v5933 = vmul.f32 %v5805, %v3646
        %v5934 = vmul.f32 %v5806, %v3647
        %v5935 = vmul.f32 %v5807, %v3648
        %v5936 = vmul.f32 %v5808, %v3649
        %v5937 = vmul.f32 %v5809, %v3650
        %v5938 = vmul.f32 %v5810, %v3651
        %v5939 = vmul.f32 %v5811, %v3652
        %v5940 = vmul.f32 %v5812, %v3653
        %v5941 = vmul.f32 %v5813, %v3654
        %v5942 = vmul.f32 %v5814, %v3655
        %v5943 = vmul.f32 %v5815, %v3656
        %v5944 = vmul.f32 %v5816, %v3657
        %v5945 = vmul.f32 %v5817, %v3658
        %v5946 = vmul.f32 %v5818, %v3659
        %v5947 = vmul.f32 %v5819, %v3660
        %v5948 = vmul.f32 %v5820, %v3661
        %v5949 = vmul.f32 %v5821, %v3662
        %v5950 = vmul.f32 %v5822, %v3663
        %v5951 = vmul.f32 %v5823, %v3664
        %v5952 = vmul.f32 %v5824, %v3665
        %v5953 = vmul.f32 %v5825, %v3666
        %v5954 = vmul.f32 %v5826, %v3667
        %v5955 = vmul.f32 %v5827, %v3668
        %v5956 = vmul.f32 %v5828, %v3669
        %v5957 = vmul.f32 %v5829, %v3670
        %v5958 = vmul.f32 %v5830, %v3671
        %v5959 = vmul.f32 %v5831, %v3672
        %v5960 = vmul.f32 %v5832, %v3673
        %v5961 = vmul.f32 %v5833, %v3674
        %v5962 = vmul.f32 %v5834, %v3675
        %v5963 = vmul.f32 %v5835, %v3676
        %v5964 = vmul.f32 %v5836, %v3677
        %v5965 = vmul.f32 %v5837, %v3678
        %v5966 = vmul.f32 %v5838, %v3679
        %v5967 = vmul.f32 %v5839, %v3680
        %v5968 = vmul.f32 %v5840, %v3681
        %v5969 = vmul.f32 %v5841, %v3682
        %v5970 = vmul.f32 %v5842, %v3683
        %v5971 = vmul.f32 %v5843, %v3684
        %v5972 = vmul.f32 %v5844, %v3685
        %v5973 = vmul.f32 %v5845, %v3686
        %v5974 = vmul.f32 %v5846, %v3687
        %v5975 = vmul.f32 %v5847, %v3688
        %v5976 = vmul.f32 %v5848, %v3689
        %v5977 = vmul.f32 %v5849, %v3690
        %v5978 = vmul.f32 %v5850, %v3691
        %v5979 = vmul.f32 %v5851, %v3692
        %v5980 = vmul.f32 %v5852, %v3693
        %v5981 = vmul.f32 %v5853, %v3694
        %v5982 = vmul.f32 %v5854, %v3695
        %v5983 = vmul.f32 %v5855, %v3696
        %v5984 = vmul.f32 %v5856, %v3697
        %v5985 = vmul.f32 %v5857, %v3698
        %v5986 = vmul.f32 %v5858, %v3699
        %v5987 = vmul.f32 %v5859, %v3700
        %v5988 = vmul.f32 %v5860, %v3701
        %v5989 = vmul.f32 %v5861, %v3702
        %v5990 = vmul.f32 %v5862, %v3703
        %v5991 = vmul.f32 %v5863, %v3704
        %v5992 = vmul.f32 %v5864, %v3705
        %v5993 = vmul.f32 %v5865, %v3706
        %v5994 = vmul.f32 %v5866, %v3707
        %v5995 = vmul.f32 %v5867, %v3708
        %v5996 = vmul.f32 %v5868, %v3709
        %v5997 = vmul.f32 %v5869, %v3710
        %v5998 = vmul.f32 %v5870, %v3711
        %v5999 = vmul.f32 %v5871, %v3712
        %v6000 = vmul.f32 %v5872, %v3713
        %v6001 = vmul.f32 %v5873, %v3714
        %v6002 = vmul.f32 %v5874, %v3715
        %v6003 = vmul.f32 %v5875, %v3716
        %v6004 = vmul.f32 %v5876, %v3717
        %v6005 = vmul.f32 %v5877, %v3718
        %v6006 = vmul.f32 %v5878, %v3719
        %v6007 = vmul.f32 %v5879, %v3720
        %v6008 = vmul.f32 %v5880, %v3721
        %v6009 = vmul.f32 %v5881, %v3722
        %v6010 = vmul.f32 %v5882, %v3723
        %v6011 = vmul.f32 %v5883, %v3724
        %v6012 = vmul.f32 %v5884, %v3725
        %v6013 = vmul.f32 %v5885, %v3726
        %v6014 = vmul.f32 %v5886, %v3727
        %v6015 = vmul.f32 %v5887, %v3728
        %v6016 = vmul.f32 %v5888, %v3729
        %v6017 = vmul.f32 %v5889, %v3730
        %v6018 = vmul.f32 %v5890, %v3731
        %v6019 = vmul.f32 %v5891, %v3732
        %v6020 = vmul.f32 %v5892, %v3733
        %v6021 = vmul.f32 %v5893, %v3734
        %v6022 = vmul.f32 %v5894, %v3735
        %v6023 = vmul.f32 %v5895, %v3736
        %v6024 = vmul.f32 %v5896, %v3737
        %v6025 = vmul.f32 %v5897, %v3738
        %v6026 = vmul.f32 %v5898, %v3739
        %v6027 = vmul.f32 %v5899, %v3740
        %v6028 = vmul.f32 %v5900, %v3741
        %v6029 = vmul.f32 %v5901, %v3742
        %v6030 = vmul.f32 %v5902, %v3743
        %v6031 = vmul.f32 %v5903, %v3744
        %v6032 = vmul.f32 %v5904, %v3745
        %v6033 = vadd.f32 %v3234, %v5905
        %v6034 = vadd.f32 %v3237, %v5906
        %v6035 = vadd.f32 %v3240, %v5907
        %v6036 = vadd.f32 %v3243, %v5908
        %v6037 = vadd.f32 %v3246, %v5909
        %v6038 = vadd.f32 %v3249, %v5910
        %v6039 = vadd.f32 %v3252, %v5911
        %v6040 = vadd.f32 %v3255, %v5912
        %v6041 = vadd.f32 %v3258, %v5913
        %v6042 = vadd.f32 %v3261, %v5914
        %v6043 = vadd.f32 %v3264, %v5915
        %v6044 = vadd.f32 %v3267, %v5916
        %v6045 = vadd.f32 %v3270, %v5917
        %v6046 = vadd.f32 %v3273, %v5918
        %v6047 = vadd.f32 %v3276, %v5919
        %v6048 = vadd.f32 %v3279, %v5920
        %v6049 = vadd.f32 %v3282, %v5921
        %v6050 = vadd.f32 %v3285, %v5922
        %v6051 = vadd.f32 %v3288, %v5923
        %v6052 = vadd.f32 %v3291, %v5924
        %v6053 = vadd.f32 %v3294, %v5925
        %v6054 = vadd.f32 %v3297, %v5926
        %v6055 = vadd.f32 %v3300, %v5927
        %v6056 = vadd.f32 %v3303, %v5928
        %v6057 = vadd.f32 %v3306, %v5929
        %v6058 = vadd.f32 %v3309, %v5930
        %v6059 = vadd.f32 %v3312, %v5931
        %v6060 = vadd.f32 %v3315, %v5932
        %v6061 = vadd.f32 %v3318, %v5933
        %v6062 = vadd.f32 %v3321, %v5934
        %v6063 = vadd.f32 %v3324, %v5935
        %v6064 = vadd.f32 %v3327, %v5936
        %v6065 = vadd.f32 %v3330, %v5937
        %v6066 = vadd.f32 %v3333, %v5938
        %v6067 = vadd.f32 %v3336, %v5939
        %v6068 = vadd.f32 %v3339, %v5940
        %v6069 = vadd.f32 %v3342, %v5941
        %v6070 = vadd.f32 %v3345, %v5942
        %v6071 = vadd.f32 %v3348, %v5943
        %v6072 = vadd.f32 %v3351, %v5944
        %v6073 = vadd.f32 %v3354, %v5945
        %v6074 = vadd.f32 %v3357, %v5946
        %v6075 = vadd.f32 %v3360, %v5947
        %v6076 = vadd.f32 %v3363, %v5948
        %v6077 = vadd.f32 %v3366, %v5949
        %v6078 = vadd.f32 %v3369, %v5950
        %v6079 = vadd.f32 %v3372, %v5951
        %v6080 = vadd.f32 %v3375, %v5952
        %v6081 = vadd.f32 %v3378, %v5953
        %v6082 = vadd.f32 %v3381, %v5954
        %v6083 = vadd.f32 %v3384, %v5955
        %v6084 = vadd.f32 %v3387, %v5956
        %v6085 = vadd.f32 %v3390, %v5957
        %v6086 = vadd.f32 %v3393, %v5958
        %v6087 = vadd.f32 %v3396, %v5959
        %v6088 = vadd.f32 %v3399, %v5960
        %v6089 = vadd.f32 %v3402, %v5961
        %v6090 = vadd.f32 %v3405, %v5962
        %v6091 = vadd.f32 %v3408, %v5963
        %v6092 = vadd.f32 %v3411, %v5964
        %v6093 = vadd.f32 %v3414, %v5965
        %v6094 = vadd.f32 %v3417, %v5966
        %v6095 = vadd.f32 %v3420, %v5967
        %v6096 = vadd.f32 %v3423, %v5968
        %v6097 = vadd.f32 %v3426, %v5969
        %v6098 = vadd.f32 %v3429, %v5970
        %v6099 = vadd.f32 %v3432, %v5971
        %v6100 = vadd.f32 %v3435, %v5972
        %v6101 = vadd.f32 %v3438, %v5973
        %v6102 = vadd.f32 %v3441, %v5974
        %v6103 = vadd.f32 %v3444, %v5975
        %v6104 = vadd.f32 %v3447, %v5976
        %v6105 = vadd.f32 %v3450, %v5977
        %v6106 = vadd.f32 %v3453, %v5978
        %v6107 = vadd.f32 %v3456, %v5979
        %v6108 = vadd.f32 %v3459, %v5980
        %v6109 = vadd.f32 %v3462, %v5981
        %v6110 = vadd.f32 %v3465, %v5982
        %v6111 = vadd.f32 %v3468, %v5983
        %v6112 = vadd.f32 %v3471, %v5984
        %v6113 = vadd.f32 %v3474, %v5985
        %v6114 = vadd.f32 %v3477, %v5986
        %v6115 = vadd.f32 %v3480, %v5987
        %v6116 = vadd.f32 %v3483, %v5988
        %v6117 = vadd.f32 %v3486, %v5989
        %v6118 = vadd.f32 %v3489, %v5990
        %v6119 = vadd.f32 %v3492, %v5991
        %v6120 = vadd.f32 %v3495, %v5992
        %v6121 = vadd.f32 %v3498, %v5993
        %v6122 = vadd.f32 %v3501, %v5994
        %v6123 = vadd.f32 %v3504, %v5995
        %v6124 = vadd.f32 %v3507, %v5996
        %v6125 = vadd.f32 %v3510, %v5997
        %v6126 = vadd.f32 %v3513, %v5998
        %v6127 = vadd.f32 %v3516, %v5999
        %v6128 = vadd.f32 %v3519, %v6000
        %v6129 = vadd.f32 %v3522, %v6001
        %v6130 = vadd.f32 %v3525, %v6002
        %v6131 = vadd.f32 %v3528, %v6003
        %v6132 = vadd.f32 %v3531, %v6004
        %v6133 = vadd.f32 %v3534, %v6005
        %v6134 = vadd.f32 %v3537, %v6006
        %v6135 = vadd.f32 %v3540, %v6007
        %v6136 = vadd.f32 %v3543, %v6008
        %v6137 = vadd.f32 %v3546, %v6009
        %v6138 = vadd.f32 %v3549, %v6010
        %v6139 = vadd.f32 %v3552, %v6011
        %v6140 = vadd.f32 %v3555, %v6012
        %v6141 = vadd.f32 %v3558, %v6013
        %v6142 = vadd.f32 %v3561, %v6014
        %v6143 = vadd.f32 %v3564, %v6015
        %v6144 = vadd.f32 %v3567, %v6016
        %v6145 = vadd.f32 %v3570, %v6017
        %v6146 = vadd.f32 %v3573, %v6018
        %v6147 = vadd.f32 %v3576, %v6019
        %v6148 = vadd.f32 %v3579, %v6020
        %v6149 = vadd.f32 %v3582, %v6021
        %v6150 = vadd.f32 %v3585, %v6022
        %v6151 = vadd.f32 %v3588, %v6023
        %v6152 = vadd.f32 %v3591, %v6024
        %v6153 = vadd.f32 %v3594, %v6025
        %v6154 = vadd.f32 %v3597, %v6026
        %v6155 = vadd.f32 %v3600, %v6027
        %v6156 = vadd.f32 %v3603, %v6028
        %v6157 = vadd.f32 %v3606, %v6029
        %v6158 = vadd.f32 %v3609, %v6030
        %v6159 = vadd.f32 %v3612, %v6031
        %v6160 = vadd.f32 %v3615, %v6032
        %v6161 = vld [vmem:[%s9] sm:$0x1]
        %v6162 = vld [vmem:[#allocation2] sm:$0x1]
        %6164 = vset.pattern.permute.xlu0 0
        %6165 = vperm.xlu0 %6164, %v6162
        %v6166 = vpop.permute.xlu0 %6165
        %v6168 = vperm.slane %v6166, 0
        %6169 = vmatpush.xpose.msra.mxu0 %v6048
        %6170 = vmatpush.xpose.msra.mxu0 %v6047
        %6171 = vmatpush.xpose.msra.mxu0 %v6046
        %6172 = vmatpush.xpose.msra.mxu0 %v6045
        %6173 = vmatpush.xpose.msra.mxu0 %v6044
        %6174 = vmatpush.xpose.msra.mxu0 %v6043
        %6175 = vmatpush.xpose.msra.mxu0 %v6042
        %6176 = vmatpush.xpose.msra.mxu0 %v6041
        %6177 = vmatpush.xpose.msra.mxu0 %v6040
        %6178 = vmatpush.xpose.msra.mxu0 %v6039
        %6179 = vmatpush.xpose.msra.mxu0 %v6038
        %6180 = vmatpush.xpose.msra.mxu0 %v6037
        %6181 = vmatpush.xpose.msra.mxu0 %v6036
        %6182 = vmatpush.xpose.msra.mxu0 %v6035
        %6183 = vmatpush.xpose.msra.mxu0 %v6034
        %6184 = vmatpush.xpose.msra.mxu0 %v6033
        %6185 = vmatmul.f32.gmra.mxu0 %v6161
        %v6186 = vpop.f32.mrf.mxu0
        %v6187 = vadd.f32 %v6168, %v6186
        %6188 = vdwg.mxu0
        %6189 = vmatpush.xpose.msra.mxu0 %v6064
        %6190 = vmatpush.xpose.msra.mxu0 %v6063
        %6191 = vmatpush.xpose.msra.mxu0 %v6062
        %6192 = vmatpush.xpose.msra.mxu0 %v6061
        %6193 = vmatpush.xpose.msra.mxu0 %v6060
        %6194 = vmatpush.xpose.msra.mxu0 %v6059
        %6195 = vmatpush.xpose.msra.mxu0 %v6058
        %6196 = vmatpush.xpose.msra.mxu0 %v6057
        %6197 = vmatpush.xpose.msra.mxu0 %v6056
        %6198 = vmatpush.xpose.msra.mxu0 %v6055
        %6199 = vmatpush.xpose.msra.mxu0 %v6054
        %6200 = vmatpush.xpose.msra.mxu0 %v6053
        %6201 = vmatpush.xpose.msra.mxu0 %v6052
        %6202 = vmatpush.xpose.msra.mxu0 %v6051
        %6203 = vmatpush.xpose.msra.mxu0 %v6050
        %6204 = vmatpush.xpose.msra.mxu0 %v6049
        %6205 = vmatmul.f32.gmra.mxu0 %v6161
        %v6206 = vpop.f32.mrf.mxu0
        %v6207 = vadd.f32 %v6168, %v6206
        %6208 = vdwg.mxu0
        %6209 = vmatpush.xpose.msra.mxu0 %v6080
        %6210 = vmatpush.xpose.msra.mxu0 %v6079
        %6211 = vmatpush.xpose.msra.mxu0 %v6078
        %6212 = vmatpush.xpose.msra.mxu0 %v6077
        %6213 = vmatpush.xpose.msra.mxu0 %v6076
        %6214 = vmatpush.xpose.msra.mxu0 %v6075
        %6215 = vmatpush.xpose.msra.mxu0 %v6074
        %6216 = vmatpush.xpose.msra.mxu0 %v6073
        %6217 = vmatpush.xpose.msra.mxu0 %v6072
        %6218 = vmatpush.xpose.msra.mxu0 %v6071
        %6219 = vmatpush.xpose.msra.mxu0 %v6070
        %6220 = vmatpush.xpose.msra.mxu0 %v6069
        %6221 = vmatpush.xpose.msra.mxu0 %v6068
        %6222 = vmatpush.xpose.msra.mxu0 %v6067
        %6223 = vmatpush.xpose.msra.mxu0 %v6066
        %6224 = vmatpush.xpose.msra.mxu0 %v6065
        %6225 = vmatmul.f32.gmra.mxu0 %v6161
        %v6226 = vpop.f32.mrf.mxu0
        %v6227 = vadd.f32 %v6168, %v6226
        %6228 = vdwg.mxu0
        %6229 = vmatpush.xpose.msra.mxu0 %v6096
        %6230 = vmatpush.xpose.msra.mxu0 %v6095
        %6231 = vmatpush.xpose.msra.mxu0 %v6094
        %6232 = vmatpush.xpose.msra.mxu0 %v6093
        %6233 = vmatpush.xpose.msra.mxu0 %v6092
        %6234 = vmatpush.xpose.msra.mxu0 %v6091
        %6235 = vmatpush.xpose.msra.mxu0 %v6090
        %6236 = vmatpush.xpose.msra.mxu0 %v6089
        %6237 = vmatpush.xpose.msra.mxu0 %v6088
        %6238 = vmatpush.xpose.msra.mxu0 %v6087
        %6239 = vmatpush.xpose.msra.mxu0 %v6086
        %6240 = vmatpush.xpose.msra.mxu0 %v6085
        %6241 = vmatpush.xpose.msra.mxu0 %v6084
        %6242 = vmatpush.xpose.msra.mxu0 %v6083
        %6243 = vmatpush.xpose.msra.mxu0 %v6082
        %6244 = vmatpush.xpose.msra.mxu0 %v6081
        %6245 = vmatmul.f32.gmra.mxu0 %v6161
        %v6246 = vpop.f32.mrf.mxu0
        %v6247 = vadd.f32 %v6168, %v6246
        %6248 = vdwg.mxu0
        %6249 = vmatpush.xpose.msra.mxu0 %v6112
        %6250 = vmatpush.xpose.msra.mxu0 %v6111
        %6251 = vmatpush.xpose.msra.mxu0 %v6110
        %6252 = vmatpush.xpose.msra.mxu0 %v6109
        %6253 = vmatpush.xpose.msra.mxu0 %v6108
        %6254 = vmatpush.xpose.msra.mxu0 %v6107
        %6255 = vmatpush.xpose.msra.mxu0 %v6106
        %6256 = vmatpush.xpose.msra.mxu0 %v6105
        %6257 = vmatpush.xpose.msra.mxu0 %v6104
        %6258 = vmatpush.xpose.msra.mxu0 %v6103
        %6259 = vmatpush.xpose.msra.mxu0 %v6102
        %6260 = vmatpush.xpose.msra.mxu0 %v6101
        %6261 = vmatpush.xpose.msra.mxu0 %v6100
        %6262 = vmatpush.xpose.msra.mxu0 %v6099
        %6263 = vmatpush.xpose.msra.mxu0 %v6098
        %6264 = vmatpush.xpose.msra.mxu0 %v6097
        %6265 = vmatmul.f32.gmra.mxu0 %v6161
        %v6266 = vpop.f32.mrf.mxu0
        %v6267 = vadd.f32 %v6168, %v6266
        %6268 = vdwg.mxu0
        %6269 = vmatpush.xpose.msra.mxu0 %v6128
        %6270 = vmatpush.xpose.msra.mxu0 %v6127
        %6271 = vmatpush.xpose.msra.mxu0 %v6126
        %6272 = vmatpush.xpose.msra.mxu0 %v6125
        %6273 = vmatpush.xpose.msra.mxu0 %v6124
        %6274 = vmatpush.xpose.msra.mxu0 %v6123
        %6275 = vmatpush.xpose.msra.mxu0 %v6122
        %6276 = vmatpush.xpose.msra.mxu0 %v6121
        %6277 = vmatpush.xpose.msra.mxu0 %v6120
        %6278 = vmatpush.xpose.msra.mxu0 %v6119
        %6279 = vmatpush.xpose.msra.mxu0 %v6118
        %6280 = vmatpush.xpose.msra.mxu0 %v6117
        %6281 = vmatpush.xpose.msra.mxu0 %v6116
        %6282 = vmatpush.xpose.msra.mxu0 %v6115
        %6283 = vmatpush.xpose.msra.mxu0 %v6114
        %6284 = vmatpush.xpose.msra.mxu0 %v6113
        %6285 = vmatmul.f32.gmra.mxu0 %v6161
        %v6286 = vpop.f32.mrf.mxu0
        %v6287 = vadd.f32 %v6168, %v6286
        %6288 = vdwg.mxu0
        %6289 = vmatpush.xpose.msra.mxu0 %v6144
        %6290 = vmatpush.xpose.msra.mxu0 %v6143
        %6291 = vmatpush.xpose.msra.mxu0 %v6142
        %6292 = vmatpush.xpose.msra.mxu0 %v6141
        %6293 = vmatpush.xpose.msra.mxu0 %v6140
        %6294 = vmatpush.xpose.msra.mxu0 %v6139
        %6295 = vmatpush.xpose.msra.mxu0 %v6138
        %6296 = vmatpush.xpose.msra.mxu0 %v6137
        %6297 = vmatpush.xpose.msra.mxu0 %v6136
        %6298 = vmatpush.xpose.msra.mxu0 %v6135
        %6299 = vmatpush.xpose.msra.mxu0 %v6134
        %6300 = vmatpush.xpose.msra.mxu0 %v6133
        %6301 = vmatpush.xpose.msra.mxu0 %v6132
        %6302 = vmatpush.xpose.msra.mxu0 %v6131
        %6303 = vmatpush.xpose.msra.mxu0 %v6130
        %6304 = vmatpush.xpose.msra.mxu0 %v6129
        %6305 = vmatmul.f32.gmra.mxu0 %v6161
        %v6306 = vpop.f32.mrf.mxu0
        %v6307 = vadd.f32 %v6168, %v6306
        %6308 = vdwg.mxu0
        %6309 = vmatpush.xpose.msra.mxu0 %v6160
        %6310 = vmatpush.xpose.msra.mxu0 %v6159
        %6311 = vmatpush.xpose.msra.mxu0 %v6158
        %6312 = vmatpush.xpose.msra.mxu0 %v6157
        %6313 = vmatpush.xpose.msra.mxu0 %v6156
        %6314 = vmatpush.xpose.msra.mxu0 %v6155
        %6315 = vmatpush.xpose.msra.mxu0 %v6154
        %6316 = vmatpush.xpose.msra.mxu0 %v6153
        %6317 = vmatpush.xpose.msra.mxu0 %v6152
        %6318 = vmatpush.xpose.msra.mxu0 %v6151
        %6319 = vmatpush.xpose.msra.mxu0 %v6150
        %6320 = vmatpush.xpose.msra.mxu0 %v6149
        %6321 = vmatpush.xpose.msra.mxu0 %v6148
        %6322 = vmatpush.xpose.msra.mxu0 %v6147
        %6323 = vmatpush.xpose.msra.mxu0 %v6146
        %6324 = vmatpush.xpose.msra.mxu0 %v6145
        %6325 = vmatmul.f32.gmra.mxu0 %v6161
        %v6326 = vpop.f32.mrf.mxu0
        %v6327 = vadd.f32 %v6168, %v6326
        %6328 = vdwg.mxu0
        %v6337 = vrot.slane %v6207, 7
        %v6338 = vrot.slane %v6227, 6
        %v6339 = vrot.slane %v6247, 5
        %v6340 = vrot.slane %v6267, 4
        %v6341 = vrot.slane %v6287, 3
        %v6342 = vrot.slane %v6307, 2
        %v6343 = vrot.slane %v6327, 1
        %vm6344 = vcmask 1040384
        %v6345 = vsel %vm6344, %v6187, %v6337
        %vm6346 = vcmask 1042434
        %v6347 = vsel %vm6346, %v6338, %v6339
        %vm6348 = vcmask 1041408
        %v6349 = vsel %vm6348, %v6345, %v6347
        %vm6350 = vcmask 1044484
        %v6351 = vsel %vm6350, %v6340, %v6341
        %vm6352 = vcmask 1046534
        %v6353 = vsel %vm6352, %v6342, %v6343
        %vm6354 = vcmask 1045508
        %v6355 = vsel %vm6354, %v6351, %v6353
        %vm6356 = vcmask 1043456
        %v6357 = vsel %vm6356, %v6349, %v6355
        %6359 = vst [vmem:[%s382] sm:$0xff] %v6357
        %s6360 = sand.u32 %s271, 1
        %s6361 = scalar_lea.sflag [#allocation4], %s6360
        %s6362 = sand.u32 %s271, 1
        %s6363 = smul.addr %s6362, 8
        %s6364 = scalar_lea.vmem [#allocation3], %s6363
        // Predicated region
        $region65: #{pinn_forward.1} parent=63 // pred_check
          %p6365 = pneg %p281
        $region66: #{pinn_forward.1} parent=63 // pred_check_branch
          %6367 = sbr.rel (%p6365) target = $region68
        $region67: #{pinn_forward.1} parent=63 // pred_region
          %s6368 = smul.u32 8, %s27
          %6370 = vsyncadd %s6361, 0
          %s6371 = scalar_lea.hbm %s11, %s6368
          %s6373 = sshll.u32 %s6364, 4
          %s6374 = int_to_ptr.vmem [resolvable:$true] %s6373
          %s6375 = sshll.u32 %s6371, 4
          %s6376 = int_to_ptr.hbm [resolvable:$true] %s6375
          %6378 = dma.vmem_to_hbm [thread:$0]  %s6374, 128, %s6376, %s6361
        $region68: #{pinn_forward.1} parent=63 // pred_fallthru
          _
      $region64: #{pinn_forward.1} parent=5 // pred_fallthru
        _
      %p6379 = scmp.le.s32.totalorder 2, %s22
      // Predicated region
      $region69: #{pinn_forward.1} parent=5 // pred_check
        %p6380 = pneg %p6379
      $region70: #{pinn_forward.1} parent=5 // pred_check_branch
        %6382 = sbr.rel (%p6380) target = $region72
      $region71: #{pinn_forward.1} parent=5 // pred_region
        %s6383 = ssub.s32 %s22, 2
        // Predicated region
        $region73: #{pinn_forward.1} parent=71 // pred_check
          %p6384 = pneg %p287
        $region74: #{pinn_forward.1} parent=71 // pred_check_branch
          %6386 = sbr.rel (%p6384) target = $region76
        $region75: #{pinn_forward.1} parent=71 // pred_region
          %s6387 = sand.u32 %s272, 1
          %s6388 = scalar_lea.sflag [#allocation4], %s6387
          %s6389 = sand.u32 %s272, 1
          %s6390 = smul.addr %s6389, 8
          %s6391 = scalar_lea.vmem [#allocation3], %s6390
          %6393 = dma.done %s6388, 128
        $region76: #{pinn_forward.1} parent=71 // pred_fallthru
          _
      $region72: #{pinn_forward.1} parent=5 // pred_fallthru
        _
    $region6: #{pinn_forward.1} parent=1 // loop_footer
      %s26 = sadd.s32 1, %s22
    $region7: #{pinn_forward.1} parent=1 // loop_footer_branch
      %21 = sbr.rel target = $region3
    $region8: #{pinn_forward.1} parent=1 // loop_exit
      _
    %6394 = vsyncpa [#allocation4], 1
    %s6395 = scalar_lea.sflag [#allocation4], 1
    %6396 = vsyncpa %s6395, 1

</llo_original>
